<compile_context>
chip_gen: v5e
topology: v5e:2x2
jax: 0.10.0
libtpu: 0.0.40
codegen_flags: <defaults>
</compile_context>

<pallas_src>
import functools
import math

import jax
import jax.numpy as jnp
from jax import lax
from jax.experimental import pallas as pl
from jax.experimental.pallas import tpu as pltpu

# row layout of the per-layer "vector" slab (biases + LayerNorm params)
_BQKV, _BO, _B1, _B2, _LN1W, _LN1B, _LN2W, _LN2B = range(8)


# ----------------------------------------------------------------------------
# In-kernel building blocks
# ----------------------------------------------------------------------------

def _layernorm(x, w, b, eps=1e-5):
    mu = jnp.mean(x, axis=-1, keepdims=True)
    var = jnp.mean((x - mu) ** 2, axis=-1, keepdims=True)
    return (x - mu) * lax.rsqrt(var + eps) * w + b


def _encoder_layer(x, mats_ref, w2_ref, vec_ref, layer, n_heads, add_mask):
    """One post-norm TransformerEncoderLayer (ReLU FFN, eval-mode dropout = id).

    x:        (M, D) activations (one batch element's sequences).
    mats_ref: (L, D, 6D) ref with columns [wqkv | wo | w1].
    w2_ref:   (L, 2D, D) ref.
    vec_ref:  (L, 8, 3D) ref of biases / LN params (row layout above).
    add_mask: additive (M, M) mask (0 / -1e30) or None (single sequence).
    """
    M, D = x.shape
    Dh = D // n_heads
    scale = 1.0 / math.sqrt(Dh)

    # weight / bias windows are read straight from the (packed) refs
    wqkv = mats_ref[layer, :, 0:3 * D]                     # (D, 3D)
    w1 = mats_ref[layer, :, 4 * D:6 * D]                   # (D, 2D)
    w2 = w2_ref[layer]                                     # (2D, D)
    bqkv = vec_ref[layer, _BQKV:_BQKV + 1, 0:3 * D]
    bo = vec_ref[layer, _BO:_BO + 1, 0:D]
    b1 = vec_ref[layer, _B1:_B1 + 1, 0:2 * D]
    b2 = vec_ref[layer, _B2:_B2 + 1, 0:D]
    ln1w = vec_ref[layer, _LN1W:_LN1W + 1, 0:D]
    ln1b = vec_ref[layer, _LN1B:_LN1B + 1, 0:D]
    ln2w = vec_ref[layer, _LN2W:_LN2W + 1, 0:D]
    ln2b = vec_ref[layer, _LN2B:_LN2B + 1, 0:D]

    # --- multi-head self-attention -----------------------------------------
    qkv = jnp.dot(x, wqkv, preferred_element_type=jnp.float32) + bqkv
    q = qkv[:, 0:D] * scale
    k = qkv[:, D:2 * D]
    v = qkv[:, 2 * D:3 * D]

    attn = None
    for h in range(n_heads):                               # static, small
        sl = slice(h * Dh, (h + 1) * Dh)
        # q_h @ k_h^T (MXU-native transposed contraction, no explicit K^T)
        s = lax.dot_general(q[:, sl], k[:, sl], (((1,), (1,)), ((), ())),
                            preferred_element_type=jnp.float32)      # (M, M)
        if add_mask is not None:
            s = s + add_mask                               # hoisted additive mask
        s = s - jnp.max(s, axis=-1, keepdims=True)
        p = jnp.exp(s)
        p = p / jnp.sum(p, axis=-1, keepdims=True)         # exact divide
        ctx = jnp.dot(p, v[:, sl], preferred_element_type=jnp.float32)
        # per-head fold of the out-projection (avoids a head concat)
        wo_h = mats_ref[layer, sl, 3 * D:4 * D]            # (Dh, D)
        contrib = jnp.dot(ctx, wo_h, preferred_element_type=jnp.float32)
        attn = contrib if attn is None else attn + contrib
    attn = attn + bo

    # --- residual + norm1, FFN (ReLU), residual + norm2 ---------------------
    x1 = _layernorm(x + attn, ln1w, ln1b)
    hmid = jnp.maximum(jnp.dot(x1, w1, preferred_element_type=jnp.float32) + b1,
                       0.0)
    ff = jnp.dot(hmid, w2, preferred_element_type=jnp.float32) + b2
    return _layernorm(x1 + ff, ln2w, ln2b)


# ----------------------------------------------------------------------------
# Fused forward kernel: one grid step == one batch element, end to end
# ----------------------------------------------------------------------------

def fused_forward_kernel(
        x_ref, mask_ref, smats_ref, sw2_ref, svec_ref,        # auto-DMA'd inputs
        tmats_hbm, tw2_hbm, tvec_hbm, clf_hbm,                # HBM (pl.ANY) inputs
        out_ref,                                               # output block
        tmats_vmem, tw2_vmem, tvec_vmem, clf_vmem, fold_vmem, dma_sems,  # scratch
        *, n_heads, n_layers, seq_len, groups):
    # ---- 1) kick off temporal / classifier weight DMAs; they overlap with the
    #         spatial stage below.  Re-issued every step so the kernel is
    #         correct under megacore partitioning of the batch axis. ----------
    copies = (
        pltpu.make_async_copy(tmats_hbm, tmats_vmem, dma_sems.at[0]),
        pltpu.make_async_copy(tw2_hbm, tw2_vmem, dma_sems.at[1]),
        pltpu.make_async_copy(tvec_hbm, tvec_vmem, dma_sems.at[2]),
        pltpu.make_async_copy(clf_hbm, clf_vmem, dma_sems.at[3]),
    )
    for cp in copies:
        cp.start()

    # ---- 2) spatial transformer: `groups` sequences of length `seq_len` ----
    h = x_ref[...]                                  # (groups*seq_len, d_spatial)
    add_mask = mask_ref[...]                        # block-diag additive mask
    for i in range(n_layers):
        h = _encoder_layer(h, smats_ref, sw2_ref, svec_ref, i, n_heads, add_mask)

    # ---- 3) view (groups, S, Ds) -> (groups, S*Ds): strided sublane gather
    #         from VMEM scratch + lane concat (no one-hot matmuls) -----------
    fold_vmem[...] = h
    pieces = [fold_vmem[pl.ds(j, groups, stride=seq_len), :]
              for j in range(seq_len)]
    h = jnp.concatenate(pieces, axis=-1)            # (groups, d_temporal)

    # ---- 4) temporal weights must be resident from here on -----------------
    for cp in copies:
        cp.wait()

    # ---- 5) temporal transformer: one sequence of length `groups` (no mask) -
    for i in range(n_layers):
        h = _encoder_layer(h, tmats_vmem, tw2_vmem, tvec_vmem, i, n_heads, None)

    # ---- 6) flatten + classifier, split over the group rows so no 768-lane
    #         concat is materialized.  clf slab rows: [weights | bias row] ----
    d_t = h.shape[-1]
    logits = clf_vmem[groups * d_t:groups * d_t + 1, :]        # bias, (1, c_pad)
    for j in range(groups):
        logits = logits + jnp.dot(h[j:j + 1, :],
                                  clf_vmem[j * d_t:(j + 1) * d_t, :],
                                  preferred_element_type=jnp.float32)
    # lane-dense, full-tile store (8 identical rows; wrapper keeps row 0)
    out_ref[...] = jnp.broadcast_to(logits, out_ref.shape)


# ----------------------------------------------------------------------------
# Wrapper
# ----------------------------------------------------------------------------

def model_forward(x, params, *, n_heads, n_layers, num_classes):
    """x: (B, 6, S, D_spatial) float32 -> logits (B, num_classes)."""
    B, G, S, Ds = x.shape
    M = G * S
    x2d = x.reshape(B * M, Ds)                      # free XLA reshape

    smats, sw2, svec = params["spatial"]
    tmats, tw2, tvec = params["temporal"]
    clf = params["clf"]
    c_pad = clf.shape[1]

    # block-diagonal additive attention mask for the spatial stage (host-side,
    # built once; every row has >= S unmasked entries so -1e30 fill is safe)
    seq_id = jnp.arange(M, dtype=jnp.int32) // S
    add_mask = jnp.where(seq_id[:, None] == seq_id[None, :],
                         0.0, -1e30).astype(jnp.float32)

    kernel = functools.partial(fused_forward_kernel, n_heads=n_heads,
                               n_layers=n_layers, seq_len=S, groups=G)

    out = pl.pallas_call(
        kernel,
        grid=(B,),
        in_specs=[
            pl.BlockSpec((M, Ds), lambda b: (b, 0)),           # x (one batch elem)
            pl.BlockSpec((M, M), lambda b: (0, 0)),            # spatial mask
            pl.BlockSpec(smats.shape, lambda b: (0, 0, 0)),    # spatial mats slab
            pl.BlockSpec(sw2.shape, lambda b: (0, 0, 0)),      # spatial w2 slab
            pl.BlockSpec(svec.shape, lambda b: (0, 0, 0)),     # spatial vec slab
            pl.BlockSpec(memory_space=pl.ANY),                 # temporal mats (HBM)
            pl.BlockSpec(memory_space=pl.ANY),                 # temporal w2  (HBM)
            pl.BlockSpec(memory_space=pl.ANY),                 # temporal vec (HBM)
            pl.BlockSpec(memory_space=pl.ANY),                 # classifier   (HBM)
        ],
        out_specs=pl.BlockSpec((8, c_pad), lambda b: (b, 0)),
        out_shape=jax.ShapeDtypeStruct((B * 8, c_pad), jnp.float32),
        scratch_shapes=[
            pltpu.VMEM(tmats.shape, jnp.float32),
            pltpu.VMEM(tw2.shape, jnp.float32),
            pltpu.VMEM(tvec.shape, jnp.float32),
            pltpu.VMEM(clf.shape, jnp.float32),
            pltpu.VMEM((M, Ds), jnp.float32),                  # fold scratch
            pltpu.SemaphoreType.DMA((4,)),
        ],
        compiler_params=pltpu.CompilerParams(
            dimension_semantics=("parallel",),                 # megacore on v7x
            vmem_limit_bytes=8 * 1024 * 1024,
        ),
    )(x2d, add_mask, smats, sw2, svec, tmats, tw2, tvec, clf)

    return out.reshape(B, 8, c_pad)[:, 0, :num_classes]


# ----------------------------------------------------------------------------
# Deterministic parameter initialization + packing
# ----------------------------------------------------------------------------

def init_encoder_layer_params(key, d):
    ks = jax.random.split(key, 4)
    s = 0.05
    f = 2 * d
    return dict(
        wqkv=jax.random.normal(ks[0], (d, 3 * d), jnp.float32) * s,
        bqkv=jnp.zeros((3 * d,), jnp.float32),
        wo=jax.random.normal(ks[1], (d, d), jnp.float32) * s,
        bo=jnp.zeros((d,), jnp.float32),
        w1=jax.random.normal(ks[2], (d, f), jnp.float32) * s,
        b1=jnp.zeros((f,), jnp.float32),
        w2=jax.random.normal(ks[3], (f, d), jnp.float32) * s,
        b2=jnp.zeros((d,), jnp.float32),
        ln1w=jnp.ones((d,), jnp.float32),
        ln1b=jnp.zeros((d,), jnp.float32),
        ln2w=jnp.ones((d,), jnp.float32),
        ln2b=jnp.zeros((d,), jnp.float32),
    )


def _pack_stage(layer_params):
    """Pack one stage's layers into (L,D,6D), (L,2D,D), (L,8,3D) slabs."""
    mats, w2s, vecs = [], [], []
    for lp in layer_params:
        d = lp["wqkv"].shape[0]
        mats.append(jnp.concatenate([lp["wqkv"], lp["wo"], lp["w1"]], axis=1))
        w2s.append(lp["w2"])
        vec = jnp.zeros((8, 3 * d), jnp.float32)
        vec = vec.at[_BQKV, :3 * d].set(lp["bqkv"])
        vec = vec.at[_BO, :d].set(lp["bo"])
        vec = vec.at[_B1, :2 * d].set(lp["b1"])
        vec = vec.at[_B2, :d].set(lp["b2"])
        vec = vec.at[_LN1W, :d].set(lp["ln1w"])
        vec = vec.at[_LN1B, :d].set(lp["ln1b"])
        vec = vec.at[_LN2W, :d].set(lp["ln2w"])
        vec = vec.at[_LN2B, :d].set(lp["ln2b"])
        vecs.append(vec)
    return jnp.stack(mats), jnp.stack(w2s), jnp.stack(vecs)


def init_params(key, d_spatial, d_temporal, n_layers, num_classes, groups=6):
    keys = jax.random.split(key, 2 * n_layers + 1)
    spatial = [init_encoder_layer_params(keys[i], d_spatial)
               for i in range(n_layers)]
    temporal = [init_encoder_layer_params(keys[n_layers + i], d_temporal)
                for i in range(n_layers)]
    # classifier slab: rows [0, groups*d_temporal) = weight, next row = bias,
    # padded to a sublane multiple; columns lane-padded to a multiple of 128.
    d_in = d_temporal * groups
    c_pad = max(128, ((num_classes + 127) // 128) * 128)
    rows = ((d_in + 1 + 7) // 8) * 8
    w = jax.random.normal(keys[-1], (d_in, num_classes), jnp.float32) * 0.05
    clf = jnp.zeros((rows, c_pad), jnp.float32)
    clf = clf.at[:d_in, :num_classes].set(w)        # bias row stays zero
    return dict(spatial=_pack_stage(spatial),
                temporal=_pack_stage(temporal),
                clf=clf)


# ----------------------------------------------------------------------------
# Main
# ----------------------------------------------------------------------------

if __name__ == "__main__":
    B = 2            # batch
    GROUPS = 6       # fixed "6" in the module's view
    S = 8            # spatial sequence length
    D_SPATIAL = 16   # input_dim_spatial
    D_TEMPORAL = S * D_SPATIAL   # 128 == input_dim_temporal (required by view)
    N_HEADS = 2
    N_LAYERS = 2
    NUM_CLASSES = 5

    key = jax.random.PRNGKey(0)
    k_x, k_p = jax.random.split(key)

    x = jax.random.normal(k_x, (B, GROUPS, S, D_SPATIAL), jnp.float32)
    params = init_params(k_p, D_SPATIAL, D_TEMPORAL, N_LAYERS, NUM_CLASSES, GROUPS)

    fwd = jax.jit(functools.partial(model_forward, n_heads=N_HEADS,
                                    n_layers=N_LAYERS, num_classes=NUM_CLASSES))
    logits = fwd(x, params)
    jax.block_until_ready(logits)
    assert logits.shape == (B, NUM_CLASSES)
    assert bool(jnp.all(jnp.isfinite(logits)))
    print("KERNEL_OK")
</pallas_src>

<mosaic_0001>
module attributes {stable_mosaic.version = 11 : i64} {
  func.func @fused_forward_kernel(%arg0: i32, %arg1: memref<48x16xf32, #tpu.memory_space<vmem>>, %arg2: memref<48x48xf32, #tpu.memory_space<vmem>>, %arg3: memref<2x16x96xf32, #tpu.memory_space<vmem>>, %arg4: memref<2x32x16xf32, #tpu.memory_space<vmem>>, %arg5: memref<2x8x48xf32, #tpu.memory_space<vmem>>, %arg6: memref<2x128x768xf32, #tpu.memory_space<any>>, %arg7: memref<2x256x128xf32, #tpu.memory_space<any>>, %arg8: memref<2x8x384xf32, #tpu.memory_space<any>>, %arg9: memref<776x128xf32, #tpu.memory_space<any>>, %arg10: memref<8x128xf32, #tpu.memory_space<vmem>>, %arg11: memref<2x128x768xf32, #tpu.memory_space<vmem>>, %arg12: memref<2x256x128xf32, #tpu.memory_space<vmem>>, %arg13: memref<2x8x384xf32, #tpu.memory_space<vmem>>, %arg14: memref<776x128xf32, #tpu.memory_space<vmem>>, %arg15: memref<48x16xf32, #tpu.memory_space<vmem>>, %arg16: memref<4x!tpu.dma_semaphore, #tpu.memory_space<semaphore_mem>>) attributes {dimension_semantics = [#tpu.dimension_semantics<parallel>], iteration_bounds = array<i64: 2>, scalar_prefetch = 0 : i64, scratch_operands = 6 : i64, tpu.core_type = #tpu.core_type<tc>, window_params = [{transform_indices = @transform_0, window_bounds = array<i64: 48, 16>}, {pipeline_mode = #tpu.pipeline_mode<synchronous>, transform_indices = @transform_1, window_bounds = array<i64: 48, 48>}, {pipeline_mode = #tpu.pipeline_mode<synchronous>, transform_indices = @transform_2, window_bounds = array<i64: 2, 16, 96>}, {pipeline_mode = #tpu.pipeline_mode<synchronous>, transform_indices = @transform_3, window_bounds = array<i64: 2, 32, 16>}, {pipeline_mode = #tpu.pipeline_mode<synchronous>, transform_indices = @transform_4, window_bounds = array<i64: 2, 8, 48>}, {}, {}, {}, {}, {transform_indices = @transform_9, window_bounds = array<i64: 8, 128>}]} {
    %c0_i32 = arith.constant 0 : i32
    %0 = tpu.memref_slice %arg16[%c0_i32] : memref<4x!tpu.dma_semaphore, #tpu.memory_space<semaphore_mem>> -> memref<1x!tpu.dma_semaphore, #tpu.memory_space<semaphore_mem>>
    %1 = tpu.memref_squeeze %0 : memref<1x!tpu.dma_semaphore, #tpu.memory_space<semaphore_mem>> -> memref<!tpu.dma_semaphore, #tpu.memory_space<semaphore_mem>>
    tpu.enqueue_dma source(%arg6 : memref<2x128x768xf32, #tpu.memory_space<any>>) target(%arg11 : memref<2x128x768xf32, #tpu.memory_space<vmem>>) target_semaphore(%1 : memref<!tpu.dma_semaphore, #tpu.memory_space<semaphore_mem>>)
    %c1_i32 = arith.constant 1 : i32
    %2 = tpu.memref_slice %arg16[%c1_i32] : memref<4x!tpu.dma_semaphore, #tpu.memory_space<semaphore_mem>> -> memref<1x!tpu.dma_semaphore, #tpu.memory_space<semaphore_mem>>
    %3 = tpu.memref_squeeze %2 : memref<1x!tpu.dma_semaphore, #tpu.memory_space<semaphore_mem>> -> memref<!tpu.dma_semaphore, #tpu.memory_space<semaphore_mem>>
    tpu.enqueue_dma source(%arg7 : memref<2x256x128xf32, #tpu.memory_space<any>>) target(%arg12 : memref<2x256x128xf32, #tpu.memory_space<vmem>>) target_semaphore(%3 : memref<!tpu.dma_semaphore, #tpu.memory_space<semaphore_mem>>)
    %c2_i32 = arith.constant 2 : i32
    %4 = tpu.memref_slice %arg16[%c2_i32] : memref<4x!tpu.dma_semaphore, #tpu.memory_space<semaphore_mem>> -> memref<1x!tpu.dma_semaphore, #tpu.memory_space<semaphore_mem>>
    %5 = tpu.memref_squeeze %4 : memref<1x!tpu.dma_semaphore, #tpu.memory_space<semaphore_mem>> -> memref<!tpu.dma_semaphore, #tpu.memory_space<semaphore_mem>>
    tpu.enqueue_dma source(%arg8 : memref<2x8x384xf32, #tpu.memory_space<any>>) target(%arg13 : memref<2x8x384xf32, #tpu.memory_space<vmem>>) target_semaphore(%5 : memref<!tpu.dma_semaphore, #tpu.memory_space<semaphore_mem>>)
    %c3_i32 = arith.constant 3 : i32
    %6 = tpu.memref_slice %arg16[%c3_i32] : memref<4x!tpu.dma_semaphore, #tpu.memory_space<semaphore_mem>> -> memref<1x!tpu.dma_semaphore, #tpu.memory_space<semaphore_mem>>
    %7 = tpu.memref_squeeze %6 : memref<1x!tpu.dma_semaphore, #tpu.memory_space<semaphore_mem>> -> memref<!tpu.dma_semaphore, #tpu.memory_space<semaphore_mem>>
    tpu.enqueue_dma source(%arg9 : memref<776x128xf32, #tpu.memory_space<any>>) target(%arg14 : memref<776x128xf32, #tpu.memory_space<vmem>>) target_semaphore(%7 : memref<!tpu.dma_semaphore, #tpu.memory_space<semaphore_mem>>)
    %c0 = arith.constant 0 : index
    %c0_0 = arith.constant 0 : index
    %8 = vector.load %arg1[%c0, %c0_0] : memref<48x16xf32, #tpu.memory_space<vmem>>, vector<48x16xf32>
    %c0_1 = arith.constant 0 : index
    %c0_2 = arith.constant 0 : index
    %9 = vector.load %arg2[%c0_1, %c0_2] : memref<48x48xf32, #tpu.memory_space<vmem>>, vector<48x48xf32>
    %c0_3 = arith.constant 0 : index
    %c0_4 = arith.constant 0 : index
    %c0_5 = arith.constant 0 : index
    %10 = vector.load %arg3[%c0_3, %c0_4, %c0_5] : memref<2x16x96xf32, #tpu.memory_space<vmem>>, vector<1x16x48xf32>
    %11 = vector.shape_cast %10 : vector<1x16x48xf32> to vector<16x48xf32>
    %c0_6 = arith.constant 0 : index
    %c0_7 = arith.constant 0 : index
    %c64 = arith.constant 64 : index
    %12 = vector.load %arg3[%c0_6, %c0_7, %c64] : memref<2x16x96xf32, #tpu.memory_space<vmem>>, vector<1x16x32xf32>
    %13 = vector.shape_cast %12 : vector<1x16x32xf32> to vector<16x32xf32>
    %c0_8 = arith.constant 0 : index
    %c0_9 = arith.constant 0 : index
    %c0_10 = arith.constant 0 : index
    %14 = vector.load %arg4[%c0_8, %c0_9, %c0_10] : memref<2x32x16xf32, #tpu.memory_space<vmem>>, vector<1x32x16xf32>
    %15 = vector.shape_cast %14 : vector<1x32x16xf32> to vector<32x16xf32>
    %c0_11 = arith.constant 0 : index
    %c0_12 = arith.constant 0 : index
    %c0_13 = arith.constant 0 : index
    %16 = vector.load %arg5[%c0_11, %c0_12, %c0_13] : memref<2x8x48xf32, #tpu.memory_space<vmem>>, vector<1x1x48xf32>
    %17 = vector.shape_cast %16 : vector<1x1x48xf32> to vector<1x48xf32>
    %c0_14 = arith.constant 0 : index
    %c1 = arith.constant 1 : index
    %c0_15 = arith.constant 0 : index
    %18 = vector.load %arg5[%c0_14, %c1, %c0_15] : memref<2x8x48xf32, #tpu.memory_space<vmem>>, vector<1x1x16xf32>
    %19 = vector.shape_cast %18 : vector<1x1x16xf32> to vector<1x16xf32>
    %c0_16 = arith.constant 0 : index
    %c2 = arith.constant 2 : index
    %c0_17 = arith.constant 0 : index
    %20 = vector.load %arg5[%c0_16, %c2, %c0_17] : memref<2x8x48xf32, #tpu.memory_space<vmem>>, vector<1x1x32xf32>
    %21 = vector.shape_cast %20 : vector<1x1x32xf32> to vector<1x32xf32>
    %c0_18 = arith.constant 0 : index
    %c3 = arith.constant 3 : index
    %c0_19 = arith.constant 0 : index
    %22 = vector.load %arg5[%c0_18, %c3, %c0_19] : memref<2x8x48xf32, #tpu.memory_space<vmem>>, vector<1x1x16xf32>
    %23 = vector.shape_cast %22 : vector<1x1x16xf32> to vector<1x16xf32>
    %c0_20 = arith.constant 0 : index
    %c4 = arith.constant 4 : index
    %c0_21 = arith.constant 0 : index
    %24 = vector.load %arg5[%c0_20, %c4, %c0_21] : memref<2x8x48xf32, #tpu.memory_space<vmem>>, vector<1x1x16xf32>
    %25 = vector.shape_cast %24 : vector<1x1x16xf32> to vector<1x16xf32>
    %c0_22 = arith.constant 0 : index
    %c5 = arith.constant 5 : index
    %c0_23 = arith.constant 0 : index
    %26 = vector.load %arg5[%c0_22, %c5, %c0_23] : memref<2x8x48xf32, #tpu.memory_space<vmem>>, vector<1x1x16xf32>
    %27 = vector.shape_cast %26 : vector<1x1x16xf32> to vector<1x16xf32>
    %c0_24 = arith.constant 0 : index
    %c6 = arith.constant 6 : index
    %c0_25 = arith.constant 0 : index
    %28 = vector.load %arg5[%c0_24, %c6, %c0_25] : memref<2x8x48xf32, #tpu.memory_space<vmem>>, vector<1x1x16xf32>
    %29 = vector.shape_cast %28 : vector<1x1x16xf32> to vector<1x16xf32>
    %c0_26 = arith.constant 0 : index
    %c7 = arith.constant 7 : index
    %c0_27 = arith.constant 0 : index
    %30 = vector.load %arg5[%c0_26, %c7, %c0_27] : memref<2x8x48xf32, #tpu.memory_space<vmem>>, vector<1x1x16xf32>
    %31 = vector.shape_cast %30 : vector<1x1x16xf32> to vector<1x16xf32>
    %cst = arith.constant dense<0.000000e+00> : vector<48x48xf32>
    %32 = tpu.matmul %8, %11, %cst {dimension_numbers = #tpu.dot_dimension_numbers<[1], [0], [0], [1], [0, 0, 1, 1], [], []>} : vector<48x16xf32>, vector<16x48xf32>, vector<48x48xf32> -> vector<48x48xf32>
    %33 = vector.broadcast %17 : vector<1x48xf32> to vector<48x48xf32>
    %34 = arith.addf %32, %33 : vector<48x48xf32>
    %35 = vector.extract_strided_slice %34 {offsets = [0, 0], sizes = [48, 16], strides = [1, 1]} : vector<48x48xf32> to vector<48x16xf32>
    %cst_28 = arith.constant 0.353553385 : f32
    %36 = vector.broadcast %cst_28 : f32 to vector<48x16xf32>
    %37 = arith.mulf %35, %36 : vector<48x16xf32>
    %38 = vector.extract_strided_slice %34 {offsets = [0, 16], sizes = [48, 16], strides = [1, 1]} : vector<48x48xf32> to vector<48x16xf32>
    %39 = vector.extract_strided_slice %34 {offsets = [0, 32], sizes = [48, 16], strides = [1, 1]} : vector<48x48xf32> to vector<48x16xf32>
    %40 = vector.extract_strided_slice %37 {offsets = [0, 0], sizes = [48, 8], strides = [1, 1]} : vector<48x16xf32> to vector<48x8xf32>
    %41 = vector.extract_strided_slice %38 {offsets = [0, 0], sizes = [48, 8], strides = [1, 1]} : vector<48x16xf32> to vector<48x8xf32>
    %cst_29 = arith.constant dense<0.000000e+00> : vector<48x48xf32>
    %42 = tpu.matmul %40, %41, %cst_29 {dimension_numbers = #tpu.dot_dimension_numbers<[1], [1], [0], [0], [0, 0, 1, 0], [], []>} : vector<48x8xf32>, vector<48x8xf32>, vector<48x48xf32> -> vector<48x48xf32>
    %43 = arith.addf %42, %9 : vector<48x48xf32>
    %cst_30 = arith.constant dense<0xFF800000> : vector<48xf32>
    %44 = vector.multi_reduction <maximumf>, %43, %cst_30 [1] : vector<48x48xf32> to vector<48xf32>
    %45 = vector.shape_cast %44 : vector<48xf32> to vector<48x1xf32>
    %46 = vector.broadcast %45 : vector<48x1xf32> to vector<48x48xf32>
    %47 = arith.subf %43, %46 : vector<48x48xf32>
    %48 = math.exp %47 : vector<48x48xf32>
    %cst_31 = arith.constant dense<0.000000e+00> : vector<48xf32>
    %49 = vector.multi_reduction <add>, %48, %cst_31 [1] : vector<48x48xf32> to vector<48xf32>
    %50 = vector.shape_cast %49 : vector<48xf32> to vector<48x1xf32>
    %51 = vector.broadcast %50 : vector<48x1xf32> to vector<48x48xf32>
    %52 = arith.divf %48, %51 : vector<48x48xf32>
    %53 = vector.extract_strided_slice %39 {offsets = [0, 0], sizes = [48, 8], strides = [1, 1]} : vector<48x16xf32> to vector<48x8xf32>
    %cst_32 = arith.constant dense<0.000000e+00> : vector<48x8xf32>
    %54 = tpu.matmul %52, %53, %cst_32 {dimension_numbers = #tpu.dot_dimension_numbers<[1], [0], [0], [1], [0, 0, 1, 1], [], []>} : vector<48x48xf32>, vector<48x8xf32>, vector<48x8xf32> -> vector<48x8xf32>
    %c0_33 = arith.constant 0 : index
    %c0_34 = arith.constant 0 : index
    %c48 = arith.constant 48 : index
    %55 = vector.load %arg3[%c0_33, %c0_34, %c48] : memref<2x16x96xf32, #tpu.memory_space<vmem>>, vector<1x8x16xf32>
    %56 = vector.shape_cast %55 : vector<1x8x16xf32> to vector<8x16xf32>
    %cst_35 = arith.constant dense<0.000000e+00> : vector<48x16xf32>
    %57 = tpu.matmul %54, %56, %cst_35 {dimension_numbers = #tpu.dot_dimension_numbers<[1], [0], [0], [1], [0, 0, 1, 1], [], []>} : vector<48x8xf32>, vector<8x16xf32>, vector<48x16xf32> -> vector<48x16xf32>
    %58 = vector.extract_strided_slice %37 {offsets = [0, 8], sizes = [48, 8], strides = [1, 1]} : vector<48x16xf32> to vector<48x8xf32>
    %59 = vector.extract_strided_slice %38 {offsets = [0, 8], sizes = [48, 8], strides = [1, 1]} : vector<48x16xf32> to vector<48x8xf32>
    %cst_36 = arith.constant dense<0.000000e+00> : vector<48x48xf32>
    %60 = tpu.matmul %58, %59, %cst_36 {dimension_numbers = #tpu.dot_dimension_numbers<[1], [1], [0], [0], [0, 0, 1, 0], [], []>} : vector<48x8xf32>, vector<48x8xf32>, vector<48x48xf32> -> vector<48x48xf32>
    %61 = arith.addf %60, %9 : vector<48x48xf32>
    %cst_37 = arith.constant dense<0xFF800000> : vector<48xf32>
    %62 = vector.multi_reduction <maximumf>, %61, %cst_37 [1] : vector<48x48xf32> to vector<48xf32>
    %63 = vector.shape_cast %62 : vector<48xf32> to vector<48x1xf32>
    %64 = vector.broadcast %63 : vector<48x1xf32> to vector<48x48xf32>
    %65 = arith.subf %61, %64 : vector<48x48xf32>
    %66 = math.exp %65 : vector<48x48xf32>
    %cst_38 = arith.constant dense<0.000000e+00> : vector<48xf32>
    %67 = vector.multi_reduction <add>, %66, %cst_38 [1] : vector<48x48xf32> to vector<48xf32>
    %68 = vector.shape_cast %67 : vector<48xf32> to vector<48x1xf32>
    %69 = vector.broadcast %68 : vector<48x1xf32> to vector<48x48xf32>
    %70 = arith.divf %66, %69 : vector<48x48xf32>
    %71 = vector.extract_strided_slice %39 {offsets = [0, 8], sizes = [48, 8], strides = [1, 1]} : vector<48x16xf32> to vector<48x8xf32>
    %cst_39 = arith.constant dense<0.000000e+00> : vector<48x8xf32>
    %72 = tpu.matmul %70, %71, %cst_39 {dimension_numbers = #tpu.dot_dimension_numbers<[1], [0], [0], [1], [0, 0, 1, 1], [], []>} : vector<48x48xf32>, vector<48x8xf32>, vector<48x8xf32> -> vector<48x8xf32>
    %c0_40 = arith.constant 0 : index
    %c8 = arith.constant 8 : index
    %c48_41 = arith.constant 48 : index
    %73 = vector.load %arg3[%c0_40, %c8, %c48_41] : memref<2x16x96xf32, #tpu.memory_space<vmem>>, vector<1x8x16xf32>
    %74 = vector.shape_cast %73 : vector<1x8x16xf32> to vector<8x16xf32>
    %cst_42 = arith.constant dense<0.000000e+00> : vector<48x16xf32>
    %75 = tpu.matmul %72, %74, %cst_42 {dimension_numbers = #tpu.dot_dimension_numbers<[1], [0], [0], [1], [0, 0, 1, 1], [], []>} : vector<48x8xf32>, vector<8x16xf32>, vector<48x16xf32> -> vector<48x16xf32>
    %76 = arith.addf %57, %75 : vector<48x16xf32>
    %77 = vector.broadcast %19 : vector<1x16xf32> to vector<48x16xf32>
    %78 = arith.addf %76, %77 : vector<48x16xf32>
    %79 = arith.addf %8, %78 : vector<48x16xf32>
    %cst_43 = arith.constant dense<0.000000e+00> : vector<48xf32>
    %80 = vector.multi_reduction <add>, %79, %cst_43 [1] : vector<48x16xf32> to vector<48xf32>
    %81 = vector.shape_cast %80 : vector<48xf32> to vector<48x1xf32>
    %cst_44 = arith.constant 1.600000e+01 : f32
    %82 = vector.broadcast %cst_44 : f32 to vector<48x1xf32>
    %83 = arith.divf %81, %82 : vector<48x1xf32>
    %84 = vector.broadcast %83 : vector<48x1xf32> to vector<48x16xf32>
    %85 = arith.subf %79, %84 : vector<48x16xf32>
    %86 = arith.mulf %85, %85 : vector<48x16xf32>
    %cst_45 = arith.constant dense<0.000000e+00> : vector<48xf32>
    %87 = vector.multi_reduction <add>, %86, %cst_45 [1] : vector<48x16xf32> to vector<48xf32>
    %88 = vector.shape_cast %87 : vector<48xf32> to vector<48x1xf32>
    %cst_46 = arith.constant 1.600000e+01 : f32
    %89 = vector.broadcast %cst_46 : f32 to vector<48x1xf32>
    %90 = arith.divf %88, %89 : vector<48x1xf32>
    %91 = vector.broadcast %83 : vector<48x1xf32> to vector<48x16xf32>
    %92 = arith.subf %79, %91 : vector<48x16xf32>
    %cst_47 = arith.constant 9.99999974E-6 : f32
    %93 = vector.broadcast %cst_47 : f32 to vector<48x1xf32>
    %94 = arith.addf %90, %93 : vector<48x1xf32>
    %95 = math.rsqrt %94 : vector<48x1xf32>
    %96 = vector.broadcast %95 : vector<48x1xf32> to vector<48x16xf32>
    %97 = arith.mulf %92, %96 : vector<48x16xf32>
    %98 = vector.broadcast %25 : vector<1x16xf32> to vector<48x16xf32>
    %99 = arith.mulf %97, %98 : vector<48x16xf32>
    %100 = vector.broadcast %27 : vector<1x16xf32> to vector<48x16xf32>
    %101 = arith.addf %99, %100 : vector<48x16xf32>
    %cst_48 = arith.constant dense<0.000000e+00> : vector<48x32xf32>
    %102 = tpu.matmul %101, %13, %cst_48 {dimension_numbers = #tpu.dot_dimension_numbers<[1], [0], [0], [1], [0, 0, 1, 1], [], []>} : vector<48x16xf32>, vector<16x32xf32>, vector<48x32xf32> -> vector<48x32xf32>
    %103 = vector.broadcast %21 : vector<1x32xf32> to vector<48x32xf32>
    %104 = arith.addf %102, %103 : vector<48x32xf32>
    %cst_49 = arith.constant 0.000000e+00 : f32
    %105 = vector.broadcast %cst_49 : f32 to vector<48x32xf32>
    %106 = arith.maximumf %104, %105 : vector<48x32xf32>
    %cst_50 = arith.constant dense<0.000000e+00> : vector<48x16xf32>
    %107 = tpu.matmul %106, %15, %cst_50 {dimension_numbers = #tpu.dot_dimension_numbers<[1], [0], [0], [1], [0, 0, 1, 1], [], []>} : vector<48x32xf32>, vector<32x16xf32>, vector<48x16xf32> -> vector<48x16xf32>
    %108 = vector.broadcast %23 : vector<1x16xf32> to vector<48x16xf32>
    %109 = arith.addf %107, %108 : vector<48x16xf32>
    %110 = arith.addf %101, %109 : vector<48x16xf32>
    %cst_51 = arith.constant dense<0.000000e+00> : vector<48xf32>
    %111 = vector.multi_reduction <add>, %110, %cst_51 [1] : vector<48x16xf32> to vector<48xf32>
    %112 = vector.shape_cast %111 : vector<48xf32> to vector<48x1xf32>
    %cst_52 = arith.constant 1.600000e+01 : f32
    %113 = vector.broadcast %cst_52 : f32 to vector<48x1xf32>
    %114 = arith.divf %112, %113 : vector<48x1xf32>
    %115 = vector.broadcast %114 : vector<48x1xf32> to vector<48x16xf32>
    %116 = arith.subf %110, %115 : vector<48x16xf32>
    %117 = arith.mulf %116, %116 : vector<48x16xf32>
    %cst_53 = arith.constant dense<0.000000e+00> : vector<48xf32>
    %118 = vector.multi_reduction <add>, %117, %cst_53 [1] : vector<48x16xf32> to vector<48xf32>
    %119 = vector.shape_cast %118 : vector<48xf32> to vector<48x1xf32>
    %cst_54 = arith.constant 1.600000e+01 : f32
    %120 = vector.broadcast %cst_54 : f32 to vector<48x1xf32>
    %121 = arith.divf %119, %120 : vector<48x1xf32>
    %122 = vector.broadcast %114 : vector<48x1xf32> to vector<48x16xf32>
    %123 = arith.subf %110, %122 : vector<48x16xf32>
    %cst_55 = arith.constant 9.99999974E-6 : f32
    %124 = vector.broadcast %cst_55 : f32 to vector<48x1xf32>
    %125 = arith.addf %121, %124 : vector<48x1xf32>
    %126 = math.rsqrt %125 : vector<48x1xf32>
    %127 = vector.broadcast %126 : vector<48x1xf32> to vector<48x16xf32>
    %128 = arith.mulf %123, %127 : vector<48x16xf32>
    %129 = vector.broadcast %29 : vector<1x16xf32> to vector<48x16xf32>
    %130 = arith.mulf %128, %129 : vector<48x16xf32>
    %131 = vector.broadcast %31 : vector<1x16xf32> to vector<48x16xf32>
    %132 = arith.addf %130, %131 : vector<48x16xf32>
    %c1_56 = arith.constant 1 : index
    %c0_57 = arith.constant 0 : index
    %c0_58 = arith.constant 0 : index
    %133 = vector.load %arg3[%c1_56, %c0_57, %c0_58] : memref<2x16x96xf32, #tpu.memory_space<vmem>>, vector<1x16x48xf32>
    %134 = vector.shape_cast %133 : vector<1x16x48xf32> to vector<16x48xf32>
    %c1_59 = arith.constant 1 : index
    %c0_60 = arith.constant 0 : index
    %c64_61 = arith.constant 64 : index
    %135 = vector.load %arg3[%c1_59, %c0_60, %c64_61] : memref<2x16x96xf32, #tpu.memory_space<vmem>>, vector<1x16x32xf32>
    %136 = vector.shape_cast %135 : vector<1x16x32xf32> to vector<16x32xf32>
    %c1_62 = arith.constant 1 : index
    %c0_63 = arith.constant 0 : index
    %c0_64 = arith.constant 0 : index
    %137 = vector.load %arg4[%c1_62, %c0_63, %c0_64] : memref<2x32x16xf32, #tpu.memory_space<vmem>>, vector<1x32x16xf32>
    %138 = vector.shape_cast %137 : vector<1x32x16xf32> to vector<32x16xf32>
    %c1_65 = arith.constant 1 : index
    %c0_66 = arith.constant 0 : index
    %c0_67 = arith.constant 0 : index
    %139 = vector.load %arg5[%c1_65, %c0_66, %c0_67] : memref<2x8x48xf32, #tpu.memory_space<vmem>>, vector<1x1x48xf32>
    %140 = vector.shape_cast %139 : vector<1x1x48xf32> to vector<1x48xf32>
    %c1_68 = arith.constant 1 : index
    %c1_69 = arith.constant 1 : index
    %c0_70 = arith.constant 0 : index
    %141 = vector.load %arg5[%c1_68, %c1_69, %c0_70] : memref<2x8x48xf32, #tpu.memory_space<vmem>>, vector<1x1x16xf32>
    %142 = vector.shape_cast %141 : vector<1x1x16xf32> to vector<1x16xf32>
    %c1_71 = arith.constant 1 : index
    %c2_72 = arith.constant 2 : index
    %c0_73 = arith.constant 0 : index
    %143 = vector.load %arg5[%c1_71, %c2_72, %c0_73] : memref<2x8x48xf32, #tpu.memory_space<vmem>>, vector<1x1x32xf32>
    %144 = vector.shape_cast %143 : vector<1x1x32xf32> to vector<1x32xf32>
    %c1_74 = arith.constant 1 : index
    %c3_75 = arith.constant 3 : index
    %c0_76 = arith.constant 0 : index
    %145 = vector.load %arg5[%c1_74, %c3_75, %c0_76] : memref<2x8x48xf32, #tpu.memory_space<vmem>>, vector<1x1x16xf32>
    %146 = vector.shape_cast %145 : vector<1x1x16xf32> to vector<1x16xf32>
    %c1_77 = arith.constant 1 : index
    %c4_78 = arith.constant 4 : index
    %c0_79 = arith.constant 0 : index
    %147 = vector.load %arg5[%c1_77, %c4_78, %c0_79] : memref<2x8x48xf32, #tpu.memory_space<vmem>>, vector<1x1x16xf32>
    %148 = vector.shape_cast %147 : vector<1x1x16xf32> to vector<1x16xf32>
    %c1_80 = arith.constant 1 : index
    %c5_81 = arith.constant 5 : index
    %c0_82 = arith.constant 0 : index
    %149 = vector.load %arg5[%c1_80, %c5_81, %c0_82] : memref<2x8x48xf32, #tpu.memory_space<vmem>>, vector<1x1x16xf32>
    %150 = vector.shape_cast %149 : vector<1x1x16xf32> to vector<1x16xf32>
    %c1_83 = arith.constant 1 : index
    %c6_84 = arith.constant 6 : index
    %c0_85 = arith.constant 0 : index
    %151 = vector.load %arg5[%c1_83, %c6_84, %c0_85] : memref<2x8x48xf32, #tpu.memory_space<vmem>>, vector<1x1x16xf32>
    %152 = vector.shape_cast %151 : vector<1x1x16xf32> to vector<1x16xf32>
    %c1_86 = arith.constant 1 : index
    %c7_87 = arith.constant 7 : index
    %c0_88 = arith.constant 0 : index
    %153 = vector.load %arg5[%c1_86, %c7_87, %c0_88] : memref<2x8x48xf32, #tpu.memory_space<vmem>>, vector<1x1x16xf32>
    %154 = vector.shape_cast %153 : vector<1x1x16xf32> to vector<1x16xf32>
    %cst_89 = arith.constant dense<0.000000e+00> : vector<48x48xf32>
    %155 = tpu.matmul %132, %134, %cst_89 {dimension_numbers = #tpu.dot_dimension_numbers<[1], [0], [0], [1], [0, 0, 1, 1], [], []>} : vector<48x16xf32>, vector<16x48xf32>, vector<48x48xf32> -> vector<48x48xf32>
    %156 = vector.broadcast %140 : vector<1x48xf32> to vector<48x48xf32>
    %157 = arith.addf %155, %156 : vector<48x48xf32>
    %158 = vector.extract_strided_slice %157 {offsets = [0, 0], sizes = [48, 16], strides = [1, 1]} : vector<48x48xf32> to vector<48x16xf32>
    %cst_90 = arith.constant 0.353553385 : f32
    %159 = vector.broadcast %cst_90 : f32 to vector<48x16xf32>
    %160 = arith.mulf %158, %159 : vector<48x16xf32>
    %161 = vector.extract_strided_slice %157 {offsets = [0, 16], sizes = [48, 16], strides = [1, 1]} : vector<48x48xf32> to vector<48x16xf32>
    %162 = vector.extract_strided_slice %157 {offsets = [0, 32], sizes = [48, 16], strides = [1, 1]} : vector<48x48xf32> to vector<48x16xf32>
    %163 = vector.extract_strided_slice %160 {offsets = [0, 0], sizes = [48, 8], strides = [1, 1]} : vector<48x16xf32> to vector<48x8xf32>
    %164 = vector.extract_strided_slice %161 {offsets = [0, 0], sizes = [48, 8], strides = [1, 1]} : vector<48x16xf32> to vector<48x8xf32>
    %cst_91 = arith.constant dense<0.000000e+00> : vector<48x48xf32>
    %165 = tpu.matmul %163, %164, %cst_91 {dimension_numbers = #tpu.dot_dimension_numbers<[1], [1], [0], [0], [0, 0, 1, 0], [], []>} : vector<48x8xf32>, vector<48x8xf32>, vector<48x48xf32> -> vector<48x48xf32>
    %166 = arith.addf %165, %9 : vector<48x48xf32>
    %cst_92 = arith.constant dense<0xFF800000> : vector<48xf32>
    %167 = vector.multi_reduction <maximumf>, %166, %cst_92 [1] : vector<48x48xf32> to vector<48xf32>
    %168 = vector.shape_cast %167 : vector<48xf32> to vector<48x1xf32>
    %169 = vector.broadcast %168 : vector<48x1xf32> to vector<48x48xf32>
    %170 = arith.subf %166, %169 : vector<48x48xf32>
    %171 = math.exp %170 : vector<48x48xf32>
    %cst_93 = arith.constant dense<0.000000e+00> : vector<48xf32>
    %172 = vector.multi_reduction <add>, %171, %cst_93 [1] : vector<48x48xf32> to vector<48xf32>
    %173 = vector.shape_cast %172 : vector<48xf32> to vector<48x1xf32>
    %174 = vector.broadcast %173 : vector<48x1xf32> to vector<48x48xf32>
    %175 = arith.divf %171, %174 : vector<48x48xf32>
    %176 = vector.extract_strided_slice %162 {offsets = [0, 0], sizes = [48, 8], strides = [1, 1]} : vector<48x16xf32> to vector<48x8xf32>
    %cst_94 = arith.constant dense<0.000000e+00> : vector<48x8xf32>
    %177 = tpu.matmul %175, %176, %cst_94 {dimension_numbers = #tpu.dot_dimension_numbers<[1], [0], [0], [1], [0, 0, 1, 1], [], []>} : vector<48x48xf32>, vector<48x8xf32>, vector<48x8xf32> -> vector<48x8xf32>
    %c1_95 = arith.constant 1 : index
    %c0_96 = arith.constant 0 : index
    %c48_97 = arith.constant 48 : index
    %178 = vector.load %arg3[%c1_95, %c0_96, %c48_97] : memref<2x16x96xf32, #tpu.memory_space<vmem>>, vector<1x8x16xf32>
    %179 = vector.shape_cast %178 : vector<1x8x16xf32> to vector<8x16xf32>
    %cst_98 = arith.constant dense<0.000000e+00> : vector<48x16xf32>
    %180 = tpu.matmul %177, %179, %cst_98 {dimension_numbers = #tpu.dot_dimension_numbers<[1], [0], [0], [1], [0, 0, 1, 1], [], []>} : vector<48x8xf32>, vector<8x16xf32>, vector<48x16xf32> -> vector<48x16xf32>
    %181 = vector.extract_strided_slice %160 {offsets = [0, 8], sizes = [48, 8], strides = [1, 1]} : vector<48x16xf32> to vector<48x8xf32>
    %182 = vector.extract_strided_slice %161 {offsets = [0, 8], sizes = [48, 8], strides = [1, 1]} : vector<48x16xf32> to vector<48x8xf32>
    %cst_99 = arith.constant dense<0.000000e+00> : vector<48x48xf32>
    %183 = tpu.matmul %181, %182, %cst_99 {dimension_numbers = #tpu.dot_dimension_numbers<[1], [1], [0], [0], [0, 0, 1, 0], [], []>} : vector<48x8xf32>, vector<48x8xf32>, vector<48x48xf32> -> vector<48x48xf32>
    %184 = arith.addf %183, %9 : vector<48x48xf32>
    %cst_100 = arith.constant dense<0xFF800000> : vector<48xf32>
    %185 = vector.multi_reduction <maximumf>, %184, %cst_100 [1] : vector<48x48xf32> to vector<48xf32>
    %186 = vector.shape_cast %185 : vector<48xf32> to vector<48x1xf32>
    %187 = vector.broadcast %186 : vector<48x1xf32> to vector<48x48xf32>
    %188 = arith.subf %184, %187 : vector<48x48xf32>
    %189 = math.exp %188 : vector<48x48xf32>
    %cst_101 = arith.constant dense<0.000000e+00> : vector<48xf32>
    %190 = vector.multi_reduction <add>, %189, %cst_101 [1] : vector<48x48xf32> to vector<48xf32>
    %191 = vector.shape_cast %190 : vector<48xf32> to vector<48x1xf32>
    %192 = vector.broadcast %191 : vector<48x1xf32> to vector<48x48xf32>
    %193 = arith.divf %189, %192 : vector<48x48xf32>
    %194 = vector.extract_strided_slice %162 {offsets = [0, 8], sizes = [48, 8], strides = [1, 1]} : vector<48x16xf32> to vector<48x8xf32>
    %cst_102 = arith.constant dense<0.000000e+00> : vector<48x8xf32>
    %195 = tpu.matmul %193, %194, %cst_102 {dimension_numbers = #tpu.dot_dimension_numbers<[1], [0], [0], [1], [0, 0, 1, 1], [], []>} : vector<48x48xf32>, vector<48x8xf32>, vector<48x8xf32> -> vector<48x8xf32>
    %c1_103 = arith.constant 1 : index
    %c8_104 = arith.constant 8 : index
    %c48_105 = arith.constant 48 : index
    %196 = vector.load %arg3[%c1_103, %c8_104, %c48_105] : memref<2x16x96xf32, #tpu.memory_space<vmem>>, vector<1x8x16xf32>
    %197 = vector.shape_cast %196 : vector<1x8x16xf32> to vector<8x16xf32>
    %cst_106 = arith.constant dense<0.000000e+00> : vector<48x16xf32>
    %198 = tpu.matmul %195, %197, %cst_106 {dimension_numbers = #tpu.dot_dimension_numbers<[1], [0], [0], [1], [0, 0, 1, 1], [], []>} : vector<48x8xf32>, vector<8x16xf32>, vector<48x16xf32> -> vector<48x16xf32>
    %199 = arith.addf %180, %198 : vector<48x16xf32>
    %200 = vector.broadcast %142 : vector<1x16xf32> to vector<48x16xf32>
    %201 = arith.addf %199, %200 : vector<48x16xf32>
    %202 = arith.addf %132, %201 : vector<48x16xf32>
    %cst_107 = arith.constant dense<0.000000e+00> : vector<48xf32>
    %203 = vector.multi_reduction <add>, %202, %cst_107 [1] : vector<48x16xf32> to vector<48xf32>
    %204 = vector.shape_cast %203 : vector<48xf32> to vector<48x1xf32>
    %cst_108 = arith.constant 1.600000e+01 : f32
    %205 = vector.broadcast %cst_108 : f32 to vector<48x1xf32>
    %206 = arith.divf %204, %205 : vector<48x1xf32>
    %207 = vector.broadcast %206 : vector<48x1xf32> to vector<48x16xf32>
    %208 = arith.subf %202, %207 : vector<48x16xf32>
    %209 = arith.mulf %208, %208 : vector<48x16xf32>
    %cst_109 = arith.constant dense<0.000000e+00> : vector<48xf32>
    %210 = vector.multi_reduction <add>, %209, %cst_109 [1] : vector<48x16xf32> to vector<48xf32>
    %211 = vector.shape_cast %210 : vector<48xf32> to vector<48x1xf32>
    %cst_110 = arith.constant 1.600000e+01 : f32
    %212 = vector.broadcast %cst_110 : f32 to vector<48x1xf32>
    %213 = arith.divf %211, %212 : vector<48x1xf32>
    %214 = vector.broadcast %206 : vector<48x1xf32> to vector<48x16xf32>
    %215 = arith.subf %202, %214 : vector<48x16xf32>
    %cst_111 = arith.constant 9.99999974E-6 : f32
    %216 = vector.broadcast %cst_111 : f32 to vector<48x1xf32>
    %217 = arith.addf %213, %216 : vector<48x1xf32>
    %218 = math.rsqrt %217 : vector<48x1xf32>
    %219 = vector.broadcast %218 : vector<48x1xf32> to vector<48x16xf32>
    %220 = arith.mulf %215, %219 : vector<48x16xf32>
    %221 = vector.broadcast %148 : vector<1x16xf32> to vector<48x16xf32>
    %222 = arith.mulf %220, %221 : vector<48x16xf32>
    %223 = vector.broadcast %150 : vector<1x16xf32> to vector<48x16xf32>
    %224 = arith.addf %222, %223 : vector<48x16xf32>
    %cst_112 = arith.constant dense<0.000000e+00> : vector<48x32xf32>
    %225 = tpu.matmul %224, %136, %cst_112 {dimension_numbers = #tpu.dot_dimension_numbers<[1], [0], [0], [1], [0, 0, 1, 1], [], []>} : vector<48x16xf32>, vector<16x32xf32>, vector<48x32xf32> -> vector<48x32xf32>
    %226 = vector.broadcast %144 : vector<1x32xf32> to vector<48x32xf32>
    %227 = arith.addf %225, %226 : vector<48x32xf32>
    %cst_113 = arith.constant 0.000000e+00 : f32
    %228 = vector.broadcast %cst_113 : f32 to vector<48x32xf32>
    %229 = arith.maximumf %227, %228 : vector<48x32xf32>
    %cst_114 = arith.constant dense<0.000000e+00> : vector<48x16xf32>
    %230 = tpu.matmul %229, %138, %cst_114 {dimension_numbers = #tpu.dot_dimension_numbers<[1], [0], [0], [1], [0, 0, 1, 1], [], []>} : vector<48x32xf32>, vector<32x16xf32>, vector<48x16xf32> -> vector<48x16xf32>
    %231 = vector.broadcast %146 : vector<1x16xf32> to vector<48x16xf32>
    %232 = arith.addf %230, %231 : vector<48x16xf32>
    %233 = arith.addf %224, %232 : vector<48x16xf32>
    %cst_115 = arith.constant dense<0.000000e+00> : vector<48xf32>
    %234 = vector.multi_reduction <add>, %233, %cst_115 [1] : vector<48x16xf32> to vector<48xf32>
    %235 = vector.shape_cast %234 : vector<48xf32> to vector<48x1xf32>
    %cst_116 = arith.constant 1.600000e+01 : f32
    %236 = vector.broadcast %cst_116 : f32 to vector<48x1xf32>
    %237 = arith.divf %235, %236 : vector<48x1xf32>
    %238 = vector.broadcast %237 : vector<48x1xf32> to vector<48x16xf32>
    %239 = arith.subf %233, %238 : vector<48x16xf32>
    %240 = arith.mulf %239, %239 : vector<48x16xf32>
    %cst_117 = arith.constant dense<0.000000e+00> : vector<48xf32>
    %241 = vector.multi_reduction <add>, %240, %cst_117 [1] : vector<48x16xf32> to vector<48xf32>
    %242 = vector.shape_cast %241 : vector<48xf32> to vector<48x1xf32>
    %cst_118 = arith.constant 1.600000e+01 : f32
    %243 = vector.broadcast %cst_118 : f32 to vector<48x1xf32>
    %244 = arith.divf %242, %243 : vector<48x1xf32>
    %245 = vector.broadcast %237 : vector<48x1xf32> to vector<48x16xf32>
    %246 = arith.subf %233, %245 : vector<48x16xf32>
    %cst_119 = arith.constant 9.99999974E-6 : f32
    %247 = vector.broadcast %cst_119 : f32 to vector<48x1xf32>
    %248 = arith.addf %244, %247 : vector<48x1xf32>
    %249 = math.rsqrt %248 : vector<48x1xf32>
    %250 = vector.broadcast %249 : vector<48x1xf32> to vector<48x16xf32>
    %251 = arith.mulf %246, %250 : vector<48x16xf32>
    %252 = vector.broadcast %152 : vector<1x16xf32> to vector<48x16xf32>
    %253 = arith.mulf %251, %252 : vector<48x16xf32>
    %254 = vector.broadcast %154 : vector<1x16xf32> to vector<48x16xf32>
    %255 = arith.addf %253, %254 : vector<48x16xf32>
    %c0_120 = arith.constant 0 : index
    %c0_121 = arith.constant 0 : index
    %256 = vector.load %arg15[%c0_120, %c0_121] : memref<48x16xf32, #tpu.memory_space<vmem>>, vector<48x16xf32>
    tpu.vector_store %arg15[%c0_120, %c0_121], %255 {strides = array<i32>} : memref<48x16xf32, #tpu.memory_space<vmem>>, vector<48x16xf32>,
    %c0_122 = arith.constant 0 : index
    %c0_123 = arith.constant 0 : index
    %257 = tpu.strided_load %arg15[%c0_122, %c0_123] {strides = array<i32: 8, 1>} : memref<48x16xf32, #tpu.memory_space<vmem>>, vector<6x16xf32>
    %c1_124 = arith.constant 1 : index
    %c0_125 = arith.constant 0 : index
    %258 = tpu.strided_load %arg15[%c1_124, %c0_125] {strides = array<i32: 8, 1>} : memref<48x16xf32, #tpu.memory_space<vmem>>, vector<6x16xf32>
    %c2_126 = arith.constant 2 : index
    %c0_127 = arith.constant 0 : index
    %259 = tpu.strided_load %arg15[%c2_126, %c0_127] {strides = array<i32: 8, 1>} : memref<48x16xf32, #tpu.memory_space<vmem>>, vector<6x16xf32>
    %c3_128 = arith.constant 3 : index
    %c0_129 = arith.constant 0 : index
    %260 = tpu.strided_load %arg15[%c3_128, %c0_129] {strides = array<i32: 8, 1>} : memref<48x16xf32, #tpu.memory_space<vmem>>, vector<6x16xf32>
    %c4_130 = arith.constant 4 : index
    %c0_131 = arith.constant 0 : index
    %261 = tpu.strided_load %arg15[%c4_130, %c0_131] {strides = array<i32: 8, 1>} : memref<48x16xf32, #tpu.memory_space<vmem>>, vector<6x16xf32>
    %c5_132 = arith.constant 5 : index
    %c0_133 = arith.constant 0 : index
    %262 = tpu.strided_load %arg15[%c5_132, %c0_133] {strides = array<i32: 8, 1>} : memref<48x16xf32, #tpu.memory_space<vmem>>, vector<6x16xf32>
    %c6_134 = arith.constant 6 : index
    %c0_135 = arith.constant 0 : index
    %263 = tpu.strided_load %arg15[%c6_134, %c0_135] {strides = array<i32: 8, 1>} : memref<48x16xf32, #tpu.memory_space<vmem>>, vector<6x16xf32>
    %c7_136 = arith.constant 7 : index
    %c0_137 = arith.constant 0 : index
    %264 = tpu.strided_load %arg15[%c7_136, %c0_137] {strides = array<i32: 8, 1>} : memref<48x16xf32, #tpu.memory_space<vmem>>, vector<6x16xf32>
    %265 = tpu.concatenate %257, %258, %259, %260, %261, %262, %263, %264 in 1 : vector<6x16xf32>, vector<6x16xf32>, vector<6x16xf32>, vector<6x16xf32>, vector<6x16xf32>, vector<6x16xf32>, vector<6x16xf32>, vector<6x16xf32> -> vector<6x128xf32>
    %c0_i32_138 = arith.constant 0 : i32
    %266 = tpu.memref_slice %arg16[%c0_i32_138] : memref<4x!tpu.dma_semaphore, #tpu.memory_space<semaphore_mem>> -> memref<1x!tpu.dma_semaphore, #tpu.memory_space<semaphore_mem>>
    %267 = tpu.memref_squeeze %266 : memref<1x!tpu.dma_semaphore, #tpu.memory_space<semaphore_mem>> -> memref<!tpu.dma_semaphore, #tpu.memory_space<semaphore_mem>>
    tpu.wait_dma2 semaphore(%267 : memref<!tpu.dma_semaphore, #tpu.memory_space<semaphore_mem>>) src(%arg6 : memref<2x128x768xf32, #tpu.memory_space<any>>) dst(%arg11 : memref<2x128x768xf32, #tpu.memory_space<vmem>>)
    %c1_i32_139 = arith.constant 1 : i32
    %268 = tpu.memref_slice %arg16[%c1_i32_139] : memref<4x!tpu.dma_semaphore, #tpu.memory_space<semaphore_mem>> -> memref<1x!tpu.dma_semaphore, #tpu.memory_space<semaphore_mem>>
    %269 = tpu.memref_squeeze %268 : memref<1x!tpu.dma_semaphore, #tpu.memory_space<semaphore_mem>> -> memref<!tpu.dma_semaphore, #tpu.memory_space<semaphore_mem>>
    tpu.wait_dma2 semaphore(%269 : memref<!tpu.dma_semaphore, #tpu.memory_space<semaphore_mem>>) src(%arg7 : memref<2x256x128xf32, #tpu.memory_space<any>>) dst(%arg12 : memref<2x256x128xf32, #tpu.memory_space<vmem>>)
    %c2_i32_140 = arith.constant 2 : i32
    %270 = tpu.memref_slice %arg16[%c2_i32_140] : memref<4x!tpu.dma_semaphore, #tpu.memory_space<semaphore_mem>> -> memref<1x!tpu.dma_semaphore, #tpu.memory_space<semaphore_mem>>
    %271 = tpu.memref_squeeze %270 : memref<1x!tpu.dma_semaphore, #tpu.memory_space<semaphore_mem>> -> memref<!tpu.dma_semaphore, #tpu.memory_space<semaphore_mem>>
    tpu.wait_dma2 semaphore(%271 : memref<!tpu.dma_semaphore, #tpu.memory_space<semaphore_mem>>) src(%arg8 : memref<2x8x384xf32, #tpu.memory_space<any>>) dst(%arg13 : memref<2x8x384xf32, #tpu.memory_space<vmem>>)
    %c3_i32_141 = arith.constant 3 : i32
    %272 = tpu.memref_slice %arg16[%c3_i32_141] : memref<4x!tpu.dma_semaphore, #tpu.memory_space<semaphore_mem>> -> memref<1x!tpu.dma_semaphore, #tpu.memory_space<semaphore_mem>>
    %273 = tpu.memref_squeeze %272 : memref<1x!tpu.dma_semaphore, #tpu.memory_space<semaphore_mem>> -> memref<!tpu.dma_semaphore, #tpu.memory_space<semaphore_mem>>
    tpu.wait_dma2 semaphore(%273 : memref<!tpu.dma_semaphore, #tpu.memory_space<semaphore_mem>>) src(%arg9 : memref<776x128xf32, #tpu.memory_space<any>>) dst(%arg14 : memref<776x128xf32, #tpu.memory_space<vmem>>)
    %c0_142 = arith.constant 0 : index
    %c0_143 = arith.constant 0 : index
    %c0_144 = arith.constant 0 : index
    %274 = vector.load %arg11[%c0_142, %c0_143, %c0_144] : memref<2x128x768xf32, #tpu.memory_space<vmem>>, vector<1x128x384xf32>
    %275 = vector.shape_cast %274 : vector<1x128x384xf32> to vector<128x384xf32>
    %c0_145 = arith.constant 0 : index
    %c0_146 = arith.constant 0 : index
    %c512 = arith.constant 512 : index
    %276 = vector.load %arg11[%c0_145, %c0_146, %c512] : memref<2x128x768xf32, #tpu.memory_space<vmem>>, vector<1x128x256xf32>
    %277 = vector.shape_cast %276 : vector<1x128x256xf32> to vector<128x256xf32>
    %c0_147 = arith.constant 0 : index
    %c0_148 = arith.constant 0 : index
    %c0_149 = arith.constant 0 : index
    %278 = vector.load %arg12[%c0_147, %c0_148, %c0_149] : memref<2x256x128xf32, #tpu.memory_space<vmem>>, vector<1x256x128xf32>
    %279 = vector.shape_cast %278 : vector<1x256x128xf32> to vector<256x128xf32>
    %c0_150 = arith.constant 0 : index
    %c0_151 = arith.constant 0 : index
    %c0_152 = arith.constant 0 : index
    %280 = vector.load %arg13[%c0_150, %c0_151, %c0_152] : memref<2x8x384xf32, #tpu.memory_space<vmem>>, vector<1x1x384xf32>
    %281 = vector.shape_cast %280 : vector<1x1x384xf32> to vector<1x384xf32>
    %c0_153 = arith.constant 0 : index
    %c1_154 = arith.constant 1 : index
    %c0_155 = arith.constant 0 : index
    %282 = vector.load %arg13[%c0_153, %c1_154, %c0_155] : memref<2x8x384xf32, #tpu.memory_space<vmem>>, vector<1x1x128xf32>
    %283 = vector.shape_cast %282 : vector<1x1x128xf32> to vector<1x128xf32>
    %c0_156 = arith.constant 0 : index
    %c2_157 = arith.constant 2 : index
    %c0_158 = arith.constant 0 : index
    %284 = vector.load %arg13[%c0_156, %c2_157, %c0_158] : memref<2x8x384xf32, #tpu.memory_space<vmem>>, vector<1x1x256xf32>
    %285 = vector.shape_cast %284 : vector<1x1x256xf32> to vector<1x256xf32>
    %c0_159 = arith.constant 0 : index
    %c3_160 = arith.constant 3 : index
    %c0_161 = arith.constant 0 : index
    %286 = vector.load %arg13[%c0_159, %c3_160, %c0_161] : memref<2x8x384xf32, #tpu.memory_space<vmem>>, vector<1x1x128xf32>
    %287 = vector.shape_cast %286 : vector<1x1x128xf32> to vector<1x128xf32>
    %c0_162 = arith.constant 0 : index
    %c4_163 = arith.constant 4 : index
    %c0_164 = arith.constant 0 : index
    %288 = vector.load %arg13[%c0_162, %c4_163, %c0_164] : memref<2x8x384xf32, #tpu.memory_space<vmem>>, vector<1x1x128xf32>
    %289 = vector.shape_cast %288 : vector<1x1x128xf32> to vector<1x128xf32>
    %c0_165 = arith.constant 0 : index
    %c5_166 = arith.constant 5 : index
    %c0_167 = arith.constant 0 : index
    %290 = vector.load %arg13[%c0_165, %c5_166, %c0_167] : memref<2x8x384xf32, #tpu.memory_space<vmem>>, vector<1x1x128xf32>
    %291 = vector.shape_cast %290 : vector<1x1x128xf32> to vector<1x128xf32>
    %c0_168 = arith.constant 0 : index
    %c6_169 = arith.constant 6 : index
    %c0_170 = arith.constant 0 : index
    %292 = vector.load %arg13[%c0_168, %c6_169, %c0_170] : memref<2x8x384xf32, #tpu.memory_space<vmem>>, vector<1x1x128xf32>
    %293 = vector.shape_cast %292 : vector<1x1x128xf32> to vector<1x128xf32>
    %c0_171 = arith.constant 0 : index
    %c7_172 = arith.constant 7 : index
    %c0_173 = arith.constant 0 : index
    %294 = vector.load %arg13[%c0_171, %c7_172, %c0_173] : memref<2x8x384xf32, #tpu.memory_space<vmem>>, vector<1x1x128xf32>
    %295 = vector.shape_cast %294 : vector<1x1x128xf32> to vector<1x128xf32>
    %cst_174 = arith.constant dense<0.000000e+00> : vector<6x384xf32>
    %296 = tpu.matmul %265, %275, %cst_174 {dimension_numbers = #tpu.dot_dimension_numbers<[1], [0], [0], [1], [0, 0, 1, 1], [], []>} : vector<6x128xf32>, vector<128x384xf32>, vector<6x384xf32> -> vector<6x384xf32>
    %297 = vector.broadcast %281 : vector<1x384xf32> to vector<6x384xf32>
    %298 = arith.addf %296, %297 : vector<6x384xf32>
    %299 = vector.extract_strided_slice %298 {offsets = [0, 0], sizes = [6, 128], strides = [1, 1]} : vector<6x384xf32> to vector<6x128xf32>
    %cst_175 = arith.constant 1.250000e-01 : f32
    %300 = vector.broadcast %cst_175 : f32 to vector<6x128xf32>
    %301 = arith.mulf %299, %300 : vector<6x128xf32>
    %302 = vector.extract_strided_slice %298 {offsets = [0, 128], sizes = [6, 128], strides = [1, 1]} : vector<6x384xf32> to vector<6x128xf32>
    %303 = vector.extract_strided_slice %298 {offsets = [0, 256], sizes = [6, 128], strides = [1, 1]} : vector<6x384xf32> to vector<6x128xf32>
    %304 = vector.extract_strided_slice %301 {offsets = [0, 0], sizes = [6, 64], strides = [1, 1]} : vector<6x128xf32> to vector<6x64xf32>
    %305 = vector.extract_strided_slice %302 {offsets = [0, 0], sizes = [6, 64], strides = [1, 1]} : vector<6x128xf32> to vector<6x64xf32>
    %cst_176 = arith.constant dense<0.000000e+00> : vector<6x6xf32>
    %306 = tpu.matmul %304, %305, %cst_176 {dimension_numbers = #tpu.dot_dimension_numbers<[1], [1], [0], [0], [0, 0, 1, 0], [], []>} : vector<6x64xf32>, vector<6x64xf32>, vector<6x6xf32> -> vector<6x6xf32>
    %cst_177 = arith.constant dense<0xFF800000> : vector<6xf32>
    %307 = vector.multi_reduction <maximumf>, %306, %cst_177 [1] : vector<6x6xf32> to vector<6xf32>
    %308 = vector.shape_cast %307 : vector<6xf32> to vector<6x1xf32>
    %309 = vector.broadcast %308 : vector<6x1xf32> to vector<6x6xf32>
    %310 = arith.subf %306, %309 : vector<6x6xf32>
    %311 = math.exp %310 : vector<6x6xf32>
    %cst_178 = arith.constant dense<0.000000e+00> : vector<6xf32>
    %312 = vector.multi_reduction <add>, %311, %cst_178 [1] : vector<6x6xf32> to vector<6xf32>
    %313 = vector.shape_cast %312 : vector<6xf32> to vector<6x1xf32>
    %314 = vector.broadcast %313 : vector<6x1xf32> to vector<6x6xf32>
    %315 = arith.divf %311, %314 : vector<6x6xf32>
    %316 = vector.extract_strided_slice %303 {offsets = [0, 0], sizes = [6, 64], strides = [1, 1]} : vector<6x128xf32> to vector<6x64xf32>
    %cst_179 = arith.constant dense<0.000000e+00> : vector<6x64xf32>
    %317 = tpu.matmul %315, %316, %cst_179 {dimension_numbers = #tpu.dot_dimension_numbers<[1], [0], [0], [1], [0, 0, 1, 1], [], []>} : vector<6x6xf32>, vector<6x64xf32>, vector<6x64xf32> -> vector<6x64xf32>
    %c0_180 = arith.constant 0 : index
    %c0_181 = arith.constant 0 : index
    %c384 = arith.constant 384 : index
    %318 = vector.load %arg11[%c0_180, %c0_181, %c384] : memref<2x128x768xf32, #tpu.memory_space<vmem>>, vector<1x64x128xf32>
    %319 = vector.shape_cast %318 : vector<1x64x128xf32> to vector<64x128xf32>
    %cst_182 = arith.constant dense<0.000000e+00> : vector<6x128xf32>
    %320 = tpu.matmul %317, %319, %cst_182 {dimension_numbers = #tpu.dot_dimension_numbers<[1], [0], [0], [1], [0, 0, 1, 1], [], []>} : vector<6x64xf32>, vector<64x128xf32>, vector<6x128xf32> -> vector<6x128xf32>
    %321 = vector.extract_strided_slice %301 {offsets = [0, 64], sizes = [6, 64], strides = [1, 1]} : vector<6x128xf32> to vector<6x64xf32>
    %322 = vector.extract_strided_slice %302 {offsets = [0, 64], sizes = [6, 64], strides = [1, 1]} : vector<6x128xf32> to vector<6x64xf32>
    %cst_183 = arith.constant dense<0.000000e+00> : vector<6x6xf32>
    %323 = tpu.matmul %321, %322, %cst_183 {dimension_numbers = #tpu.dot_dimension_numbers<[1], [1], [0], [0], [0, 0, 1, 0], [], []>} : vector<6x64xf32>, vector<6x64xf32>, vector<6x6xf32> -> vector<6x6xf32>
    %cst_184 = arith.constant dense<0xFF800000> : vector<6xf32>
    %324 = vector.multi_reduction <maximumf>, %323, %cst_184 [1] : vector<6x6xf32> to vector<6xf32>
    %325 = vector.shape_cast %324 : vector<6xf32> to vector<6x1xf32>
    %326 = vector.broadcast %325 : vector<6x1xf32> to vector<6x6xf32>
    %327 = arith.subf %323, %326 : vector<6x6xf32>
    %328 = math.exp %327 : vector<6x6xf32>
    %cst_185 = arith.constant dense<0.000000e+00> : vector<6xf32>
    %329 = vector.multi_reduction <add>, %328, %cst_185 [1] : vector<6x6xf32> to vector<6xf32>
    %330 = vector.shape_cast %329 : vector<6xf32> to vector<6x1xf32>
    %331 = vector.broadcast %330 : vector<6x1xf32> to vector<6x6xf32>
    %332 = arith.divf %328, %331 : vector<6x6xf32>
    %333 = vector.extract_strided_slice %303 {offsets = [0, 64], sizes = [6, 64], strides = [1, 1]} : vector<6x128xf32> to vector<6x64xf32>
    %cst_186 = arith.constant dense<0.000000e+00> : vector<6x64xf32>
    %334 = tpu.matmul %332, %333, %cst_186 {dimension_numbers = #tpu.dot_dimension_numbers<[1], [0], [0], [1], [0, 0, 1, 1], [], []>} : vector<6x6xf32>, vector<6x64xf32>, vector<6x64xf32> -> vector<6x64xf32>
    %c0_187 = arith.constant 0 : index
    %c64_188 = arith.constant 64 : index
    %c384_189 = arith.constant 384 : index
    %335 = vector.load %arg11[%c0_187, %c64_188, %c384_189] : memref<2x128x768xf32, #tpu.memory_space<vmem>>, vector<1x64x128xf32>
    %336 = vector.shape_cast %335 : vector<1x64x128xf32> to vector<64x128xf32>
    %cst_190 = arith.constant dense<0.000000e+00> : vector<6x128xf32>
    %337 = tpu.matmul %334, %336, %cst_190 {dimension_numbers = #tpu.dot_dimension_numbers<[1], [0], [0], [1], [0, 0, 1, 1], [], []>} : vector<6x64xf32>, vector<64x128xf32>, vector<6x128xf32> -> vector<6x128xf32>
    %338 = arith.addf %320, %337 : vector<6x128xf32>
    %339 = vector.broadcast %283 : vector<1x128xf32> to vector<6x128xf32>
    %340 = arith.addf %338, %339 : vector<6x128xf32>
    %341 = arith.addf %265, %340 : vector<6x128xf32>
    %cst_191 = arith.constant dense<0.000000e+00> : vector<6xf32>
    %342 = vector.multi_reduction <add>, %341, %cst_191 [1] : vector<6x128xf32> to vector<6xf32>
    %343 = vector.shape_cast %342 : vector<6xf32> to vector<6x1xf32>
    %cst_192 = arith.constant 1.280000e+02 : f32
    %344 = vector.broadcast %cst_192 : f32 to vector<6x1xf32>
    %345 = arith.divf %343, %344 : vector<6x1xf32>
    %346 = vector.broadcast %345 : vector<6x1xf32> to vector<6x128xf32>
    %347 = arith.subf %341, %346 : vector<6x128xf32>
    %348 = arith.mulf %347, %347 : vector<6x128xf32>
    %cst_193 = arith.constant dense<0.000000e+00> : vector<6xf32>
    %349 = vector.multi_reduction <add>, %348, %cst_193 [1] : vector<6x128xf32> to vector<6xf32>
    %350 = vector.shape_cast %349 : vector<6xf32> to vector<6x1xf32>
    %cst_194 = arith.constant 1.280000e+02 : f32
    %351 = vector.broadcast %cst_194 : f32 to vector<6x1xf32>
    %352 = arith.divf %350, %351 : vector<6x1xf32>
    %353 = vector.broadcast %345 : vector<6x1xf32> to vector<6x128xf32>
    %354 = arith.subf %341, %353 : vector<6x128xf32>
    %cst_195 = arith.constant 9.99999974E-6 : f32
    %355 = vector.broadcast %cst_195 : f32 to vector<6x1xf32>
    %356 = arith.addf %352, %355 : vector<6x1xf32>
    %357 = math.rsqrt %356 : vector<6x1xf32>
    %358 = vector.broadcast %357 : vector<6x1xf32> to vector<6x128xf32>
    %359 = arith.mulf %354, %358 : vector<6x128xf32>
    %360 = vector.broadcast %289 : vector<1x128xf32> to vector<6x128xf32>
    %361 = arith.mulf %359, %360 : vector<6x128xf32>
    %362 = vector.broadcast %291 : vector<1x128xf32> to vector<6x128xf32>
    %363 = arith.addf %361, %362 : vector<6x128xf32>
    %cst_196 = arith.constant dense<0.000000e+00> : vector<6x256xf32>
    %364 = tpu.matmul %363, %277, %cst_196 {dimension_numbers = #tpu.dot_dimension_numbers<[1], [0], [0], [1], [0, 0, 1, 1], [], []>} : vector<6x128xf32>, vector<128x256xf32>, vector<6x256xf32> -> vector<6x256xf32>
    %365 = vector.broadcast %285 : vector<1x256xf32> to vector<6x256xf32>
    %366 = arith.addf %364, %365 : vector<6x256xf32>
    %cst_197 = arith.constant 0.000000e+00 : f32
    %367 = vector.broadcast %cst_197 : f32 to vector<6x256xf32>
    %368 = arith.maximumf %366, %367 : vector<6x256xf32>
    %cst_198 = arith.constant dense<0.000000e+00> : vector<6x128xf32>
    %369 = tpu.matmul %368, %279, %cst_198 {dimension_numbers = #tpu.dot_dimension_numbers<[1], [0], [0], [1], [0, 0, 1, 1], [], []>} : vector<6x256xf32>, vector<256x128xf32>, vector<6x128xf32> -> vector<6x128xf32>
    %370 = vector.broadcast %287 : vector<1x128xf32> to vector<6x128xf32>
    %371 = arith.addf %369, %370 : vector<6x128xf32>
    %372 = arith.addf %363, %371 : vector<6x128xf32>
    %cst_199 = arith.constant dense<0.000000e+00> : vector<6xf32>
    %373 = vector.multi_reduction <add>, %372, %cst_199 [1] : vector<6x128xf32> to vector<6xf32>
    %374 = vector.shape_cast %373 : vector<6xf32> to vector<6x1xf32>
    %cst_200 = arith.constant 1.280000e+02 : f32
    %375 = vector.broadcast %cst_200 : f32 to vector<6x1xf32>
    %376 = arith.divf %374, %375 : vector<6x1xf32>
    %377 = vector.broadcast %376 : vector<6x1xf32> to vector<6x128xf32>
    %378 = arith.subf %372, %377 : vector<6x128xf32>
    %379 = arith.mulf %378, %378 : vector<6x128xf32>
    %cst_201 = arith.constant dense<0.000000e+00> : vector<6xf32>
    %380 = vector.multi_reduction <add>, %379, %cst_201 [1] : vector<6x128xf32> to vector<6xf32>
    %381 = vector.shape_cast %380 : vector<6xf32> to vector<6x1xf32>
    %cst_202 = arith.constant 1.280000e+02 : f32
    %382 = vector.broadcast %cst_202 : f32 to vector<6x1xf32>
    %383 = arith.divf %381, %382 : vector<6x1xf32>
    %384 = vector.broadcast %376 : vector<6x1xf32> to vector<6x128xf32>
    %385 = arith.subf %372, %384 : vector<6x128xf32>
    %cst_203 = arith.constant 9.99999974E-6 : f32
    %386 = vector.broadcast %cst_203 : f32 to vector<6x1xf32>
    %387 = arith.addf %383, %386 : vector<6x1xf32>
    %388 = math.rsqrt %387 : vector<6x1xf32>
    %389 = vector.broadcast %388 : vector<6x1xf32> to vector<6x128xf32>
    %390 = arith.mulf %385, %389 : vector<6x128xf32>
    %391 = vector.broadcast %293 : vector<1x128xf32> to vector<6x128xf32>
    %392 = arith.mulf %390, %391 : vector<6x128xf32>
    %393 = vector.broadcast %295 : vector<1x128xf32> to vector<6x128xf32>
    %394 = arith.addf %392, %393 : vector<6x128xf32>
    %c1_204 = arith.constant 1 : index
    %c0_205 = arith.constant 0 : index
    %c0_206 = arith.constant 0 : index
    %395 = vector.load %arg11[%c1_204, %c0_205, %c0_206] : memref<2x128x768xf32, #tpu.memory_space<vmem>>, vector<1x128x384xf32>
    %396 = vector.shape_cast %395 : vector<1x128x384xf32> to vector<128x384xf32>
    %c1_207 = arith.constant 1 : index
    %c0_208 = arith.constant 0 : index
    %c512_209 = arith.constant 512 : index
    %397 = vector.load %arg11[%c1_207, %c0_208, %c512_209] : memref<2x128x768xf32, #tpu.memory_space<vmem>>, vector<1x128x256xf32>
    %398 = vector.shape_cast %397 : vector<1x128x256xf32> to vector<128x256xf32>
    %c1_210 = arith.constant 1 : index
    %c0_211 = arith.constant 0 : index
    %c0_212 = arith.constant 0 : index
    %399 = vector.load %arg12[%c1_210, %c0_211, %c0_212] : memref<2x256x128xf32, #tpu.memory_space<vmem>>, vector<1x256x128xf32>
    %400 = vector.shape_cast %399 : vector<1x256x128xf32> to vector<256x128xf32>
    %c1_213 = arith.constant 1 : index
    %c0_214 = arith.constant 0 : index
    %c0_215 = arith.constant 0 : index
    %401 = vector.load %arg13[%c1_213, %c0_214, %c0_215] : memref<2x8x384xf32, #tpu.memory_space<vmem>>, vector<1x1x384xf32>
    %402 = vector.shape_cast %401 : vector<1x1x384xf32> to vector<1x384xf32>
    %c1_216 = arith.constant 1 : index
    %c1_217 = arith.constant 1 : index
    %c0_218 = arith.constant 0 : index
    %403 = vector.load %arg13[%c1_216, %c1_217, %c0_218] : memref<2x8x384xf32, #tpu.memory_space<vmem>>, vector<1x1x128xf32>
    %404 = vector.shape_cast %403 : vector<1x1x128xf32> to vector<1x128xf32>
    %c1_219 = arith.constant 1 : index
    %c2_220 = arith.constant 2 : index
    %c0_221 = arith.constant 0 : index
    %405 = vector.load %arg13[%c1_219, %c2_220, %c0_221] : memref<2x8x384xf32, #tpu.memory_space<vmem>>, vector<1x1x256xf32>
    %406 = vector.shape_cast %405 : vector<1x1x256xf32> to vector<1x256xf32>
    %c1_222 = arith.constant 1 : index
    %c3_223 = arith.constant 3 : index
    %c0_224 = arith.constant 0 : index
    %407 = vector.load %arg13[%c1_222, %c3_223, %c0_224] : memref<2x8x384xf32, #tpu.memory_space<vmem>>, vector<1x1x128xf32>
    %408 = vector.shape_cast %407 : vector<1x1x128xf32> to vector<1x128xf32>
    %c1_225 = arith.constant 1 : index
    %c4_226 = arith.constant 4 : index
    %c0_227 = arith.constant 0 : index
    %409 = vector.load %arg13[%c1_225, %c4_226, %c0_227] : memref<2x8x384xf32, #tpu.memory_space<vmem>>, vector<1x1x128xf32>
    %410 = vector.shape_cast %409 : vector<1x1x128xf32> to vector<1x128xf32>
    %c1_228 = arith.constant 1 : index
    %c5_229 = arith.constant 5 : index
    %c0_230 = arith.constant 0 : index
    %411 = vector.load %arg13[%c1_228, %c5_229, %c0_230] : memref<2x8x384xf32, #tpu.memory_space<vmem>>, vector<1x1x128xf32>
    %412 = vector.shape_cast %411 : vector<1x1x128xf32> to vector<1x128xf32>
    %c1_231 = arith.constant 1 : index
    %c6_232 = arith.constant 6 : index
    %c0_233 = arith.constant 0 : index
    %413 = vector.load %arg13[%c1_231, %c6_232, %c0_233] : memref<2x8x384xf32, #tpu.memory_space<vmem>>, vector<1x1x128xf32>
    %414 = vector.shape_cast %413 : vector<1x1x128xf32> to vector<1x128xf32>
    %c1_234 = arith.constant 1 : index
    %c7_235 = arith.constant 7 : index
    %c0_236 = arith.constant 0 : index
    %415 = vector.load %arg13[%c1_234, %c7_235, %c0_236] : memref<2x8x384xf32, #tpu.memory_space<vmem>>, vector<1x1x128xf32>
    %416 = vector.shape_cast %415 : vector<1x1x128xf32> to vector<1x128xf32>
    %cst_237 = arith.constant dense<0.000000e+00> : vector<6x384xf32>
    %417 = tpu.matmul %394, %396, %cst_237 {dimension_numbers = #tpu.dot_dimension_numbers<[1], [0], [0], [1], [0, 0, 1, 1], [], []>} : vector<6x128xf32>, vector<128x384xf32>, vector<6x384xf32> -> vector<6x384xf32>
    %418 = vector.broadcast %402 : vector<1x384xf32> to vector<6x384xf32>
    %419 = arith.addf %417, %418 : vector<6x384xf32>
    %420 = vector.extract_strided_slice %419 {offsets = [0, 0], sizes = [6, 128], strides = [1, 1]} : vector<6x384xf32> to vector<6x128xf32>
    %cst_238 = arith.constant 1.250000e-01 : f32
    %421 = vector.broadcast %cst_238 : f32 to vector<6x128xf32>
    %422 = arith.mulf %420, %421 : vector<6x128xf32>
    %423 = vector.extract_strided_slice %419 {offsets = [0, 128], sizes = [6, 128], strides = [1, 1]} : vector<6x384xf32> to vector<6x128xf32>
    %424 = vector.extract_strided_slice %419 {offsets = [0, 256], sizes = [6, 128], strides = [1, 1]} : vector<6x384xf32> to vector<6x128xf32>
    %425 = vector.extract_strided_slice %422 {offsets = [0, 0], sizes = [6, 64], strides = [1, 1]} : vector<6x128xf32> to vector<6x64xf32>
    %426 = vector.extract_strided_slice %423 {offsets = [0, 0], sizes = [6, 64], strides = [1, 1]} : vector<6x128xf32> to vector<6x64xf32>
    %cst_239 = arith.constant dense<0.000000e+00> : vector<6x6xf32>
    %427 = tpu.matmul %425, %426, %cst_239 {dimension_numbers = #tpu.dot_dimension_numbers<[1], [1], [0], [0], [0, 0, 1, 0], [], []>} : vector<6x64xf32>, vector<6x64xf32>, vector<6x6xf32> -> vector<6x6xf32>
    %cst_240 = arith.constant dense<0xFF800000> : vector<6xf32>
    %428 = vector.multi_reduction <maximumf>, %427, %cst_240 [1] : vector<6x6xf32> to vector<6xf32>
    %429 = vector.shape_cast %428 : vector<6xf32> to vector<6x1xf32>
    %430 = vector.broadcast %429 : vector<6x1xf32> to vector<6x6xf32>
    %431 = arith.subf %427, %430 : vector<6x6xf32>
    %432 = math.exp %431 : vector<6x6xf32>
    %cst_241 = arith.constant dense<0.000000e+00> : vector<6xf32>
    %433 = vector.multi_reduction <add>, %432, %cst_241 [1] : vector<6x6xf32> to vector<6xf32>
    %434 = vector.shape_cast %433 : vector<6xf32> to vector<6x1xf32>
    %435 = vector.broadcast %434 : vector<6x1xf32> to vector<6x6xf32>
    %436 = arith.divf %432, %435 : vector<6x6xf32>
    %437 = vector.extract_strided_slice %424 {offsets = [0, 0], sizes = [6, 64], strides = [1, 1]} : vector<6x128xf32> to vector<6x64xf32>
    %cst_242 = arith.constant dense<0.000000e+00> : vector<6x64xf32>
    %438 = tpu.matmul %436, %437, %cst_242 {dimension_numbers = #tpu.dot_dimension_numbers<[1], [0], [0], [1], [0, 0, 1, 1], [], []>} : vector<6x6xf32>, vector<6x64xf32>, vector<6x64xf32> -> vector<6x64xf32>
    %c1_243 = arith.constant 1 : index
    %c0_244 = arith.constant 0 : index
    %c384_245 = arith.constant 384 : index
    %439 = vector.load %arg11[%c1_243, %c0_244, %c384_245] : memref<2x128x768xf32, #tpu.memory_space<vmem>>, vector<1x64x128xf32>
    %440 = vector.shape_cast %439 : vector<1x64x128xf32> to vector<64x128xf32>
    %cst_246 = arith.constant dense<0.000000e+00> : vector<6x128xf32>
    %441 = tpu.matmul %438, %440, %cst_246 {dimension_numbers = #tpu.dot_dimension_numbers<[1], [0], [0], [1], [0, 0, 1, 1], [], []>} : vector<6x64xf32>, vector<64x128xf32>, vector<6x128xf32> -> vector<6x128xf32>
    %442 = vector.extract_strided_slice %422 {offsets = [0, 64], sizes = [6, 64], strides = [1, 1]} : vector<6x128xf32> to vector<6x64xf32>
    %443 = vector.extract_strided_slice %423 {offsets = [0, 64], sizes = [6, 64], strides = [1, 1]} : vector<6x128xf32> to vector<6x64xf32>
    %cst_247 = arith.constant dense<0.000000e+00> : vector<6x6xf32>
    %444 = tpu.matmul %442, %443, %cst_247 {dimension_numbers = #tpu.dot_dimension_numbers<[1], [1], [0], [0], [0, 0, 1, 0], [], []>} : vector<6x64xf32>, vector<6x64xf32>, vector<6x6xf32> -> vector<6x6xf32>
    %cst_248 = arith.constant dense<0xFF800000> : vector<6xf32>
    %445 = vector.multi_reduction <maximumf>, %444, %cst_248 [1] : vector<6x6xf32> to vector<6xf32>
    %446 = vector.shape_cast %445 : vector<6xf32> to vector<6x1xf32>
    %447 = vector.broadcast %446 : vector<6x1xf32> to vector<6x6xf32>
    %448 = arith.subf %444, %447 : vector<6x6xf32>
    %449 = math.exp %448 : vector<6x6xf32>
    %cst_249 = arith.constant dense<0.000000e+00> : vector<6xf32>
    %450 = vector.multi_reduction <add>, %449, %cst_249 [1] : vector<6x6xf32> to vector<6xf32>
    %451 = vector.shape_cast %450 : vector<6xf32> to vector<6x1xf32>
    %452 = vector.broadcast %451 : vector<6x1xf32> to vector<6x6xf32>
    %453 = arith.divf %449, %452 : vector<6x6xf32>
    %454 = vector.extract_strided_slice %424 {offsets = [0, 64], sizes = [6, 64], strides = [1, 1]} : vector<6x128xf32> to vector<6x64xf32>
    %cst_250 = arith.constant dense<0.000000e+00> : vector<6x64xf32>
    %455 = tpu.matmul %453, %454, %cst_250 {dimension_numbers = #tpu.dot_dimension_numbers<[1], [0], [0], [1], [0, 0, 1, 1], [], []>} : vector<6x6xf32>, vector<6x64xf32>, vector<6x64xf32> -> vector<6x64xf32>
    %c1_251 = arith.constant 1 : index
    %c64_252 = arith.constant 64 : index
    %c384_253 = arith.constant 384 : index
    %456 = vector.load %arg11[%c1_251, %c64_252, %c384_253] : memref<2x128x768xf32, #tpu.memory_space<vmem>>, vector<1x64x128xf32>
    %457 = vector.shape_cast %456 : vector<1x64x128xf32> to vector<64x128xf32>
    %cst_254 = arith.constant dense<0.000000e+00> : vector<6x128xf32>
    %458 = tpu.matmul %455, %457, %cst_254 {dimension_numbers = #tpu.dot_dimension_numbers<[1], [0], [0], [1], [0, 0, 1, 1], [], []>} : vector<6x64xf32>, vector<64x128xf32>, vector<6x128xf32> -> vector<6x128xf32>
    %459 = arith.addf %441, %458 : vector<6x128xf32>
    %460 = vector.broadcast %404 : vector<1x128xf32> to vector<6x128xf32>
    %461 = arith.addf %459, %460 : vector<6x128xf32>
    %462 = arith.addf %394, %461 : vector<6x128xf32>
    %cst_255 = arith.constant dense<0.000000e+00> : vector<6xf32>
    %463 = vector.multi_reduction <add>, %462, %cst_255 [1] : vector<6x128xf32> to vector<6xf32>
    %464 = vector.shape_cast %463 : vector<6xf32> to vector<6x1xf32>
    %cst_256 = arith.constant 1.280000e+02 : f32
    %465 = vector.broadcast %cst_256 : f32 to vector<6x1xf32>
    %466 = arith.divf %464, %465 : vector<6x1xf32>
    %467 = vector.broadcast %466 : vector<6x1xf32> to vector<6x128xf32>
    %468 = arith.subf %462, %467 : vector<6x128xf32>
    %469 = arith.mulf %468, %468 : vector<6x128xf32>
    %cst_257 = arith.constant dense<0.000000e+00> : vector<6xf32>
    %470 = vector.multi_reduction <add>, %469, %cst_257 [1] : vector<6x128xf32> to vector<6xf32>
    %471 = vector.shape_cast %470 : vector<6xf32> to vector<6x1xf32>
    %cst_258 = arith.constant 1.280000e+02 : f32
    %472 = vector.broadcast %cst_258 : f32 to vector<6x1xf32>
    %473 = arith.divf %471, %472 : vector<6x1xf32>
    %474 = vector.broadcast %466 : vector<6x1xf32> to vector<6x128xf32>
    %475 = arith.subf %462, %474 : vector<6x128xf32>
    %cst_259 = arith.constant 9.99999974E-6 : f32
    %476 = vector.broadcast %cst_259 : f32 to vector<6x1xf32>
    %477 = arith.addf %473, %476 : vector<6x1xf32>
    %478 = math.rsqrt %477 : vector<6x1xf32>
    %479 = vector.broadcast %478 : vector<6x1xf32> to vector<6x128xf32>
    %480 = arith.mulf %475, %479 : vector<6x128xf32>
    %481 = vector.broadcast %410 : vector<1x128xf32> to vector<6x128xf32>
    %482 = arith.mulf %480, %481 : vector<6x128xf32>
    %483 = vector.broadcast %412 : vector<1x128xf32> to vector<6x128xf32>
    %484 = arith.addf %482, %483 : vector<6x128xf32>
    %cst_260 = arith.constant dense<0.000000e+00> : vector<6x256xf32>
    %485 = tpu.matmul %484, %398, %cst_260 {dimension_numbers = #tpu.dot_dimension_numbers<[1], [0], [0], [1], [0, 0, 1, 1], [], []>} : vector<6x128xf32>, vector<128x256xf32>, vector<6x256xf32> -> vector<6x256xf32>
    %486 = vector.broadcast %406 : vector<1x256xf32> to vector<6x256xf32>
    %487 = arith.addf %485, %486 : vector<6x256xf32>
    %cst_261 = arith.constant 0.000000e+00 : f32
    %488 = vector.broadcast %cst_261 : f32 to vector<6x256xf32>
    %489 = arith.maximumf %487, %488 : vector<6x256xf32>
    %cst_262 = arith.constant dense<0.000000e+00> : vector<6x128xf32>
    %490 = tpu.matmul %489, %400, %cst_262 {dimension_numbers = #tpu.dot_dimension_numbers<[1], [0], [0], [1], [0, 0, 1, 1], [], []>} : vector<6x256xf32>, vector<256x128xf32>, vector<6x128xf32> -> vector<6x128xf32>
    %491 = vector.broadcast %408 : vector<1x128xf32> to vector<6x128xf32>
    %492 = arith.addf %490, %491 : vector<6x128xf32>
    %493 = arith.addf %484, %492 : vector<6x128xf32>
    %cst_263 = arith.constant dense<0.000000e+00> : vector<6xf32>
    %494 = vector.multi_reduction <add>, %493, %cst_263 [1] : vector<6x128xf32> to vector<6xf32>
    %495 = vector.shape_cast %494 : vector<6xf32> to vector<6x1xf32>
    %cst_264 = arith.constant 1.280000e+02 : f32
    %496 = vector.broadcast %cst_264 : f32 to vector<6x1xf32>
    %497 = arith.divf %495, %496 : vector<6x1xf32>
    %498 = vector.broadcast %497 : vector<6x1xf32> to vector<6x128xf32>
    %499 = arith.subf %493, %498 : vector<6x128xf32>
    %500 = arith.mulf %499, %499 : vector<6x128xf32>
    %cst_265 = arith.constant dense<0.000000e+00> : vector<6xf32>
    %501 = vector.multi_reduction <add>, %500, %cst_265 [1] : vector<6x128xf32> to vector<6xf32>
    %502 = vector.shape_cast %501 : vector<6xf32> to vector<6x1xf32>
    %cst_266 = arith.constant 1.280000e+02 : f32
    %503 = vector.broadcast %cst_266 : f32 to vector<6x1xf32>
    %504 = arith.divf %502, %503 : vector<6x1xf32>
    %505 = vector.broadcast %497 : vector<6x1xf32> to vector<6x128xf32>
    %506 = arith.subf %493, %505 : vector<6x128xf32>
    %cst_267 = arith.constant 9.99999974E-6 : f32
    %507 = vector.broadcast %cst_267 : f32 to vector<6x1xf32>
    %508 = arith.addf %504, %507 : vector<6x1xf32>
    %509 = math.rsqrt %508 : vector<6x1xf32>
    %510 = vector.broadcast %509 : vector<6x1xf32> to vector<6x128xf32>
    %511 = arith.mulf %506, %510 : vector<6x128xf32>
    %512 = vector.broadcast %414 : vector<1x128xf32> to vector<6x128xf32>
    %513 = arith.mulf %511, %512 : vector<6x128xf32>
    %514 = vector.broadcast %416 : vector<1x128xf32> to vector<6x128xf32>
    %515 = arith.addf %513, %514 : vector<6x128xf32>
    %c768 = arith.constant 768 : index
    %c0_268 = arith.constant 0 : index
    %516 = vector.load %arg14[%c768, %c0_268] : memref<776x128xf32, #tpu.memory_space<vmem>>, vector<1x128xf32>
    %517 = vector.extract_strided_slice %515 {offsets = [0, 0], sizes = [1, 128], strides = [1, 1]} : vector<6x128xf32> to vector<1x128xf32>
    %c0_269 = arith.constant 0 : index
    %c0_270 = arith.constant 0 : index
    %518 = vector.load %arg14[%c0_269, %c0_270] : memref<776x128xf32, #tpu.memory_space<vmem>>, vector<128x128xf32>
    %cst_271 = arith.constant dense<0.000000e+00> : vector<1x128xf32>
    %519 = tpu.matmul %517, %518, %cst_271 {dimension_numbers = #tpu.dot_dimension_numbers<[1], [0], [0], [1], [0, 0, 1, 1], [], []>} : vector<1x128xf32>, vector<128x128xf32>, vector<1x128xf32> -> vector<1x128xf32>
    %520 = arith.addf %516, %519 : vector<1x128xf32>
    %521 = vector.extract_strided_slice %515 {offsets = [1, 0], sizes = [1, 128], strides = [1, 1]} : vector<6x128xf32> to vector<1x128xf32>
    %c128 = arith.constant 128 : index
    %c0_272 = arith.constant 0 : index
    %522 = vector.load %arg14[%c128, %c0_272] : memref<776x128xf32, #tpu.memory_space<vmem>>, vector<128x128xf32>
    %cst_273 = arith.constant dense<0.000000e+00> : vector<1x128xf32>
    %523 = tpu.matmul %521, %522, %cst_273 {dimension_numbers = #tpu.dot_dimension_numbers<[1], [0], [0], [1], [0, 0, 1, 1], [], []>} : vector<1x128xf32>, vector<128x128xf32>, vector<1x128xf32> -> vector<1x128xf32>
    %524 = arith.addf %520, %523 : vector<1x128xf32>
    %525 = vector.extract_strided_slice %515 {offsets = [2, 0], sizes = [1, 128], strides = [1, 1]} : vector<6x128xf32> to vector<1x128xf32>
    %c256 = arith.constant 256 : index
    %c0_274 = arith.constant 0 : index
    %526 = vector.load %arg14[%c256, %c0_274] : memref<776x128xf32, #tpu.memory_space<vmem>>, vector<128x128xf32>
    %cst_275 = arith.constant dense<0.000000e+00> : vector<1x128xf32>
    %527 = tpu.matmul %525, %526, %cst_275 {dimension_numbers = #tpu.dot_dimension_numbers<[1], [0], [0], [1], [0, 0, 1, 1], [], []>} : vector<1x128xf32>, vector<128x128xf32>, vector<1x128xf32> -> vector<1x128xf32>
    %528 = arith.addf %524, %527 : vector<1x128xf32>
    %529 = vector.extract_strided_slice %515 {offsets = [3, 0], sizes = [1, 128], strides = [1, 1]} : vector<6x128xf32> to vector<1x128xf32>
    %c384_276 = arith.constant 384 : index
    %c0_277 = arith.constant 0 : index
    %530 = vector.load %arg14[%c384_276, %c0_277] : memref<776x128xf32, #tpu.memory_space<vmem>>, vector<128x128xf32>
    %cst_278 = arith.constant dense<0.000000e+00> : vector<1x128xf32>
    %531 = tpu.matmul %529, %530, %cst_278 {dimension_numbers = #tpu.dot_dimension_numbers<[1], [0], [0], [1], [0, 0, 1, 1], [], []>} : vector<1x128xf32>, vector<128x128xf32>, vector<1x128xf32> -> vector<1x128xf32>
    %532 = arith.addf %528, %531 : vector<1x128xf32>
    %533 = vector.extract_strided_slice %515 {offsets = [4, 0], sizes = [1, 128], strides = [1, 1]} : vector<6x128xf32> to vector<1x128xf32>
    %c512_279 = arith.constant 512 : index
    %c0_280 = arith.constant 0 : index
    %534 = vector.load %arg14[%c512_279, %c0_280] : memref<776x128xf32, #tpu.memory_space<vmem>>, vector<128x128xf32>
    %cst_281 = arith.constant dense<0.000000e+00> : vector<1x128xf32>
    %535 = tpu.matmul %533, %534, %cst_281 {dimension_numbers = #tpu.dot_dimension_numbers<[1], [0], [0], [1], [0, 0, 1, 1], [], []>} : vector<1x128xf32>, vector<128x128xf32>, vector<1x128xf32> -> vector<1x128xf32>
    %536 = arith.addf %532, %535 : vector<1x128xf32>
    %537 = vector.extract_strided_slice %515 {offsets = [5, 0], sizes = [1, 128], strides = [1, 1]} : vector<6x128xf32> to vector<1x128xf32>
    %c640 = arith.constant 640 : index
    %c0_282 = arith.constant 0 : index
    %538 = vector.load %arg14[%c640, %c0_282] : memref<776x128xf32, #tpu.memory_space<vmem>>, vector<128x128xf32>
    %cst_283 = arith.constant dense<0.000000e+00> : vector<1x128xf32>
    %539 = tpu.matmul %537, %538, %cst_283 {dimension_numbers = #tpu.dot_dimension_numbers<[1], [0], [0], [1], [0, 0, 1, 1], [], []>} : vector<1x128xf32>, vector<128x128xf32>, vector<1x128xf32> -> vector<1x128xf32>
    %540 = arith.addf %536, %539 : vector<1x128xf32>
    %541 = vector.shape_cast %540 : vector<1x128xf32> to vector<1x128xf32>
    %542 = vector.broadcast %541 : vector<1x128xf32> to vector<8x128xf32>
    %c0_284 = arith.constant 0 : index
    %c0_285 = arith.constant 0 : index
    %543 = vector.load %arg10[%c0_284, %c0_285] : memref<8x128xf32, #tpu.memory_space<vmem>>, vector<8x128xf32>
    tpu.vector_store %arg10[%c0_284, %c0_285], %542 {strides = array<i32>} : memref<8x128xf32, #tpu.memory_space<vmem>>, vector<8x128xf32>,
    return
  }
  func.func @transform_0(%arg0: i32) -> (i32, i32) {
    %c0_i32 = arith.constant 0 : i32
    %c0_i32_0 = arith.constant 0 : i32
    return %arg0, %c0_i32 : i32, i32
  }
  func.func @transform_1(%arg0: i32) -> (i32, i32) {
    %c0_i32 = arith.constant 0 : i32
    %c0_i32_0 = arith.constant 0 : i32
    %c0_i32_1 = arith.constant 0 : i32
    return %c0_i32, %c0_i32_0 : i32, i32
  }
  func.func @transform_2(%arg0: i32) -> (i32, i32, i32) {
    %c0_i32 = arith.constant 0 : i32
    %c0_i32_0 = arith.constant 0 : i32
    %c0_i32_1 = arith.constant 0 : i32
    %c0_i32_2 = arith.constant 0 : i32
    return %c0_i32, %c0_i32_0, %c0_i32_1 : i32, i32, i32
  }
  func.func @transform_3(%arg0: i32) -> (i32, i32, i32) {
    %c0_i32 = arith.constant 0 : i32
    %c0_i32_0 = arith.constant 0 : i32
    %c0_i32_1 = arith.constant 0 : i32
    %c0_i32_2 = arith.constant 0 : i32
    return %c0_i32, %c0_i32_0, %c0_i32_1 : i32, i32, i32
  }
  func.func @transform_4(%arg0: i32) -> (i32, i32, i32) {
    %c0_i32 = arith.constant 0 : i32
    %c0_i32_0 = arith.constant 0 : i32
    %c0_i32_1 = arith.constant 0 : i32
    %c0_i32_2 = arith.constant 0 : i32
    return %c0_i32, %c0_i32_0, %c0_i32_1 : i32, i32, i32
  }
  func.func @transform_9(%arg0: i32) -> (i32, i32) {
    %c0_i32 = arith.constant 0 : i32
    %c0_i32_0 = arith.constant 0 : i32
    return %arg0, %c0_i32 : i32, i32
  }
}

</mosaic_0001>

<llo_original>
// kernel: model_forward.1
$region0: #{model_forward.1}
  #allocation0 [shape = 'u32[]', space=smem, size = 0x4, offset = 0x4, fixed_abs, tag = 'smem constant byte address 0x4 - core index']
  #allocation1 [shape = 'u32[72,128]{1,0:T(1,128)}', space=vmem, size = 0x9000, scoped, tag = 'internal scratch']
  #allocation2 [shape = 'f32[2,128,768]{2,1,0:T(8,128)}', space=vmem, size = 0xc0000, scoped, tag = 'scratch operand']
  #allocation3 [shape = 'f32[2,256,128]{2,1,0:T(8,128)}', space=vmem, size = 0x40000, scoped, tag = 'scratch operand']
  #allocation4 [shape = 'f32[2,8,384]{2,1,0:T(8,128)}', space=vmem, size = 0x6000, scoped, tag = 'scratch operand']
  #allocation5 [shape = 'f32[776,128]{1,0:T(8,128)}', space=vmem, size = 0x61000, scoped, tag = 'scratch operand']
  #allocation6 [shape = 'f32[48,16]{1,0:T(8,128)}', space=vmem, size = 0x6000, scoped, tag = 'scratch operand']
  #allocation7 [shape = 's32[4]{0}', space=sflag, size = 0x10, scoped, tag = 'scratch operand']
  #allocation10 [shape = 's32[]', space=sflag, size = 0x4, offset = 0, fixed_abs, tag = 'sflag constant byte address 0x0 - dummy sync flag']
  #allocation11 [shape = 's32[]', space=sflag, size = 0x4, offset = 0, fixed_abs, tag = 'sflag constant byte address 0x0 - dummy sync flag']
  #allocation12 [shape = 'u32[]', space=smem, size = 0x4, offset = 0x44, fixed_abs, tag = 'smem constant byte address 0x44 - assertion arg 0']
  #allocation13 [shape = 'u32[]', space=smem, size = 0x4, offset = 0x48, fixed_abs, tag = 'smem constant byte address 0x48 - assertion arg 1']
  #allocation14 [shape = 's32[]', space=sflag, size = 0x4, offset = 0, fixed_abs, tag = 'sflag constant byte address 0x0 - dummy sync flag']
  #allocation15 [shape = 's32[]', space=sflag, size = 0x4, offset = 0, fixed_abs, tag = 'sflag constant byte address 0x0 - dummy sync flag']
  #allocation16 [shape = 's32[]', space=sflag, size = 0x4, offset = 0, fixed_abs, tag = 'sflag constant byte address 0x0 - dummy sync flag']
  #allocation17 [shape = 's32[]', space=sflag, size = 0x4, offset = 0, fixed_abs, tag = 'sflag constant byte address 0x0 - dummy sync flag']
  #allocation18 [shape = 's32[]', space=sflag, size = 0x4, offset = 0, fixed_abs, tag = 'sflag constant byte address 0x0 - dummy sync flag']
  #allocation19 [shape = 's32[]', space=sflag, size = 0x4, offset = 0, fixed_abs, tag = 'sflag constant byte address 0x0 - dummy sync flag']
  %s0 = inlined_call_operand.vmem [shape: f32[96,16], index: 0, kind: input, shape index: {}]
  %s1 = inlined_call_operand.vmem [shape: f32[48,48], index: 1, kind: input, shape index: {}]
  %s2 = inlined_call_operand.hbm [shape: f32[2,16,96], index: 2, kind: input, shape index: {}]
  %s3 = inlined_call_operand.vmem [shape: f32[2,32,16], index: 3, kind: input, shape index: {}]
  %s4 = inlined_call_operand.vmem [shape: f32[2,8,48], index: 4, kind: input, shape index: {}]
  %s5 = inlined_call_operand.hbm [shape: f32[2,128,768], index: 5, kind: input, shape index: {}]
  %s6 = inlined_call_operand.hbm [shape: f32[2,256,128], index: 6, kind: input, shape index: {}]
  %s7 = inlined_call_operand.hbm [shape: f32[2,8,384], index: 7, kind: input, shape index: {}]
  %s8 = inlined_call_operand.hbm [shape: f32[776,128], index: 8, kind: input, shape index: {}]
  %s9 = inlined_call_operand.vmem [shape: f32[16,128], index: 9, kind: output, shape index: {}]
  %s10 = sld [smem:[#allocation0]]
  $region73: #{model_forward.1} parent=0
    _
  %s12 = ssub.s32 1, %s10
  %s13 = scalar_select 0, %s12, %s10
  $region1: #{model_forward.1} parent=0
    #allocation8 [shape = 'u8[16384]{0}', space=vmem, size = 0x4000, scoped, tag = 'input window, operand 2, single buffered']
    #allocation9 [shape = 's32[2]{0}', space=sflag, size = 0x8, scoped, tag = 'scoped memory for model_forward.1']
    %14 = vsyncpa [#allocation9], 0
    loop: start=0, step=1, limit=4
    $region2: #{model_forward.1} parent=1 // loop_pre_header
      _
    $region3: #{model_forward.1} parent=1 // loop_header
      %s16 = sphi 0, %s20
      %p17 = scmp.ge.s32.totalorder %s16, 4
      %s26 = sphi 0, %s28
      %s29 = sphi 0, %s26
      %s30 = sphi 0, %s29
      %s46 = sphi 0, %s30
      %s50 = sphi 0, %s50
      %s52 = sphi 0, %s50
      %s53 = sphi 0, %s52
      %s67 = sphi 0, %s53
      %s71 = sphi 0, %s71
      %s73 = sphi 0, %s71
      %s74 = sphi 0, %s73
      %s88 = sphi 0, %s74
      %s92 = sphi 0, %s92
      %s94 = sphi 0, %s92
      %s95 = sphi 0, %s94
      %s109 = sphi 0, %s95
      %s113 = sphi 0, %s113
      %s115 = sphi 0, %s113
      %s116 = sphi 0, %s115
      %s130 = sphi 0, %s116
      %s136 = sphi 0, %s138
      %s139 = sphi 0, %s136
      %s140 = sphi 0, %s139
      %s156 = sphi 0, %s140
    $region4: #{model_forward.1} parent=1 // loop_header_branch
      %19 = sbr.rel (%p17) target = $region8
    $region5: #{model_forward.1} parent=1 // loop_body
      %s21 = ssub.s32 %s16, 1
      %s22 = ssub.s32 %s16, 2
      %s23 = sadd.s32 %s16, 1
      %s24 = ssub.s32 %s16, %s23
      %p25 = scmp.eq.s32.totalorder %s24, 0
      %s27 = sadd.s32 %s26, 1
      %s28 = scalar_select %p25, %s26, %s27
      %p31 = pneg %p25
      %p32 = scmp.eq.s32.totalorder %s16, 1
      %p33 = por %p31, %p32
      %p34 = scmp.ne.s32.totalorder %s26, %s29
      %p35 = scmp.eq.s32.totalorder %s16, 0
      %p36 = por %p34, %p35
      %p37 = scmp.ne.s32.totalorder %s26, %s29
      %p38 = scmp.eq.s32.totalorder %s21, 1
      %p39 = por %p37, %p38
      %p40 = scmp.ne.s32.totalorder %s29, %s30
      %p41 = scmp.eq.s32.totalorder %s21, 0
      %p42 = por %p40, %p41
      %p43 = scmp.ne.s32.totalorder %s29, %s30
      %p44 = scmp.eq.s32.totalorder %s22, 1
      %p45 = por %p43, %p44
      %p47 = scmp.ne.s32.totalorder %s30, %s46
      %p48 = scmp.eq.s32.totalorder %s22, 0
      %p49 = por %p47, %p48
      %s51 = sadd.s32 %s50, 1
      %p54 = scmp.eq.s32.totalorder %s16, 1
      %p55 = scmp.ne.s32.totalorder %s50, %s52
      %p56 = scmp.eq.s32.totalorder %s16, 0
      %p57 = por %p55, %p56
      %p58 = scmp.ne.s32.totalorder %s50, %s52
      %p59 = scmp.eq.s32.totalorder %s21, 1
      %p60 = por %p58, %p59
      %p61 = scmp.ne.s32.totalorder %s52, %s53
      %p62 = scmp.eq.s32.totalorder %s21, 0
      %p63 = por %p61, %p62
      %p64 = scmp.ne.s32.totalorder %s52, %s53
      %p65 = scmp.eq.s32.totalorder %s22, 1
      %p66 = por %p64, %p65
      %p68 = scmp.ne.s32.totalorder %s53, %s67
      %p69 = scmp.eq.s32.totalorder %s22, 0
      %p70 = por %p68, %p69
      %s72 = sadd.s32 %s71, 1
      %p75 = scmp.eq.s32.totalorder %s16, 1
      %p76 = scmp.ne.s32.totalorder %s71, %s73
      %p77 = scmp.eq.s32.totalorder %s16, 0
      %p78 = por %p76, %p77
      %p79 = scmp.ne.s32.totalorder %s71, %s73
      %p80 = scmp.eq.s32.totalorder %s21, 1
      %p81 = por %p79, %p80
      %p82 = scmp.ne.s32.totalorder %s73, %s74
      %p83 = scmp.eq.s32.totalorder %s21, 0
      %p84 = por %p82, %p83
      %p85 = scmp.ne.s32.totalorder %s73, %s74
      %p86 = scmp.eq.s32.totalorder %s22, 1
      %p87 = por %p85, %p86
      %p89 = scmp.ne.s32.totalorder %s74, %s88
      %p90 = scmp.eq.s32.totalorder %s22, 0
      %p91 = por %p89, %p90
      %s93 = sadd.s32 %s92, 1
      %p96 = scmp.eq.s32.totalorder %s16, 1
      %p97 = scmp.ne.s32.totalorder %s92, %s94
      %p98 = scmp.eq.s32.totalorder %s16, 0
      %p99 = por %p97, %p98
      %p100 = scmp.ne.s32.totalorder %s92, %s94
      %p101 = scmp.eq.s32.totalorder %s21, 1
      %p102 = por %p100, %p101
      %p103 = scmp.ne.s32.totalorder %s94, %s95
      %p104 = scmp.eq.s32.totalorder %s21, 0
      %p105 = por %p103, %p104
      %p106 = scmp.ne.s32.totalorder %s94, %s95
      %p107 = scmp.eq.s32.totalorder %s22, 1
      %p108 = por %p106, %p107
      %p110 = scmp.ne.s32.totalorder %s95, %s109
      %p111 = scmp.eq.s32.totalorder %s22, 0
      %p112 = por %p110, %p111
      %s114 = sadd.s32 %s113, 1
      %p117 = scmp.eq.s32.totalorder %s16, 1
      %p118 = scmp.ne.s32.totalorder %s113, %s115
      %p119 = scmp.eq.s32.totalorder %s16, 0
      %p120 = por %p118, %p119
      %p121 = scmp.ne.s32.totalorder %s113, %s115
      %p122 = scmp.eq.s32.totalorder %s21, 1
      %p123 = por %p121, %p122
      %p124 = scmp.ne.s32.totalorder %s115, %s116
      %p125 = scmp.eq.s32.totalorder %s21, 0
      %p126 = por %p124, %p125
      %p127 = scmp.ne.s32.totalorder %s115, %s116
      %p128 = scmp.eq.s32.totalorder %s22, 1
      %p129 = por %p127, %p128
      %p131 = scmp.ne.s32.totalorder %s116, %s130
      %p132 = scmp.eq.s32.totalorder %s22, 0
      %p133 = por %p131, %p132
      %s134 = ssub.s32 %s16, %s23
      %p135 = scmp.eq.s32.totalorder %s134, 0
      %s137 = sadd.s32 %s136, 1
      %s138 = scalar_select %p135, %s136, %s137
      %p141 = pneg %p135
      %p142 = scmp.eq.s32.totalorder %s16, 1
      %p143 = por %p141, %p142
      %p144 = scmp.ne.s32.totalorder %s136, %s139
      %p145 = scmp.eq.s32.totalorder %s16, 0
      %p146 = por %p144, %p145
      %p147 = scmp.ne.s32.totalorder %s136, %s139
      %p148 = scmp.eq.s32.totalorder %s21, 1
      %p149 = por %p147, %p148
      %p150 = scmp.ne.s32.totalorder %s139, %s140
      %p151 = scmp.eq.s32.totalorder %s21, 0
      %p152 = por %p150, %p151
      %p153 = scmp.ne.s32.totalorder %s139, %s140
      %p154 = scmp.eq.s32.totalorder %s22, 1
      %p155 = por %p153, %p154
      %p157 = scmp.ne.s32.totalorder %s140, %s156
      %p158 = scmp.eq.s32.totalorder %s22, 0
      %p159 = por %p157, %p158
      %p160 = scmp.le.s32.totalorder 1, %s16
      %p161 = scmp.lt.s32.totalorder %s16, 3
      %p162 = pnand %p160, %p161
      %p163 = pneg %p162
      // Predicated region
      $region9: #{model_forward.1} parent=5 // pred_check
        _
      $region10: #{model_forward.1} parent=5 // pred_check_branch
        %165 = sbr.rel (%p162) target = $region12
      $region11: #{model_forward.1} parent=5 // pred_region
        %s166 = ssub.s32 %s16, 1
        // Predicated region
        $region13: #{model_forward.1} parent=11 // pred_check
          %p167 = pneg %p63
        $region14: #{model_forward.1} parent=11 // pred_check_branch
          %169 = sbr.rel (%p167) target = $region16
        $region15: #{model_forward.1} parent=11 // pred_region
          _
        $region16: #{model_forward.1} parent=11 // pred_fallthru
          _
        // Predicated region
        $region17: #{model_forward.1} parent=11 // pred_check
          %p170 = pneg %p84
        $region18: #{model_forward.1} parent=11 // pred_check_branch
          %172 = sbr.rel (%p170) target = $region20
        $region19: #{model_forward.1} parent=11 // pred_region
          %174 = vsyncadd [#allocation9], 0
          %s175 = sshll.u32 %s2, 4
          %s176 = int_to_ptr.hbm [resolvable:$true] %s175
          %s177 = sshll.u32 [#allocation8], 4
          %s178 = int_to_ptr.vmem [resolvable:$true] %s177
          %183 = dma.hbm_to_vmem [thread:$0]  %s176, 512, %s178, [#allocation9], 128, 128, 8
        $region20: #{model_forward.1} parent=11 // pred_fallthru
          _
        // Predicated region
        $region21: #{model_forward.1} parent=11 // pred_check
          %p184 = pneg %p105
        $region22: #{model_forward.1} parent=11 // pred_check_branch
          %186 = sbr.rel (%p184) target = $region24
        $region23: #{model_forward.1} parent=11 // pred_region
          _
        $region24: #{model_forward.1} parent=11 // pred_fallthru
          _
        // Predicated region
        $region25: #{model_forward.1} parent=11 // pred_check
          %p187 = pneg %p126
        $region26: #{model_forward.1} parent=11 // pred_check_branch
          %189 = sbr.rel (%p187) target = $region28
        $region27: #{model_forward.1} parent=11 // pred_region
          _
        $region28: #{model_forward.1} parent=11 // pred_fallthru
          _
      $region12: #{model_forward.1} parent=5 // pred_fallthru
        _
      %p190 = scmp.lt.s32.totalorder %s16, 2
      // Predicated region
      $region29: #{model_forward.1} parent=5 // pred_check
        %p191 = pneg %p190
      $region30: #{model_forward.1} parent=5 // pred_check_branch
        %193 = sbr.rel (%p191) target = $region32
      $region31: #{model_forward.1} parent=5 // pred_region
        // Predicated region
        $region33: #{model_forward.1} parent=31 // pred_check
          %p194 = pneg %p36
        $region34: #{model_forward.1} parent=31 // pred_check_branch
          %196 = sbr.rel (%p194) target = $region36
        $region35: #{model_forward.1} parent=31 // pred_region
          %s197 = smul.u32 6, %s16
          %p198 = scmp.lt.s32.totalorder %s197, 11
          %s199 = scalar_select %p198, %s197, 11
          %s200 = smul.addr %s199, 8
          %s201 = scalar_lea.vmem %s0, %s200
          %s202 = smul.u32 6, %s16
        $region36: #{model_forward.1} parent=31 // pred_fallthru
          _
      $region32: #{model_forward.1} parent=5 // pred_fallthru
        _
      %p203 = scmp.le.s32.totalorder 1, %s16
      %p204 = scmp.lt.s32.totalorder %s16, 3
      %p205 = pnand %p203, %p204
      %p206 = pneg %p205
      // Predicated region
      $region37: #{model_forward.1} parent=5 // pred_check
        _
      $region38: #{model_forward.1} parent=5 // pred_check_branch
        %208 = sbr.rel (%p205) target = $region40
      $region39: #{model_forward.1} parent=5 // pred_region
        %s209 = ssub.s32 %s16, 1
        // Predicated region
        $region41: #{model_forward.1} parent=39 // pred_check
          %p210 = pneg %p84
        $region42: #{model_forward.1} parent=39 // pred_check_branch
          %212 = sbr.rel (%p210) target = $region44
        $region43: #{model_forward.1} parent=39 // pred_region
          %214 = dma.done [#allocation9], 512
        $region44: #{model_forward.1} parent=39 // pred_fallthru
          _
        %s215 = smul.u32 6, %s21
        %p216 = scmp.lt.s32.totalorder %s215, 11
        %s217 = scalar_select %p216, %s215, 11
        %s218 = smul.addr %s217, 8
        %s219 = scalar_lea.vmem %s0, %s218
        %p220 = pneg %p42
        %p221 = pneg %p39
        %p222 = pneg %p63
        %p223 = pneg %p60
        %p224 = pneg %p84
        %p225 = pneg %p81
        %p226 = pneg %p105
        %p227 = pneg %p102
        %p228 = pneg %p126
        %p229 = pneg %p123
        %p230 = pneg %p152
        %p231 = pneg %p149
        %p232 = scmp.lt.s32.totalorder %s21, 1
        %s233 = scalar_select %p232, %s21, 1
        %s234 = smul.addr %s233, 8
        %s235 = scalar_lea.vmem %s9, %s234
        %s236 = smul.u32 6, %s21
        %p237 = scmp.lt.s32.totalorder %s236, 11
        %s238 = scalar_select %p237, %s236, 11
        %s239 = smul.addr %s238, 8
        %s240 = scalar_lea.vmem %s0, %s239
        %s241 = smul.u32 6, %s21
        %p242 = scmp.lt.s32.totalorder %s21, 1
        %s243 = scalar_select %p242, %s21, 1
        %s244 = smul.addr %s243, 8
        %s245 = scalar_lea.vmem %s9, %s244
        // Predicated region
        $region45: #{model_forward.1} parent=39 // pred_check
          _
        $region46: #{model_forward.1} parent=39 // pred_check_branch
          %247 = sbr.rel target = $region48
        $region47: #{model_forward.1} parent=39 // pred_region
          %248 = sst [smem:[#allocation12]] [#allocation11]
          %249 = sst [smem:[#allocation13]] [#allocation10]
        $region48: #{model_forward.1} parent=39 // pred_fallthru
          _
        %251 = shalt.err (0)
        %s253 = sshll.u32 %s5, 4
        %s254 = int_to_ptr.hbm [resolvable:$true] %s253
        %s255 = sshll.u32 [#allocation2], 4
        %s256 = int_to_ptr.vmem [resolvable:$true] %s255
        %258 = dma.hbm_to_vmem [thread:$0]  %s254, 24576, %s256, [#allocation7]
        %s259 = scalar_lea.sflag [#allocation7], 1
        // Predicated region
        $region49: #{model_forward.1} parent=39 // pred_check
          _
        $region50: #{model_forward.1} parent=39 // pred_check_branch
          %261 = sbr.rel target = $region52
        $region51: #{model_forward.1} parent=39 // pred_region
          %262 = sst [smem:[#allocation12]] [#allocation15]
          %263 = sst [smem:[#allocation13]] [#allocation14]
        $region52: #{model_forward.1} parent=39 // pred_fallthru
          _
        %265 = shalt.err (0)
        %s267 = sshll.u32 %s6, 4
        %s268 = int_to_ptr.hbm [resolvable:$true] %s267
        %s269 = sshll.u32 [#allocation3], 4
        %s270 = int_to_ptr.vmem [resolvable:$true] %s269
        %272 = dma.hbm_to_vmem [thread:$0]  %s268, 8192, %s270, %s259
        %s273 = scalar_lea.sflag [#allocation7], 2
        // Predicated region
        $region53: #{model_forward.1} parent=39 // pred_check
          _
        $region54: #{model_forward.1} parent=39 // pred_check_branch
          %275 = sbr.rel target = $region56
        $region55: #{model_forward.1} parent=39 // pred_region
          %276 = sst [smem:[#allocation12]] [#allocation17]
          %277 = sst [smem:[#allocation13]] [#allocation16]
        $region56: #{model_forward.1} parent=39 // pred_fallthru
          _
        %279 = shalt.err (0)
        %s281 = sshll.u32 %s7, 4
        %s282 = int_to_ptr.hbm [resolvable:$true] %s281
        %s283 = sshll.u32 [#allocation4], 4
        %s284 = int_to_ptr.vmem [resolvable:$true] %s283
        %286 = dma.hbm_to_vmem [thread:$0]  %s282, 768, %s284, %s273
        %s287 = scalar_lea.sflag [#allocation7], 3
        // Predicated region
        $region57: #{model_forward.1} parent=39 // pred_check
          _
        $region58: #{model_forward.1} parent=39 // pred_check_branch
          %289 = sbr.rel target = $region60
        $region59: #{model_forward.1} parent=39 // pred_region
          %290 = sst [smem:[#allocation12]] [#allocation19]
          %291 = sst [smem:[#allocation13]] [#allocation18]
        $region60: #{model_forward.1} parent=39 // pred_fallthru
          _
        %293 = shalt.err (0)
        %s295 = sshll.u32 %s8, 4
        %s296 = int_to_ptr.hbm [resolvable:$true] %s295
        %s297 = sshll.u32 [#allocation5], 4
        %s298 = int_to_ptr.vmem [resolvable:$true] %s297
        %300 = dma.hbm_to_vmem [thread:$0]  %s296, 12416, %s298, %s287
        %v301 = vld [vmem:[%s240] sm:$0xff]
        %v302 = vld [vmem:[%s240 + $0x8] sm:$0xff]
        %v303 = vld [vmem:[%s240 + $0x10] sm:$0xff]
        %v304 = vld [vmem:[%s240 + $0x18] sm:$0xff]
        %v305 = vld [vmem:[%s240 + $0x20] sm:$0xff]
        %v306 = vld [vmem:[%s240 + $0x28] sm:$0xff]
        %v307 = vld [vmem:[%s1] sm:$0xff]
        %v308 = vld [vmem:[%s1 + $0x8] sm:$0xff]
        %v309 = vld [vmem:[%s1 + $0x10] sm:$0xff]
        %v310 = vld [vmem:[%s1 + $0x18] sm:$0xff]
        %v311 = vld [vmem:[%s1 + $0x20] sm:$0xff]
        %v312 = vld [vmem:[%s1 + $0x28] sm:$0xff]
        %v313 = vld [vmem:[#allocation8] sm:$0xff]
        %v314 = vld [vmem:[#allocation8 + $0x8] sm:$0xff]
        %v315 = vld [vmem:[%s3] sm:$0xff]
        %v316 = vld [vmem:[%s3 + $0x8] sm:$0xff]
        %v317 = vld [vmem:[%s3 + $0x10] sm:$0xff]
        %v318 = vld [vmem:[%s3 + $0x18] sm:$0xff]
        %v319 = vld [vmem:[%s4] sm:$0x1]
        %v320 = vld [vmem:[%s4 + $0x1] sm:$0x1]
        %v321 = vld [vmem:[%s4 + $0x2] sm:$0x1]
        %v322 = vld [vmem:[%s4 + $0x3] sm:$0x1]
        %v323 = vld [vmem:[%s4 + $0x4] sm:$0x1]
        %v324 = vld [vmem:[%s4 + $0x5] sm:$0x1]
        %v325 = vld [vmem:[%s4 + $0x6] sm:$0x1]
        %v326 = vld [vmem:[%s4 + $0x7] sm:$0x1]
        %v327 = vperm.slane %v319, 0
        %vm328 = vcmask 130048
        %v330 = vsel %vm328, %v301, 0
        %v333 = vsel %vm328, %v302, 0
        %v336 = vsel %vm328, %v303, 0
        %v339 = vsel %vm328, %v304, 0
        %v342 = vsel %vm328, %v305, 0
        %v345 = vsel %vm328, %v306, 0
        %347 = vmatpush.msra.mxu0 0.0
        %348 = vmatpush.msra.mxu0 0.0
        %349 = vmatpush.msra.mxu0 0.0
        %350 = vmatpush.msra.mxu0 0.0
        %351 = vmatpush.msra.mxu0 0.0
        %352 = vmatpush.msra.mxu0 0.0
        %353 = vmatpush.msra.mxu0 0.0
        %354 = vmatpush.msra.mxu0 0.0
        %355 = vmatpush.msra.mxu0 0.0
        %356 = vmatpush.msra.mxu0 0.0
        %357 = vmatpush.msra.mxu0 0.0
        %358 = vmatpush.msra.mxu0 0.0
        %359 = vmatpush.msra.mxu0 0.0
        %360 = vmatpush.msra.mxu0 0.0
        %361 = vmatpush.msra.mxu0 %v314
        %362 = vmatpush.msra.mxu0 %v313
        %363 = vmatmul.f32.gmra.mxu0 %v330
        %v364 = vpop.f32.mrf.mxu0
        %v365 = vadd.f32 %v327, %v364
        %366 = vmatmul.f32.gmra.mxu0 %v333
        %v367 = vpop.f32.mrf.mxu0
        %v368 = vadd.f32 %v327, %v367
        %369 = vmatmul.f32.gmra.mxu0 %v336
        %v370 = vpop.f32.mrf.mxu0
        %v371 = vadd.f32 %v327, %v370
        %372 = vmatmul.f32.gmra.mxu0 %v339
        %v373 = vpop.f32.mrf.mxu0
        %v374 = vadd.f32 %v327, %v373
        %375 = vmatmul.f32.gmra.mxu0 %v342
        %v376 = vpop.f32.mrf.mxu0
        %v377 = vadd.f32 %v327, %v376
        %378 = vmatmul.f32.gmra.mxu0 %v345
        %v379 = vpop.f32.mrf.mxu0
        %v380 = vadd.f32 %v327, %v379
        %381 = vdwg.mxu0
        %v382 = vmul.f32 %v365, 0.35355338
        %v383 = vmul.f32 %v368, 0.35355338
        %v384 = vmul.f32 %v371, 0.35355338
        %v385 = vmul.f32 %v374, 0.35355338
        %v386 = vmul.f32 %v377, 0.35355338
        %v387 = vmul.f32 %v380, 0.35355338
        %394 = vrot.lane.b32.xlu0 %v365, 112
        %v395 = vpop.permute.xlu0 %394
        %396 = vrot.lane.b32.xlu0 %v368, 112
        %v397 = vpop.permute.xlu0 %396
        %398 = vrot.lane.b32.xlu0 %v371, 112
        %v399 = vpop.permute.xlu0 %398
        %400 = vrot.lane.b32.xlu0 %v374, 112
        %v401 = vpop.permute.xlu0 %400
        %402 = vrot.lane.b32.xlu0 %v377, 112
        %v403 = vpop.permute.xlu0 %402
        %404 = vrot.lane.b32.xlu0 %v380, 112
        %v405 = vpop.permute.xlu0 %404
        %vm406 = vcmask 64512
        %v408 = vsel %vm406, %v382, 0
        %v411 = vsel %vm406, %v383, 0
        %v414 = vsel %vm406, %v384, 0
        %v417 = vsel %vm406, %v385, 0
        %v420 = vsel %vm406, %v386, 0
        %v423 = vsel %vm406, %v387, 0
        %v425 = vsel %vm406, %v395, 0
        %v427 = vsel %vm406, %v397, 0
        %v429 = vsel %vm406, %v399, 0
        %v431 = vsel %vm406, %v401, 0
        %v433 = vsel %vm406, %v403, 0
        %v435 = vsel %vm406, %v405, 0
        %437 = vmatpush.xpose.msra.mxu0 0.0
        %438 = vmatpush.xpose.msra.mxu0 0.0
        %439 = vmatpush.xpose.msra.mxu0 0.0
        %440 = vmatpush.xpose.msra.mxu0 0.0
        %441 = vmatpush.xpose.msra.mxu0 0.0
        %442 = vmatpush.xpose.msra.mxu0 0.0
        %443 = vmatpush.xpose.msra.mxu0 0.0
        %444 = vmatpush.xpose.msra.mxu0 0.0
        %445 = vmatpush.xpose.msra.mxu0 0.0
        %446 = vmatpush.xpose.msra.mxu0 0.0
        %447 = vmatpush.xpose.msra.mxu0 %v435
        %448 = vmatpush.xpose.msra.mxu0 %v433
        %449 = vmatpush.xpose.msra.mxu0 %v431
        %450 = vmatpush.xpose.msra.mxu0 %v429
        %451 = vmatpush.xpose.msra.mxu0 %v427
        %452 = vmatpush.xpose.msra.mxu0 %v425
        %453 = vmatmul.f32.gmra.mxu0 %v408
        %v454 = vpop.f32.mrf.mxu0
        %v455 = vadd.f32 %v307, %v454
        %456 = vmatmul.f32.gmra.mxu0 %v411
        %v457 = vpop.f32.mrf.mxu0
        %v458 = vadd.f32 %v308, %v457
        %459 = vmatmul.f32.gmra.mxu0 %v414
        %v460 = vpop.f32.mrf.mxu0
        %v461 = vadd.f32 %v309, %v460
        %462 = vmatmul.f32.gmra.mxu0 %v417
        %v463 = vpop.f32.mrf.mxu0
        %v464 = vadd.f32 %v310, %v463
        %465 = vmatmul.f32.gmra.mxu0 %v420
        %v466 = vpop.f32.mrf.mxu0
        %v467 = vadd.f32 %v311, %v466
        %468 = vmatmul.f32.gmra.mxu0 %v423
        %v469 = vpop.f32.mrf.mxu0
        %v470 = vadd.f32 %v312, %v469
        %471 = vdwg.mxu0
        %vm472 = vcmask 392192
        %v473 = vsel %vm472, %v455, -inf
        %474 = vmax.xlane.f32.xlu0 %v473
        %v475 = vpop.xlane.xlu0 %474
        %v476 = vsel %vm472, %v458, -inf
        %477 = vmax.xlane.f32.xlu0 %v476
        %v478 = vpop.xlane.xlu0 %477
        %v479 = vsel %vm472, %v461, -inf
        %480 = vmax.xlane.f32.xlu0 %v479
        %v481 = vpop.xlane.xlu0 %480
        %v482 = vsel %vm472, %v464, -inf
        %483 = vmax.xlane.f32.xlu0 %v482
        %v484 = vpop.xlane.xlu0 %483
        %v485 = vsel %vm472, %v467, -inf
        %486 = vmax.xlane.f32.xlu0 %v485
        %v487 = vpop.xlane.xlu0 %486
        %v488 = vsel %vm472, %v470, -inf
        %489 = vmax.xlane.f32.xlu0 %v488
        %v490 = vpop.xlane.xlu0 %489
        %v491 = vsub.f32 %v455, %v475
        %v492 = vsub.f32 %v458, %v478
        %v493 = vsub.f32 %v461, %v481
        %v494 = vsub.f32 %v464, %v484
        %v495 = vsub.f32 %v467, %v487
        %v496 = vsub.f32 %v470, %v490
        %v497 = vmul.f32 %v491, 1.442695
        %v498 = vpow.pop %v497
        %v499 = vmul.f32 %v492, 1.442695
        %v500 = vpow.pop %v499
        %v501 = vmul.f32 %v493, 1.442695
        %v502 = vpow.pop %v501
        %v503 = vmul.f32 %v494, 1.442695
        %v504 = vpow.pop %v503
        %v505 = vmul.f32 %v495, 1.442695
        %v506 = vpow.pop %v505
        %v507 = vmul.f32 %v496, 1.442695
        %v508 = vpow.pop %v507
        %v509 = vsel %vm472, %v498, 0.0
        %510 = vadd.xlane.f32.xlu0 %v509
        %v511 = vpop.xlane.xlu0 %510
        %v512 = vsel %vm472, %v500, 0.0
        %513 = vadd.xlane.f32.xlu0 %v512
        %v514 = vpop.xlane.xlu0 %513
        %v515 = vsel %vm472, %v502, 0.0
        %516 = vadd.xlane.f32.xlu0 %v515
        %v517 = vpop.xlane.xlu0 %516
        %v518 = vsel %vm472, %v504, 0.0
        %519 = vadd.xlane.f32.xlu0 %v518
        %v520 = vpop.xlane.xlu0 %519
        %v521 = vsel %vm472, %v506, 0.0
        %522 = vadd.xlane.f32.xlu0 %v521
        %v523 = vpop.xlane.xlu0 %522
        %v524 = vsel %vm472, %v508, 0.0
        %525 = vadd.xlane.f32.xlu0 %v524
        %v526 = vpop.xlane.xlu0 %525
        %v527 = vrcp.pop %v511
        %v528 = vmul.f32 %v511, %v527
        %v529 = vsub.f32 1.0, %v528
        %v530 = vmul.f32 %v527, %v529
        %v531 = vadd.f32 %v527, %v530
        %vm532 = vweird.f32 %v511
        %vm533 = vweird.f32 %v527
        %vm534 = vmor %vm532, %vm533
        %v535 = vsel %vm534, %v527, %v531
        %v536 = vand.u32 2147483647, %v511
        %vm537 = vcmp.eq.f32.partialorder %v536, 8.507059e+37
        %v538 = vand.u32 %v511, 2147483648
        %v539 = vor.u32 1.1754944e-38, %v538
        %v540 = vsel %vm537, %v539, %v535
        %v541 = vmul.f32 %v498, %v540
        %v542 = vrcp.pop %v514
        %v543 = vmul.f32 %v514, %v542
        %v544 = vsub.f32 1.0, %v543
        %v545 = vmul.f32 %v542, %v544
        %v546 = vadd.f32 %v542, %v545
        %vm547 = vweird.f32 %v514
        %vm548 = vweird.f32 %v542
        %vm549 = vmor %vm547, %vm548
        %v550 = vsel %vm549, %v542, %v546
        %v551 = vand.u32 2147483647, %v514
        %vm552 = vcmp.eq.f32.partialorder %v551, 8.507059e+37
        %v553 = vand.u32 %v514, 2147483648
        %v554 = vor.u32 1.1754944e-38, %v553
        %v555 = vsel %vm552, %v554, %v550
        %v556 = vmul.f32 %v500, %v555
        %v557 = vrcp.pop %v517
        %v558 = vmul.f32 %v517, %v557
        %v559 = vsub.f32 1.0, %v558
        %v560 = vmul.f32 %v557, %v559
        %v561 = vadd.f32 %v557, %v560
        %vm562 = vweird.f32 %v517
        %vm563 = vweird.f32 %v557
        %vm564 = vmor %vm562, %vm563
        %v565 = vsel %vm564, %v557, %v561
        %v566 = vand.u32 2147483647, %v517
        %vm567 = vcmp.eq.f32.partialorder %v566, 8.507059e+37
        %v568 = vand.u32 %v517, 2147483648
        %v569 = vor.u32 1.1754944e-38, %v568
        %v570 = vsel %vm567, %v569, %v565
        %v571 = vmul.f32 %v502, %v570
        %v572 = vrcp.pop %v520
        %v573 = vmul.f32 %v520, %v572
        %v574 = vsub.f32 1.0, %v573
        %v575 = vmul.f32 %v572, %v574
        %v576 = vadd.f32 %v572, %v575
        %vm577 = vweird.f32 %v520
        %vm578 = vweird.f32 %v572
        %vm579 = vmor %vm577, %vm578
        %v580 = vsel %vm579, %v572, %v576
        %v581 = vand.u32 2147483647, %v520
        %vm582 = vcmp.eq.f32.partialorder %v581, 8.507059e+37
        %v583 = vand.u32 %v520, 2147483648
        %v584 = vor.u32 1.1754944e-38, %v583
        %v585 = vsel %vm582, %v584, %v580
        %v586 = vmul.f32 %v504, %v585
        %v587 = vrcp.pop %v523
        %v588 = vmul.f32 %v523, %v587
        %v589 = vsub.f32 1.0, %v588
        %v590 = vmul.f32 %v587, %v589
        %v591 = vadd.f32 %v587, %v590
        %vm592 = vweird.f32 %v523
        %vm593 = vweird.f32 %v587
        %vm594 = vmor %vm592, %vm593
        %v595 = vsel %vm594, %v587, %v591
        %v596 = vand.u32 2147483647, %v523
        %vm597 = vcmp.eq.f32.partialorder %v596, 8.507059e+37
        %v598 = vand.u32 %v523, 2147483648
        %v599 = vor.u32 1.1754944e-38, %v598
        %v600 = vsel %vm597, %v599, %v595
        %v601 = vmul.f32 %v506, %v600
        %v602 = vrcp.pop %v526
        %v603 = vmul.f32 %v526, %v602
        %v604 = vsub.f32 1.0, %v603
        %v605 = vmul.f32 %v602, %v604
        %v606 = vadd.f32 %v602, %v605
        %vm607 = vweird.f32 %v526
        %vm608 = vweird.f32 %v602
        %vm609 = vmor %vm607, %vm608
        %v610 = vsel %vm609, %v602, %v606
        %v611 = vand.u32 2147483647, %v526
        %vm612 = vcmp.eq.f32.partialorder %v611, 8.507059e+37
        %v613 = vand.u32 %v526, 2147483648
        %v614 = vor.u32 1.1754944e-38, %v613
        %v615 = vsel %vm612, %v614, %v610
        %v616 = vmul.f32 %v508, %v615
        %617 = vrot.lane.b32.xlu0 %v365, 96
        %v618 = vpop.permute.xlu0 %617
        %619 = vrot.lane.b32.xlu0 %v368, 96
        %v620 = vpop.permute.xlu0 %619
        %621 = vrot.lane.b32.xlu0 %v371, 96
        %v622 = vpop.permute.xlu0 %621
        %623 = vrot.lane.b32.xlu0 %v374, 96
        %v624 = vpop.permute.xlu0 %623
        %625 = vrot.lane.b32.xlu0 %v377, 96
        %v626 = vpop.permute.xlu0 %625
        %627 = vrot.lane.b32.xlu0 %v380, 96
        %v628 = vpop.permute.xlu0 %627
        %v636 = vsel %vm472, %v541, 0
        %v639 = vsel %vm472, %v556, 0
        %v642 = vsel %vm472, %v571, 0
        %v645 = vsel %vm472, %v586, 0
        %v648 = vsel %vm472, %v601, 0
        %v651 = vsel %vm472, %v616, 0
        %653 = vmatpush.msra.mxu0 0.0
        %654 = vmatpush.msra.mxu0 0.0
        %655 = vmatpush.msra.mxu0 0.0
        %656 = vmatpush.msra.mxu0 0.0
        %657 = vmatpush.msra.mxu0 0.0
        %658 = vmatpush.msra.mxu0 0.0
        %659 = vmatpush.msra.mxu0 0.0
        %660 = vmatpush.msra.mxu0 0.0
        %661 = vmatpush.msra.mxu0 0.0
        %662 = vmatpush.msra.mxu0 0.0
        %663 = vmatpush.msra.mxu0 %v628
        %664 = vmatpush.msra.mxu0 %v626
        %665 = vmatpush.msra.mxu0 %v624
        %666 = vmatpush.msra.mxu0 %v622
        %667 = vmatpush.msra.mxu0 %v620
        %668 = vmatpush.msra.mxu0 %v618
        %669 = vmatmul.f32.gmra.mxu0 %v636
        %v670 = vpop.f32.mrf.mxu0
        %v671 = vadd.f32 0.0, %v670
        %672 = vmatmul.f32.gmra.mxu0 %v639
        %v673 = vpop.f32.mrf.mxu0
        %v674 = vadd.f32 0.0, %v673
        %675 = vmatmul.f32.gmra.mxu0 %v642
        %v676 = vpop.f32.mrf.mxu0
        %v677 = vadd.f32 0.0, %v676
        %678 = vmatmul.f32.gmra.mxu0 %v645
        %v679 = vpop.f32.mrf.mxu0
        %v680 = vadd.f32 0.0, %v679
        %681 = vmatmul.f32.gmra.mxu0 %v648
        %v682 = vpop.f32.mrf.mxu0
        %v683 = vadd.f32 0.0, %v682
        %684 = vmatmul.f32.gmra.mxu0 %v651
        %v685 = vpop.f32.mrf.mxu0
        %v686 = vadd.f32 0.0, %v685
        %687 = vdwg.mxu0
        %v688 = vld [vmem:[#allocation8] sm:$0xff]
        %689 = vrot.lane.b32.xlu0 %v382, 120
        %v690 = vpop.permute.xlu0 %689
        %691 = vrot.lane.b32.xlu0 %v383, 120
        %v692 = vpop.permute.xlu0 %691
        %693 = vrot.lane.b32.xlu0 %v384, 120
        %v694 = vpop.permute.xlu0 %693
        %695 = vrot.lane.b32.xlu0 %v385, 120
        %v696 = vpop.permute.xlu0 %695
        %697 = vrot.lane.b32.xlu0 %v386, 120
        %v698 = vpop.permute.xlu0 %697
        %699 = vrot.lane.b32.xlu0 %v387, 120
        %v700 = vpop.permute.xlu0 %699
        %701 = vrot.lane.b32.xlu0 %v365, 104
        %v702 = vpop.permute.xlu0 %701
        %703 = vrot.lane.b32.xlu0 %v368, 104
        %v704 = vpop.permute.xlu0 %703
        %705 = vrot.lane.b32.xlu0 %v371, 104
        %v706 = vpop.permute.xlu0 %705
        %707 = vrot.lane.b32.xlu0 %v374, 104
        %v708 = vpop.permute.xlu0 %707
        %709 = vrot.lane.b32.xlu0 %v377, 104
        %v710 = vpop.permute.xlu0 %709
        %711 = vrot.lane.b32.xlu0 %v380, 104
        %v712 = vpop.permute.xlu0 %711
        %v713 = vsel %vm406, %v690, 0
        %v715 = vsel %vm406, %v692, 0
        %v717 = vsel %vm406, %v694, 0
        %v719 = vsel %vm406, %v696, 0
        %v721 = vsel %vm406, %v698, 0
        %v723 = vsel %vm406, %v700, 0
        %v725 = vsel %vm406, %v702, 0
        %v727 = vsel %vm406, %v704, 0
        %v729 = vsel %vm406, %v706, 0
        %v731 = vsel %vm406, %v708, 0
        %v733 = vsel %vm406, %v710, 0
        %v735 = vsel %vm406, %v712, 0
        %737 = vmatpush.xpose.msra.mxu0 0.0
        %738 = vmatpush.xpose.msra.mxu0 0.0
        %739 = vmatpush.xpose.msra.mxu0 0.0
        %740 = vmatpush.xpose.msra.mxu0 0.0
        %741 = vmatpush.xpose.msra.mxu0 0.0
        %742 = vmatpush.xpose.msra.mxu0 0.0
        %743 = vmatpush.xpose.msra.mxu0 0.0
        %744 = vmatpush.xpose.msra.mxu0 0.0
        %745 = vmatpush.xpose.msra.mxu0 0.0
        %746 = vmatpush.xpose.msra.mxu0 0.0
        %747 = vmatpush.xpose.msra.mxu0 %v735
        %748 = vmatpush.xpose.msra.mxu0 %v733
        %749 = vmatpush.xpose.msra.mxu0 %v731
        %750 = vmatpush.xpose.msra.mxu0 %v729
        %751 = vmatpush.xpose.msra.mxu0 %v727
        %752 = vmatpush.xpose.msra.mxu0 %v725
        %753 = vmatmul.f32.gmra.mxu0 %v713
        %v754 = vpop.f32.mrf.mxu0
        %v755 = vadd.f32 %v307, %v754
        %756 = vmatmul.f32.gmra.mxu0 %v715
        %v757 = vpop.f32.mrf.mxu0
        %v758 = vadd.f32 %v308, %v757
        %759 = vmatmul.f32.gmra.mxu0 %v717
        %v760 = vpop.f32.mrf.mxu0
        %v761 = vadd.f32 %v309, %v760
        %762 = vmatmul.f32.gmra.mxu0 %v719
        %v763 = vpop.f32.mrf.mxu0
        %v764 = vadd.f32 %v310, %v763
        %765 = vmatmul.f32.gmra.mxu0 %v721
        %v766 = vpop.f32.mrf.mxu0
        %v767 = vadd.f32 %v311, %v766
        %768 = vmatmul.f32.gmra.mxu0 %v723
        %v769 = vpop.f32.mrf.mxu0
        %v770 = vadd.f32 %v312, %v769
        %771 = vdwg.mxu0
        %v772 = vsel %vm472, %v755, -inf
        %773 = vmax.xlane.f32.xlu0 %v772
        %v774 = vpop.xlane.xlu0 %773
        %v775 = vsel %vm472, %v758, -inf
        %776 = vmax.xlane.f32.xlu0 %v775
        %v777 = vpop.xlane.xlu0 %776
        %v778 = vsel %vm472, %v761, -inf
        %779 = vmax.xlane.f32.xlu0 %v778
        %v780 = vpop.xlane.xlu0 %779
        %v781 = vsel %vm472, %v764, -inf
        %782 = vmax.xlane.f32.xlu0 %v781
        %v783 = vpop.xlane.xlu0 %782
        %v784 = vsel %vm472, %v767, -inf
        %785 = vmax.xlane.f32.xlu0 %v784
        %v786 = vpop.xlane.xlu0 %785
        %v787 = vsel %vm472, %v770, -inf
        %788 = vmax.xlane.f32.xlu0 %v787
        %v789 = vpop.xlane.xlu0 %788
        %v790 = vsub.f32 %v755, %v774
        %v791 = vsub.f32 %v758, %v777
        %v792 = vsub.f32 %v761, %v780
        %v793 = vsub.f32 %v764, %v783
        %v794 = vsub.f32 %v767, %v786
        %v795 = vsub.f32 %v770, %v789
        %v796 = vmul.f32 %v790, 1.442695
        %v797 = vpow.pop %v796
        %v798 = vmul.f32 %v791, 1.442695
        %v799 = vpow.pop %v798
        %v800 = vmul.f32 %v792, 1.442695
        %v801 = vpow.pop %v800
        %v802 = vmul.f32 %v793, 1.442695
        %v803 = vpow.pop %v802
        %v804 = vmul.f32 %v794, 1.442695
        %v805 = vpow.pop %v804
        %v806 = vmul.f32 %v795, 1.442695
        %v807 = vpow.pop %v806
        %v808 = vsel %vm472, %v797, 0.0
        %809 = vadd.xlane.f32.xlu0 %v808
        %v810 = vpop.xlane.xlu0 %809
        %v811 = vsel %vm472, %v799, 0.0
        %812 = vadd.xlane.f32.xlu0 %v811
        %v813 = vpop.xlane.xlu0 %812
        %v814 = vsel %vm472, %v801, 0.0
        %815 = vadd.xlane.f32.xlu0 %v814
        %v816 = vpop.xlane.xlu0 %815
        %v817 = vsel %vm472, %v803, 0.0
        %818 = vadd.xlane.f32.xlu0 %v817
        %v819 = vpop.xlane.xlu0 %818
        %v820 = vsel %vm472, %v805, 0.0
        %821 = vadd.xlane.f32.xlu0 %v820
        %v822 = vpop.xlane.xlu0 %821
        %v823 = vsel %vm472, %v807, 0.0
        %824 = vadd.xlane.f32.xlu0 %v823
        %v825 = vpop.xlane.xlu0 %824
        %v826 = vrcp.pop %v810
        %v827 = vmul.f32 %v810, %v826
        %v828 = vsub.f32 1.0, %v827
        %v829 = vmul.f32 %v826, %v828
        %v830 = vadd.f32 %v826, %v829
        %vm831 = vweird.f32 %v810
        %vm832 = vweird.f32 %v826
        %vm833 = vmor %vm831, %vm832
        %v834 = vsel %vm833, %v826, %v830
        %v835 = vand.u32 2147483647, %v810
        %vm836 = vcmp.eq.f32.partialorder %v835, 8.507059e+37
        %v837 = vand.u32 %v810, 2147483648
        %v838 = vor.u32 1.1754944e-38, %v837
        %v839 = vsel %vm836, %v838, %v834
        %v840 = vmul.f32 %v797, %v839
        %v841 = vrcp.pop %v813
        %v842 = vmul.f32 %v813, %v841
        %v843 = vsub.f32 1.0, %v842
        %v844 = vmul.f32 %v841, %v843
        %v845 = vadd.f32 %v841, %v844
        %vm846 = vweird.f32 %v813
        %vm847 = vweird.f32 %v841
        %vm848 = vmor %vm846, %vm847
        %v849 = vsel %vm848, %v841, %v845
        %v850 = vand.u32 2147483647, %v813
        %vm851 = vcmp.eq.f32.partialorder %v850, 8.507059e+37
        %v852 = vand.u32 %v813, 2147483648
        %v853 = vor.u32 1.1754944e-38, %v852
        %v854 = vsel %vm851, %v853, %v849
        %v855 = vmul.f32 %v799, %v854
        %v856 = vrcp.pop %v816
        %v857 = vmul.f32 %v816, %v856
        %v858 = vsub.f32 1.0, %v857
        %v859 = vmul.f32 %v856, %v858
        %v860 = vadd.f32 %v856, %v859
        %vm861 = vweird.f32 %v816
        %vm862 = vweird.f32 %v856
        %vm863 = vmor %vm861, %vm862
        %v864 = vsel %vm863, %v856, %v860
        %v865 = vand.u32 2147483647, %v816
        %vm866 = vcmp.eq.f32.partialorder %v865, 8.507059e+37
        %v867 = vand.u32 %v816, 2147483648
        %v868 = vor.u32 1.1754944e-38, %v867
        %v869 = vsel %vm866, %v868, %v864
        %v870 = vmul.f32 %v801, %v869
        %v871 = vrcp.pop %v819
        %v872 = vmul.f32 %v819, %v871
        %v873 = vsub.f32 1.0, %v872
        %v874 = vmul.f32 %v871, %v873
        %v875 = vadd.f32 %v871, %v874
        %vm876 = vweird.f32 %v819
        %vm877 = vweird.f32 %v871
        %vm878 = vmor %vm876, %vm877
        %v879 = vsel %vm878, %v871, %v875
        %v880 = vand.u32 2147483647, %v819
        %vm881 = vcmp.eq.f32.partialorder %v880, 8.507059e+37
        %v882 = vand.u32 %v819, 2147483648
        %v883 = vor.u32 1.1754944e-38, %v882
        %v884 = vsel %vm881, %v883, %v879
        %v885 = vmul.f32 %v803, %v884
        %v886 = vrcp.pop %v822
        %v887 = vmul.f32 %v822, %v886
        %v888 = vsub.f32 1.0, %v887
        %v889 = vmul.f32 %v886, %v888
        %v890 = vadd.f32 %v886, %v889
        %vm891 = vweird.f32 %v822
        %vm892 = vweird.f32 %v886
        %vm893 = vmor %vm891, %vm892
        %v894 = vsel %vm893, %v886, %v890
        %v895 = vand.u32 2147483647, %v822
        %vm896 = vcmp.eq.f32.partialorder %v895, 8.507059e+37
        %v897 = vand.u32 %v822, 2147483648
        %v898 = vor.u32 1.1754944e-38, %v897
        %v899 = vsel %vm896, %v898, %v894
        %v900 = vmul.f32 %v805, %v899
        %v901 = vrcp.pop %v825
        %v902 = vmul.f32 %v825, %v901
        %v903 = vsub.f32 1.0, %v902
        %v904 = vmul.f32 %v901, %v903
        %v905 = vadd.f32 %v901, %v904
        %vm906 = vweird.f32 %v825
        %vm907 = vweird.f32 %v901
        %vm908 = vmor %vm906, %vm907
        %v909 = vsel %vm908, %v901, %v905
        %v910 = vand.u32 2147483647, %v825
        %vm911 = vcmp.eq.f32.partialorder %v910, 8.507059e+37
        %v912 = vand.u32 %v825, 2147483648
        %v913 = vor.u32 1.1754944e-38, %v912
        %v914 = vsel %vm911, %v913, %v909
        %v915 = vmul.f32 %v807, %v914
        %916 = vrot.lane.b32.xlu0 %v365, 88
        %v917 = vpop.permute.xlu0 %916
        %918 = vrot.lane.b32.xlu0 %v368, 88
        %v919 = vpop.permute.xlu0 %918
        %920 = vrot.lane.b32.xlu0 %v371, 88
        %v921 = vpop.permute.xlu0 %920
        %922 = vrot.lane.b32.xlu0 %v374, 88
        %v923 = vpop.permute.xlu0 %922
        %924 = vrot.lane.b32.xlu0 %v377, 88
        %v925 = vpop.permute.xlu0 %924
        %926 = vrot.lane.b32.xlu0 %v380, 88
        %v927 = vpop.permute.xlu0 %926
        %v935 = vsel %vm472, %v840, 0
        %v938 = vsel %vm472, %v855, 0
        %v941 = vsel %vm472, %v870, 0
        %v944 = vsel %vm472, %v885, 0
        %v947 = vsel %vm472, %v900, 0
        %v950 = vsel %vm472, %v915, 0
        %952 = vmatpush.msra.mxu0 0.0
        %953 = vmatpush.msra.mxu0 0.0
        %954 = vmatpush.msra.mxu0 0.0
        %955 = vmatpush.msra.mxu0 0.0
        %956 = vmatpush.msra.mxu0 0.0
        %957 = vmatpush.msra.mxu0 0.0
        %958 = vmatpush.msra.mxu0 0.0
        %959 = vmatpush.msra.mxu0 0.0
        %960 = vmatpush.msra.mxu0 0.0
        %961 = vmatpush.msra.mxu0 0.0
        %962 = vmatpush.msra.mxu0 %v927
        %963 = vmatpush.msra.mxu0 %v925
        %964 = vmatpush.msra.mxu0 %v923
        %965 = vmatpush.msra.mxu0 %v921
        %966 = vmatpush.msra.mxu0 %v919
        %967 = vmatpush.msra.mxu0 %v917
        %968 = vmatmul.f32.gmra.mxu0 %v935
        %v969 = vpop.f32.mrf.mxu0
        %v970 = vadd.f32 0.0, %v969
        %971 = vmatmul.f32.gmra.mxu0 %v938
        %v972 = vpop.f32.mrf.mxu0
        %v973 = vadd.f32 0.0, %v972
        %974 = vmatmul.f32.gmra.mxu0 %v941
        %v975 = vpop.f32.mrf.mxu0
        %v976 = vadd.f32 0.0, %v975
        %977 = vmatmul.f32.gmra.mxu0 %v944
        %v978 = vpop.f32.mrf.mxu0
        %v979 = vadd.f32 0.0, %v978
        %980 = vmatmul.f32.gmra.mxu0 %v947
        %v981 = vpop.f32.mrf.mxu0
        %v982 = vadd.f32 0.0, %v981
        %983 = vmatmul.f32.gmra.mxu0 %v950
        %v984 = vpop.f32.mrf.mxu0
        %v985 = vadd.f32 0.0, %v984
        %986 = vdwg.mxu0
        %988 = vrot.lane.b32.xlu0 %v314, 80
        %v989 = vpop.permute.xlu0 %988
        %v992 = vsel %vm406, %v970, 0
        %v995 = vsel %vm406, %v973, 0
        %v998 = vsel %vm406, %v976, 0
        %v1001 = vsel %vm406, %v979, 0
        %v1004 = vsel %vm406, %v982, 0
        %v1007 = vsel %vm406, %v985, 0
        %1009 = vmatpush.msra.mxu0 0.0
        %1010 = vmatpush.msra.mxu0 0.0
        %1011 = vmatpush.msra.mxu0 0.0
        %1012 = vmatpush.msra.mxu0 0.0
        %1013 = vmatpush.msra.mxu0 0.0
        %1014 = vmatpush.msra.mxu0 0.0
        %1015 = vmatpush.msra.mxu0 0.0
        %1016 = vmatpush.msra.mxu0 0.0
        %1017 = vmatpush.msra.mxu0 0.0
        %1018 = vmatpush.msra.mxu0 0.0
        %1019 = vmatpush.msra.mxu0 0.0
        %1020 = vmatpush.msra.mxu0 0.0
        %1021 = vmatpush.msra.mxu0 0.0
        %1022 = vmatpush.msra.mxu0 0.0
        %1023 = vmatpush.msra.mxu0 0.0
        %1024 = vmatpush.msra.mxu0 %v989
        %1025 = vmatmul.f32.gmra.mxu0 %v992
        %v1026 = vpop.f32.mrf.mxu0
        %v1027 = vadd.f32 0.0, %v1026
        %1028 = vmatmul.f32.gmra.mxu0 %v995
        %v1029 = vpop.f32.mrf.mxu0
        %v1030 = vadd.f32 0.0, %v1029
        %1031 = vmatmul.f32.gmra.mxu0 %v998
        %v1032 = vpop.f32.mrf.mxu0
        %v1033 = vadd.f32 0.0, %v1032
        %1034 = vmatmul.f32.gmra.mxu0 %v1001
        %v1035 = vpop.f32.mrf.mxu0
        %v1036 = vadd.f32 0.0, %v1035
        %1037 = vmatmul.f32.gmra.mxu0 %v1004
        %v1038 = vpop.f32.mrf.mxu0
        %v1039 = vadd.f32 0.0, %v1038
        %1040 = vmatmul.f32.gmra.mxu0 %v1007
        %v1041 = vpop.f32.mrf.mxu0
        %v1042 = vadd.f32 0.0, %v1041
        %1043 = vdwg.mxu0
        %1045 = vrot.lane.b32.xlu0 %v688, 80
        %v1046 = vpop.permute.xlu0 %1045
        %v1049 = vsel %vm406, %v671, 0
        %v1052 = vsel %vm406, %v674, 0
        %v1055 = vsel %vm406, %v677, 0
        %v1058 = vsel %vm406, %v680, 0
        %v1061 = vsel %vm406, %v683, 0
        %v1064 = vsel %vm406, %v686, 0
        %1066 = vmatpush.msra.mxu0 0.0
        %1067 = vmatpush.msra.mxu0 0.0
        %1068 = vmatpush.msra.mxu0 0.0
        %1069 = vmatpush.msra.mxu0 0.0
        %1070 = vmatpush.msra.mxu0 0.0
        %1071 = vmatpush.msra.mxu0 0.0
        %1072 = vmatpush.msra.mxu0 0.0
        %1073 = vmatpush.msra.mxu0 0.0
        %1074 = vmatpush.msra.mxu0 0.0
        %1075 = vmatpush.msra.mxu0 0.0
        %1076 = vmatpush.msra.mxu0 0.0
        %1077 = vmatpush.msra.mxu0 0.0
        %1078 = vmatpush.msra.mxu0 0.0
        %1079 = vmatpush.msra.mxu0 0.0
        %1080 = vmatpush.msra.mxu0 0.0
        %1081 = vmatpush.msra.mxu0 %v1046
        %1082 = vmatmul.f32.gmra.mxu0 %v1049
        %v1083 = vpop.f32.mrf.mxu0
        %v1084 = vadd.f32 %v1027, %v1083
        %1085 = vmatmul.f32.gmra.mxu0 %v1052
        %v1086 = vpop.f32.mrf.mxu0
        %v1087 = vadd.f32 %v1030, %v1086
        %1088 = vmatmul.f32.gmra.mxu0 %v1055
        %v1089 = vpop.f32.mrf.mxu0
        %v1090 = vadd.f32 %v1033, %v1089
        %1091 = vmatmul.f32.gmra.mxu0 %v1058
        %v1092 = vpop.f32.mrf.mxu0
        %v1093 = vadd.f32 %v1036, %v1092
        %1094 = vmatmul.f32.gmra.mxu0 %v1061
        %v1095 = vpop.f32.mrf.mxu0
        %v1096 = vadd.f32 %v1039, %v1095
        %1097 = vmatmul.f32.gmra.mxu0 %v1064
        %v1098 = vpop.f32.mrf.mxu0
        %v1099 = vadd.f32 %v1042, %v1098
        %1100 = vdwg.mxu0
        %v1101 = vperm.slane %v320, 0
        %v1102 = vadd.f32 %v1084, %v1101
        %v1103 = vadd.f32 %v1087, %v1101
        %v1104 = vadd.f32 %v1090, %v1101
        %v1105 = vadd.f32 %v1093, %v1101
        %v1106 = vadd.f32 %v1096, %v1101
        %v1107 = vadd.f32 %v1099, %v1101
        %v1108 = vadd.f32 %v301, %v1102
        %v1109 = vadd.f32 %v302, %v1103
        %v1110 = vadd.f32 %v303, %v1104
        %v1111 = vadd.f32 %v304, %v1105
        %v1112 = vadd.f32 %v305, %v1106
        %v1113 = vadd.f32 %v306, %v1107
        %v1114 = vsel %vm328, %v1108, 0.0
        %1115 = vadd.xlane.f32.xlu0 %v1114
        %v1116 = vpop.xlane.xlu0 %1115
        %v1117 = vsel %vm328, %v1109, 0.0
        %1118 = vadd.xlane.f32.xlu0 %v1117
        %v1119 = vpop.xlane.xlu0 %1118
        %v1120 = vsel %vm328, %v1110, 0.0
        %1121 = vadd.xlane.f32.xlu0 %v1120
        %v1122 = vpop.xlane.xlu0 %1121
        %v1123 = vsel %vm328, %v1111, 0.0
        %1124 = vadd.xlane.f32.xlu0 %v1123
        %v1125 = vpop.xlane.xlu0 %1124
        %v1126 = vsel %vm328, %v1112, 0.0
        %1127 = vadd.xlane.f32.xlu0 %v1126
        %v1128 = vpop.xlane.xlu0 %1127
        %v1129 = vsel %vm328, %v1113, 0.0
        %1130 = vadd.xlane.f32.xlu0 %v1129
        %v1131 = vpop.xlane.xlu0 %1130
        %v1132 = vrcp.pop 16.0
        %v1133 = vmul.f32 16.0, %v1132
        %v1134 = vsub.f32 1.0, %v1133
        %v1135 = vmul.f32 %v1132, %v1134
        %v1136 = vadd.f32 %v1132, %v1135
        %vm1137 = vweird.f32 %v1132
        %v1138 = vsel %vm1137, %v1132, %v1136
        %v1139 = vmul.f32 %v1116, %v1138
        %v1140 = vmul.f32 %v1119, %v1138
        %v1141 = vmul.f32 %v1122, %v1138
        %v1142 = vmul.f32 %v1125, %v1138
        %v1143 = vmul.f32 %v1128, %v1138
        %v1144 = vmul.f32 %v1131, %v1138
        %v1145 = vsub.f32 %v1108, %v1139
        %v1146 = vsub.f32 %v1109, %v1140
        %v1147 = vsub.f32 %v1110, %v1141
        %v1148 = vsub.f32 %v1111, %v1142
        %v1149 = vsub.f32 %v1112, %v1143
        %v1150 = vsub.f32 %v1113, %v1144
        %v1151 = vmul.f32 %v1145, %v1145
        %v1152 = vmul.f32 %v1146, %v1146
        %v1153 = vmul.f32 %v1147, %v1147
        %v1154 = vmul.f32 %v1148, %v1148
        %v1155 = vmul.f32 %v1149, %v1149
        %v1156 = vmul.f32 %v1150, %v1150
        %v1157 = vsel %vm328, %v1151, 0.0
        %1158 = vadd.xlane.f32.xlu0 %v1157
        %v1159 = vpop.xlane.xlu0 %1158
        %v1160 = vsel %vm328, %v1152, 0.0
        %1161 = vadd.xlane.f32.xlu0 %v1160
        %v1162 = vpop.xlane.xlu0 %1161
        %v1163 = vsel %vm328, %v1153, 0.0
        %1164 = vadd.xlane.f32.xlu0 %v1163
        %v1165 = vpop.xlane.xlu0 %1164
        %v1166 = vsel %vm328, %v1154, 0.0
        %1167 = vadd.xlane.f32.xlu0 %v1166
        %v1168 = vpop.xlane.xlu0 %1167
        %v1169 = vsel %vm328, %v1155, 0.0
        %1170 = vadd.xlane.f32.xlu0 %v1169
        %v1171 = vpop.xlane.xlu0 %1170
        %v1172 = vsel %vm328, %v1156, 0.0
        %1173 = vadd.xlane.f32.xlu0 %v1172
        %v1174 = vpop.xlane.xlu0 %1173
        %v1175 = vmul.f32 %v1159, %v1138
        %v1176 = vmul.f32 %v1162, %v1138
        %v1177 = vmul.f32 %v1165, %v1138
        %v1178 = vmul.f32 %v1168, %v1138
        %v1179 = vmul.f32 %v1171, %v1138
        %v1180 = vmul.f32 %v1174, %v1138
        %v1181 = vadd.f32 %v1175, 1e-05
        %v1182 = vadd.f32 %v1176, 1e-05
        %v1183 = vadd.f32 %v1177, 1e-05
        %v1184 = vadd.f32 %v1178, 1e-05
        %v1185 = vadd.f32 %v1179, 1e-05
        %v1186 = vadd.f32 %v1180, 1e-05
        %v1187 = vrsqrt.pop %v1181
        %v1188 = vmul.f32 %v1187, %v1181
        %v1189 = vmul.f32 %v1188, %v1187
        %v1190 = vmul.f32 0.5, %v1189
        %v1191 = vsub.f32 1.5, %v1190
        %v1192 = vmul.f32 %v1187, %v1191
        %vm1193 = vweird.f32 %v1181
        %vm1194 = vweird.f32 %v1187
        %vm1195 = vmor %vm1193, %vm1194
        %v1196 = vsel %vm1195, %v1187, %v1192
        %v1197 = vrsqrt.pop %v1182
        %v1198 = vmul.f32 %v1197, %v1182
        %v1199 = vmul.f32 %v1198, %v1197
        %v1200 = vmul.f32 0.5, %v1199
        %v1201 = vsub.f32 1.5, %v1200
        %v1202 = vmul.f32 %v1197, %v1201
        %vm1203 = vweird.f32 %v1182
        %vm1204 = vweird.f32 %v1197
        %vm1205 = vmor %vm1203, %vm1204
        %v1206 = vsel %vm1205, %v1197, %v1202
        %v1207 = vrsqrt.pop %v1183
        %v1208 = vmul.f32 %v1207, %v1183
        %v1209 = vmul.f32 %v1208, %v1207
        %v1210 = vmul.f32 0.5, %v1209
        %v1211 = vsub.f32 1.5, %v1210
        %v1212 = vmul.f32 %v1207, %v1211
        %vm1213 = vweird.f32 %v1183
        %vm1214 = vweird.f32 %v1207
        %vm1215 = vmor %vm1213, %vm1214
        %v1216 = vsel %vm1215, %v1207, %v1212
        %v1217 = vrsqrt.pop %v1184
        %v1218 = vmul.f32 %v1217, %v1184
        %v1219 = vmul.f32 %v1218, %v1217
        %v1220 = vmul.f32 0.5, %v1219
        %v1221 = vsub.f32 1.5, %v1220
        %v1222 = vmul.f32 %v1217, %v1221
        %vm1223 = vweird.f32 %v1184
        %vm1224 = vweird.f32 %v1217
        %vm1225 = vmor %vm1223, %vm1224
        %v1226 = vsel %vm1225, %v1217, %v1222
        %v1227 = vrsqrt.pop %v1185
        %v1228 = vmul.f32 %v1227, %v1185
        %v1229 = vmul.f32 %v1228, %v1227
        %v1230 = vmul.f32 0.5, %v1229
        %v1231 = vsub.f32 1.5, %v1230
        %v1232 = vmul.f32 %v1227, %v1231
        %vm1233 = vweird.f32 %v1185
        %vm1234 = vweird.f32 %v1227
        %vm1235 = vmor %vm1233, %vm1234
        %v1236 = vsel %vm1235, %v1227, %v1232
        %v1237 = vrsqrt.pop %v1186
        %v1238 = vmul.f32 %v1237, %v1186
        %v1239 = vmul.f32 %v1238, %v1237
        %v1240 = vmul.f32 0.5, %v1239
        %v1241 = vsub.f32 1.5, %v1240
        %v1242 = vmul.f32 %v1237, %v1241
        %vm1243 = vweird.f32 %v1186
        %vm1244 = vweird.f32 %v1237
        %vm1245 = vmor %vm1243, %vm1244
        %v1246 = vsel %vm1245, %v1237, %v1242
        %v1247 = vmul.f32 %v1145, %v1196
        %v1248 = vmul.f32 %v1146, %v1206
        %v1249 = vmul.f32 %v1147, %v1216
        %v1250 = vmul.f32 %v1148, %v1226
        %v1251 = vmul.f32 %v1149, %v1236
        %v1252 = vmul.f32 %v1150, %v1246
        %v1253 = vperm.slane %v323, 0
        %v1254 = vmul.f32 %v1247, %v1253
        %v1255 = vmul.f32 %v1248, %v1253
        %v1256 = vmul.f32 %v1249, %v1253
        %v1257 = vmul.f32 %v1250, %v1253
        %v1258 = vmul.f32 %v1251, %v1253
        %v1259 = vmul.f32 %v1252, %v1253
        %v1260 = vperm.slane %v324, 0
        %v1261 = vadd.f32 %v1254, %v1260
        %v1262 = vadd.f32 %v1255, %v1260
        %v1263 = vadd.f32 %v1256, %v1260
        %v1264 = vadd.f32 %v1257, %v1260
        %v1265 = vadd.f32 %v1258, %v1260
        %v1266 = vadd.f32 %v1259, %v1260
        %v1267 = vperm.slane %v321, 0
        %1269 = vrot.lane.b32.xlu0 %v313, 64
        %v1270 = vpop.permute.xlu0 %1269
        %1271 = vrot.lane.b32.xlu0 %v314, 64
        %v1272 = vpop.permute.xlu0 %1271
        %v1276 = vsel %vm328, %v1261, 0
        %v1279 = vsel %vm328, %v1262, 0
        %v1282 = vsel %vm328, %v1263, 0
        %v1285 = vsel %vm328, %v1264, 0
        %v1288 = vsel %vm328, %v1265, 0
        %v1291 = vsel %vm328, %v1266, 0
        %1293 = vmatpush.msra.mxu0 0.0
        %1294 = vmatpush.msra.mxu0 0.0
        %1295 = vmatpush.msra.mxu0 0.0
        %1296 = vmatpush.msra.mxu0 0.0
        %1297 = vmatpush.msra.mxu0 0.0
        %1298 = vmatpush.msra.mxu0 0.0
        %1299 = vmatpush.msra.mxu0 0.0
        %1300 = vmatpush.msra.mxu0 0.0
        %1301 = vmatpush.msra.mxu0 0.0
        %1302 = vmatpush.msra.mxu0 0.0
        %1303 = vmatpush.msra.mxu0 0.0
        %1304 = vmatpush.msra.mxu0 0.0
        %1305 = vmatpush.msra.mxu0 0.0
        %1306 = vmatpush.msra.mxu0 0.0
        %1307 = vmatpush.msra.mxu0 %v1272
        %1308 = vmatpush.msra.mxu0 %v1270
        %1309 = vmatmul.f32.gmra.mxu0 %v1276
        %v1310 = vpop.f32.mrf.mxu0
        %v1311 = vadd.f32 %v1267, %v1310
        %1312 = vmatmul.f32.gmra.mxu0 %v1279
        %v1313 = vpop.f32.mrf.mxu0
        %v1314 = vadd.f32 %v1267, %v1313
        %1315 = vmatmul.f32.gmra.mxu0 %v1282
        %v1316 = vpop.f32.mrf.mxu0
        %v1317 = vadd.f32 %v1267, %v1316
        %1318 = vmatmul.f32.gmra.mxu0 %v1285
        %v1319 = vpop.f32.mrf.mxu0
        %v1320 = vadd.f32 %v1267, %v1319
        %1321 = vmatmul.f32.gmra.mxu0 %v1288
        %v1322 = vpop.f32.mrf.mxu0
        %v1323 = vadd.f32 %v1267, %v1322
        %1324 = vmatmul.f32.gmra.mxu0 %v1291
        %v1325 = vpop.f32.mrf.mxu0
        %v1326 = vadd.f32 %v1267, %v1325
        %1327 = vdwg.mxu0
        %v1328 = vmax.f32 %v1311, 0.0
        %v1329 = vmax.f32 %v1314, 0.0
        %v1330 = vmax.f32 %v1317, 0.0
        %v1331 = vmax.f32 %v1320, 0.0
        %v1332 = vmax.f32 %v1323, 0.0
        %v1333 = vmax.f32 %v1326, 0.0
        %v1334 = vperm.slane %v322, 0
        %vm1335 = vcmask 261120
        %v1337 = vsel %vm1335, %v1328, 0
        %v1340 = vsel %vm1335, %v1329, 0
        %v1343 = vsel %vm1335, %v1330, 0
        %v1346 = vsel %vm1335, %v1331, 0
        %v1349 = vsel %vm1335, %v1332, 0
        %v1352 = vsel %vm1335, %v1333, 0
        %1354 = vmatpush.msra.mxu0 0.0
        %1355 = vmatpush.msra.mxu0 0.0
        %1356 = vmatpush.msra.mxu0 0.0
        %1357 = vmatpush.msra.mxu0 0.0
        %1358 = vmatpush.msra.mxu0 0.0
        %1359 = vmatpush.msra.mxu0 0.0
        %1360 = vmatpush.msra.mxu0 0.0
        %1361 = vmatpush.msra.mxu0 0.0
        %1362 = vmatpush.msra.mxu0 0.0
        %1363 = vmatpush.msra.mxu0 0.0
        %1364 = vmatpush.msra.mxu0 0.0
        %1365 = vmatpush.msra.mxu0 0.0
        %1366 = vmatpush.msra.mxu0 %v318
        %1367 = vmatpush.msra.mxu0 %v317
        %1368 = vmatpush.msra.mxu0 %v316
        %1369 = vmatpush.msra.mxu0 %v315
        %1370 = vmatmul.f32.gmra.mxu0 %v1337
        %v1371 = vpop.f32.mrf.mxu0
        %v1372 = vadd.f32 %v1334, %v1371
        %1373 = vmatmul.f32.gmra.mxu0 %v1340
        %v1374 = vpop.f32.mrf.mxu0
        %v1375 = vadd.f32 %v1334, %v1374
        %1376 = vmatmul.f32.gmra.mxu0 %v1343
        %v1377 = vpop.f32.mrf.mxu0
        %v1378 = vadd.f32 %v1334, %v1377
        %1379 = vmatmul.f32.gmra.mxu0 %v1346
        %v1380 = vpop.f32.mrf.mxu0
        %v1381 = vadd.f32 %v1334, %v1380
        %1382 = vmatmul.f32.gmra.mxu0 %v1349
        %v1383 = vpop.f32.mrf.mxu0
        %v1384 = vadd.f32 %v1334, %v1383
        %1385 = vmatmul.f32.gmra.mxu0 %v1352
        %v1386 = vpop.f32.mrf.mxu0
        %v1387 = vadd.f32 %v1334, %v1386
        %1388 = vdwg.mxu0
        %v1389 = vadd.f32 %v1261, %v1372
        %v1390 = vadd.f32 %v1262, %v1375
        %v1391 = vadd.f32 %v1263, %v1378
        %v1392 = vadd.f32 %v1264, %v1381
        %v1393 = vadd.f32 %v1265, %v1384
        %v1394 = vadd.f32 %v1266, %v1387
        %v1395 = vsel %vm328, %v1389, 0.0
        %1396 = vadd.xlane.f32.xlu0 %v1395
        %v1397 = vpop.xlane.xlu0 %1396
        %v1398 = vsel %vm328, %v1390, 0.0
        %1399 = vadd.xlane.f32.xlu0 %v1398
        %v1400 = vpop.xlane.xlu0 %1399
        %v1401 = vsel %vm328, %v1391, 0.0
        %1402 = vadd.xlane.f32.xlu0 %v1401
        %v1403 = vpop.xlane.xlu0 %1402
        %v1404 = vsel %vm328, %v1392, 0.0
        %1405 = vadd.xlane.f32.xlu0 %v1404
        %v1406 = vpop.xlane.xlu0 %1405
        %v1407 = vsel %vm328, %v1393, 0.0
        %1408 = vadd.xlane.f32.xlu0 %v1407
        %v1409 = vpop.xlane.xlu0 %1408
        %v1410 = vsel %vm328, %v1394, 0.0
        %1411 = vadd.xlane.f32.xlu0 %v1410
        %v1412 = vpop.xlane.xlu0 %1411
        %v1413 = vmul.f32 %v1397, %v1138
        %v1414 = vmul.f32 %v1400, %v1138
        %v1415 = vmul.f32 %v1403, %v1138
        %v1416 = vmul.f32 %v1406, %v1138
        %v1417 = vmul.f32 %v1409, %v1138
        %v1418 = vmul.f32 %v1412, %v1138
        %v1419 = vsub.f32 %v1389, %v1413
        %v1420 = vsub.f32 %v1390, %v1414
        %v1421 = vsub.f32 %v1391, %v1415
        %v1422 = vsub.f32 %v1392, %v1416
        %v1423 = vsub.f32 %v1393, %v1417
        %v1424 = vsub.f32 %v1394, %v1418
        %v1425 = vmul.f32 %v1419, %v1419
        %v1426 = vmul.f32 %v1420, %v1420
        %v1427 = vmul.f32 %v1421, %v1421
        %v1428 = vmul.f32 %v1422, %v1422
        %v1429 = vmul.f32 %v1423, %v1423
        %v1430 = vmul.f32 %v1424, %v1424
        %v1431 = vsel %vm328, %v1425, 0.0
        %1432 = vadd.xlane.f32.xlu0 %v1431
        %v1433 = vpop.xlane.xlu0 %1432
        %v1434 = vsel %vm328, %v1426, 0.0
        %1435 = vadd.xlane.f32.xlu0 %v1434
        %v1436 = vpop.xlane.xlu0 %1435
        %v1437 = vsel %vm328, %v1427, 0.0
        %1438 = vadd.xlane.f32.xlu0 %v1437
        %v1439 = vpop.xlane.xlu0 %1438
        %v1440 = vsel %vm328, %v1428, 0.0
        %1441 = vadd.xlane.f32.xlu0 %v1440
        %v1442 = vpop.xlane.xlu0 %1441
        %v1443 = vsel %vm328, %v1429, 0.0
        %1444 = vadd.xlane.f32.xlu0 %v1443
        %v1445 = vpop.xlane.xlu0 %1444
        %v1446 = vsel %vm328, %v1430, 0.0
        %1447 = vadd.xlane.f32.xlu0 %v1446
        %v1448 = vpop.xlane.xlu0 %1447
        %v1449 = vmul.f32 %v1433, %v1138
        %v1450 = vmul.f32 %v1436, %v1138
        %v1451 = vmul.f32 %v1439, %v1138
        %v1452 = vmul.f32 %v1442, %v1138
        %v1453 = vmul.f32 %v1445, %v1138
        %v1454 = vmul.f32 %v1448, %v1138
        %v1455 = vadd.f32 %v1449, 1e-05
        %v1456 = vadd.f32 %v1450, 1e-05
        %v1457 = vadd.f32 %v1451, 1e-05
        %v1458 = vadd.f32 %v1452, 1e-05
        %v1459 = vadd.f32 %v1453, 1e-05
        %v1460 = vadd.f32 %v1454, 1e-05
        %v1461 = vrsqrt.pop %v1455
        %v1462 = vmul.f32 %v1461, %v1455
        %v1463 = vmul.f32 %v1462, %v1461
        %v1464 = vmul.f32 0.5, %v1463
        %v1465 = vsub.f32 1.5, %v1464
        %v1466 = vmul.f32 %v1461, %v1465
        %vm1467 = vweird.f32 %v1455
        %vm1468 = vweird.f32 %v1461
        %vm1469 = vmor %vm1467, %vm1468
        %v1470 = vsel %vm1469, %v1461, %v1466
        %v1471 = vrsqrt.pop %v1456
        %v1472 = vmul.f32 %v1471, %v1456
        %v1473 = vmul.f32 %v1472, %v1471
        %v1474 = vmul.f32 0.5, %v1473
        %v1475 = vsub.f32 1.5, %v1474
        %v1476 = vmul.f32 %v1471, %v1475
        %vm1477 = vweird.f32 %v1456
        %vm1478 = vweird.f32 %v1471
        %vm1479 = vmor %vm1477, %vm1478
        %v1480 = vsel %vm1479, %v1471, %v1476
        %v1481 = vrsqrt.pop %v1457
        %v1482 = vmul.f32 %v1481, %v1457
        %v1483 = vmul.f32 %v1482, %v1481
        %v1484 = vmul.f32 0.5, %v1483
        %v1485 = vsub.f32 1.5, %v1484
        %v1486 = vmul.f32 %v1481, %v1485
        %vm1487 = vweird.f32 %v1457
        %vm1488 = vweird.f32 %v1481
        %vm1489 = vmor %vm1487, %vm1488
        %v1490 = vsel %vm1489, %v1481, %v1486
        %v1491 = vrsqrt.pop %v1458
        %v1492 = vmul.f32 %v1491, %v1458
        %v1493 = vmul.f32 %v1492, %v1491
        %v1494 = vmul.f32 0.5, %v1493
        %v1495 = vsub.f32 1.5, %v1494
        %v1496 = vmul.f32 %v1491, %v1495
        %vm1497 = vweird.f32 %v1458
        %vm1498 = vweird.f32 %v1491
        %vm1499 = vmor %vm1497, %vm1498
        %v1500 = vsel %vm1499, %v1491, %v1496
        %v1501 = vrsqrt.pop %v1459
        %v1502 = vmul.f32 %v1501, %v1459
        %v1503 = vmul.f32 %v1502, %v1501
        %v1504 = vmul.f32 0.5, %v1503
        %v1505 = vsub.f32 1.5, %v1504
        %v1506 = vmul.f32 %v1501, %v1505
        %vm1507 = vweird.f32 %v1459
        %vm1508 = vweird.f32 %v1501
        %vm1509 = vmor %vm1507, %vm1508
        %v1510 = vsel %vm1509, %v1501, %v1506
        %v1511 = vrsqrt.pop %v1460
        %v1512 = vmul.f32 %v1511, %v1460
        %v1513 = vmul.f32 %v1512, %v1511
        %v1514 = vmul.f32 0.5, %v1513
        %v1515 = vsub.f32 1.5, %v1514
        %v1516 = vmul.f32 %v1511, %v1515
        %vm1517 = vweird.f32 %v1460
        %vm1518 = vweird.f32 %v1511
        %vm1519 = vmor %vm1517, %vm1518
        %v1520 = vsel %vm1519, %v1511, %v1516
        %v1521 = vmul.f32 %v1419, %v1470
        %v1522 = vmul.f32 %v1420, %v1480
        %v1523 = vmul.f32 %v1421, %v1490
        %v1524 = vmul.f32 %v1422, %v1500
        %v1525 = vmul.f32 %v1423, %v1510
        %v1526 = vmul.f32 %v1424, %v1520
        %v1527 = vperm.slane %v325, 0
        %v1528 = vmul.f32 %v1521, %v1527
        %v1529 = vmul.f32 %v1522, %v1527
        %v1530 = vmul.f32 %v1523, %v1527
        %v1531 = vmul.f32 %v1524, %v1527
        %v1532 = vmul.f32 %v1525, %v1527
        %v1533 = vmul.f32 %v1526, %v1527
        %v1534 = vperm.slane %v326, 0
        %v1535 = vadd.f32 %v1528, %v1534
        %v1536 = vadd.f32 %v1529, %v1534
        %v1537 = vadd.f32 %v1530, %v1534
        %v1538 = vadd.f32 %v1531, %v1534
        %v1539 = vadd.f32 %v1532, %v1534
        %v1540 = vadd.f32 %v1533, %v1534
        %s1541 = scalar_lea.vmem [#allocation8], 16
        %v1542 = vld [vmem:[%s1541] sm:$0xff]
        %v1543 = vld [vmem:[%s1541 + $0x8] sm:$0xff]
        %s1544 = scalar_lea.vmem %s3, 32
        %v1545 = vld [vmem:[%s1544] sm:$0xff]
        %v1546 = vld [vmem:[%s1544 + $0x8] sm:$0xff]
        %v1547 = vld [vmem:[%s1544 + $0x10] sm:$0xff]
        %v1548 = vld [vmem:[%s1544 + $0x18] sm:$0xff]
        %s1549 = scalar_lea.vmem %s4, 8
        %v1550 = vld [vmem:[%s1549] sm:$0x1]
        %v1551 = vld [vmem:[%s1549 + $0x1] sm:$0x1]
        %v1552 = vld [vmem:[%s1549 + $0x2] sm:$0x1]
        %v1553 = vld [vmem:[%s1549 + $0x3] sm:$0x1]
        %v1554 = vld [vmem:[%s1549 + $0x4] sm:$0x1]
        %v1555 = vld [vmem:[%s1549 + $0x5] sm:$0x1]
        %v1556 = vld [vmem:[%s1549 + $0x6] sm:$0x1]
        %v1557 = vld [vmem:[%s1549 + $0x7] sm:$0x1]
        %v1558 = vperm.slane %v1550, 0
        %v1560 = vsel %vm328, %v1535, 0
        %v1563 = vsel %vm328, %v1536, 0
        %v1566 = vsel %vm328, %v1537, 0
        %v1569 = vsel %vm328, %v1538, 0
        %v1572 = vsel %vm328, %v1539, 0
        %v1575 = vsel %vm328, %v1540, 0
        %1577 = vmatpush.msra.mxu0 0.0
        %1578 = vmatpush.msra.mxu0 0.0
        %1579 = vmatpush.msra.mxu0 0.0
        %1580 = vmatpush.msra.mxu0 0.0
        %1581 = vmatpush.msra.mxu0 0.0
        %1582 = vmatpush.msra.mxu0 0.0
        %1583 = vmatpush.msra.mxu0 0.0
        %1584 = vmatpush.msra.mxu0 0.0
        %1585 = vmatpush.msra.mxu0 0.0
        %1586 = vmatpush.msra.mxu0 0.0
        %1587 = vmatpush.msra.mxu0 0.0
        %1588 = vmatpush.msra.mxu0 0.0
        %1589 = vmatpush.msra.mxu0 0.0
        %1590 = vmatpush.msra.mxu0 0.0
        %1591 = vmatpush.msra.mxu0 %v1543
        %1592 = vmatpush.msra.mxu0 %v1542
        %1593 = vmatmul.f32.gmra.mxu0 %v1560
        %v1594 = vpop.f32.mrf.mxu0
        %v1595 = vadd.f32 %v1558, %v1594
        %1596 = vmatmul.f32.gmra.mxu0 %v1563
        %v1597 = vpop.f32.mrf.mxu0
        %v1598 = vadd.f32 %v1558, %v1597
        %1599 = vmatmul.f32.gmra.mxu0 %v1566
        %v1600 = vpop.f32.mrf.mxu0
        %v1601 = vadd.f32 %v1558, %v1600
        %1602 = vmatmul.f32.gmra.mxu0 %v1569
        %v1603 = vpop.f32.mrf.mxu0
        %v1604 = vadd.f32 %v1558, %v1603
        %1605 = vmatmul.f32.gmra.mxu0 %v1572
        %v1606 = vpop.f32.mrf.mxu0
        %v1607 = vadd.f32 %v1558, %v1606
        %1608 = vmatmul.f32.gmra.mxu0 %v1575
        %v1609 = vpop.f32.mrf.mxu0
        %v1610 = vadd.f32 %v1558, %v1609
        %1611 = vdwg.mxu0
        %v1612 = vmul.f32 %v1595, 0.35355338
        %v1613 = vmul.f32 %v1598, 0.35355338
        %v1614 = vmul.f32 %v1601, 0.35355338
        %v1615 = vmul.f32 %v1604, 0.35355338
        %v1616 = vmul.f32 %v1607, 0.35355338
        %v1617 = vmul.f32 %v1610, 0.35355338
        %1624 = vrot.lane.b32.xlu0 %v1595, 112
        %v1625 = vpop.permute.xlu0 %1624
        %1626 = vrot.lane.b32.xlu0 %v1598, 112
        %v1627 = vpop.permute.xlu0 %1626
        %1628 = vrot.lane.b32.xlu0 %v1601, 112
        %v1629 = vpop.permute.xlu0 %1628
        %1630 = vrot.lane.b32.xlu0 %v1604, 112
        %v1631 = vpop.permute.xlu0 %1630
        %1632 = vrot.lane.b32.xlu0 %v1607, 112
        %v1633 = vpop.permute.xlu0 %1632
        %1634 = vrot.lane.b32.xlu0 %v1610, 112
        %v1635 = vpop.permute.xlu0 %1634
        %v1637 = vsel %vm406, %v1612, 0
        %v1640 = vsel %vm406, %v1613, 0
        %v1643 = vsel %vm406, %v1614, 0
        %v1646 = vsel %vm406, %v1615, 0
        %v1649 = vsel %vm406, %v1616, 0
        %v1652 = vsel %vm406, %v1617, 0
        %v1654 = vsel %vm406, %v1625, 0
        %v1656 = vsel %vm406, %v1627, 0
        %v1658 = vsel %vm406, %v1629, 0
        %v1660 = vsel %vm406, %v1631, 0
        %v1662 = vsel %vm406, %v1633, 0
        %v1664 = vsel %vm406, %v1635, 0
        %1666 = vmatpush.xpose.msra.mxu0 0.0
        %1667 = vmatpush.xpose.msra.mxu0 0.0
        %1668 = vmatpush.xpose.msra.mxu0 0.0
        %1669 = vmatpush.xpose.msra.mxu0 0.0
        %1670 = vmatpush.xpose.msra.mxu0 0.0
        %1671 = vmatpush.xpose.msra.mxu0 0.0
        %1672 = vmatpush.xpose.msra.mxu0 0.0
        %1673 = vmatpush.xpose.msra.mxu0 0.0
        %1674 = vmatpush.xpose.msra.mxu0 0.0
        %1675 = vmatpush.xpose.msra.mxu0 0.0
        %1676 = vmatpush.xpose.msra.mxu0 %v1664
        %1677 = vmatpush.xpose.msra.mxu0 %v1662
        %1678 = vmatpush.xpose.msra.mxu0 %v1660
        %1679 = vmatpush.xpose.msra.mxu0 %v1658
        %1680 = vmatpush.xpose.msra.mxu0 %v1656
        %1681 = vmatpush.xpose.msra.mxu0 %v1654
        %1682 = vmatmul.f32.gmra.mxu0 %v1637
        %v1683 = vpop.f32.mrf.mxu0
        %v1684 = vadd.f32 %v307, %v1683
        %1685 = vmatmul.f32.gmra.mxu0 %v1640
        %v1686 = vpop.f32.mrf.mxu0
        %v1687 = vadd.f32 %v308, %v1686
        %1688 = vmatmul.f32.gmra.mxu0 %v1643
        %v1689 = vpop.f32.mrf.mxu0
        %v1690 = vadd.f32 %v309, %v1689
        %1691 = vmatmul.f32.gmra.mxu0 %v1646
        %v1692 = vpop.f32.mrf.mxu0
        %v1693 = vadd.f32 %v310, %v1692
        %1694 = vmatmul.f32.gmra.mxu0 %v1649
        %v1695 = vpop.f32.mrf.mxu0
        %v1696 = vadd.f32 %v311, %v1695
        %1697 = vmatmul.f32.gmra.mxu0 %v1652
        %v1698 = vpop.f32.mrf.mxu0
        %v1699 = vadd.f32 %v312, %v1698
        %1700 = vdwg.mxu0
        %v1701 = vsel %vm472, %v1684, -inf
        %1702 = vmax.xlane.f32.xlu0 %v1701
        %v1703 = vpop.xlane.xlu0 %1702
        %v1704 = vsel %vm472, %v1687, -inf
        %1705 = vmax.xlane.f32.xlu0 %v1704
        %v1706 = vpop.xlane.xlu0 %1705
        %v1707 = vsel %vm472, %v1690, -inf
        %1708 = vmax.xlane.f32.xlu0 %v1707
        %v1709 = vpop.xlane.xlu0 %1708
        %v1710 = vsel %vm472, %v1693, -inf
        %1711 = vmax.xlane.f32.xlu0 %v1710
        %v1712 = vpop.xlane.xlu0 %1711
        %v1713 = vsel %vm472, %v1696, -inf
        %1714 = vmax.xlane.f32.xlu0 %v1713
        %v1715 = vpop.xlane.xlu0 %1714
        %v1716 = vsel %vm472, %v1699, -inf
        %1717 = vmax.xlane.f32.xlu0 %v1716
        %v1718 = vpop.xlane.xlu0 %1717
        %v1719 = vsub.f32 %v1684, %v1703
        %v1720 = vsub.f32 %v1687, %v1706
        %v1721 = vsub.f32 %v1690, %v1709
        %v1722 = vsub.f32 %v1693, %v1712
        %v1723 = vsub.f32 %v1696, %v1715
        %v1724 = vsub.f32 %v1699, %v1718
        %v1725 = vmul.f32 %v1719, 1.442695
        %v1726 = vpow.pop %v1725
        %v1727 = vmul.f32 %v1720, 1.442695
        %v1728 = vpow.pop %v1727
        %v1729 = vmul.f32 %v1721, 1.442695
        %v1730 = vpow.pop %v1729
        %v1731 = vmul.f32 %v1722, 1.442695
        %v1732 = vpow.pop %v1731
        %v1733 = vmul.f32 %v1723, 1.442695
        %v1734 = vpow.pop %v1733
        %v1735 = vmul.f32 %v1724, 1.442695
        %v1736 = vpow.pop %v1735
        %v1737 = vsel %vm472, %v1726, 0.0
        %1738 = vadd.xlane.f32.xlu0 %v1737
        %v1739 = vpop.xlane.xlu0 %1738
        %v1740 = vsel %vm472, %v1728, 0.0
        %1741 = vadd.xlane.f32.xlu0 %v1740
        %v1742 = vpop.xlane.xlu0 %1741
        %v1743 = vsel %vm472, %v1730, 0.0
        %1744 = vadd.xlane.f32.xlu0 %v1743
        %v1745 = vpop.xlane.xlu0 %1744
        %v1746 = vsel %vm472, %v1732, 0.0
        %1747 = vadd.xlane.f32.xlu0 %v1746
        %v1748 = vpop.xlane.xlu0 %1747
        %v1749 = vsel %vm472, %v1734, 0.0
        %1750 = vadd.xlane.f32.xlu0 %v1749
        %v1751 = vpop.xlane.xlu0 %1750
        %v1752 = vsel %vm472, %v1736, 0.0
        %1753 = vadd.xlane.f32.xlu0 %v1752
        %v1754 = vpop.xlane.xlu0 %1753
        %v1755 = vrcp.pop %v1739
        %v1756 = vmul.f32 %v1739, %v1755
        %v1757 = vsub.f32 1.0, %v1756
        %v1758 = vmul.f32 %v1755, %v1757
        %v1759 = vadd.f32 %v1755, %v1758
        %vm1760 = vweird.f32 %v1739
        %vm1761 = vweird.f32 %v1755
        %vm1762 = vmor %vm1760, %vm1761
        %v1763 = vsel %vm1762, %v1755, %v1759
        %v1764 = vand.u32 2147483647, %v1739
        %vm1765 = vcmp.eq.f32.partialorder %v1764, 8.507059e+37
        %v1766 = vand.u32 %v1739, 2147483648
        %v1767 = vor.u32 1.1754944e-38, %v1766
        %v1768 = vsel %vm1765, %v1767, %v1763
        %v1769 = vmul.f32 %v1726, %v1768
        %v1770 = vrcp.pop %v1742
        %v1771 = vmul.f32 %v1742, %v1770
        %v1772 = vsub.f32 1.0, %v1771
        %v1773 = vmul.f32 %v1770, %v1772
        %v1774 = vadd.f32 %v1770, %v1773
        %vm1775 = vweird.f32 %v1742
        %vm1776 = vweird.f32 %v1770
        %vm1777 = vmor %vm1775, %vm1776
        %v1778 = vsel %vm1777, %v1770, %v1774
        %v1779 = vand.u32 2147483647, %v1742
        %vm1780 = vcmp.eq.f32.partialorder %v1779, 8.507059e+37
        %v1781 = vand.u32 %v1742, 2147483648
        %v1782 = vor.u32 1.1754944e-38, %v1781
        %v1783 = vsel %vm1780, %v1782, %v1778
        %v1784 = vmul.f32 %v1728, %v1783
        %v1785 = vrcp.pop %v1745
        %v1786 = vmul.f32 %v1745, %v1785
        %v1787 = vsub.f32 1.0, %v1786
        %v1788 = vmul.f32 %v1785, %v1787
        %v1789 = vadd.f32 %v1785, %v1788
        %vm1790 = vweird.f32 %v1745
        %vm1791 = vweird.f32 %v1785
        %vm1792 = vmor %vm1790, %vm1791
        %v1793 = vsel %vm1792, %v1785, %v1789
        %v1794 = vand.u32 2147483647, %v1745
        %vm1795 = vcmp.eq.f32.partialorder %v1794, 8.507059e+37
        %v1796 = vand.u32 %v1745, 2147483648
        %v1797 = vor.u32 1.1754944e-38, %v1796
        %v1798 = vsel %vm1795, %v1797, %v1793
        %v1799 = vmul.f32 %v1730, %v1798
        %v1800 = vrcp.pop %v1748
        %v1801 = vmul.f32 %v1748, %v1800
        %v1802 = vsub.f32 1.0, %v1801
        %v1803 = vmul.f32 %v1800, %v1802
        %v1804 = vadd.f32 %v1800, %v1803
        %vm1805 = vweird.f32 %v1748
        %vm1806 = vweird.f32 %v1800
        %vm1807 = vmor %vm1805, %vm1806
        %v1808 = vsel %vm1807, %v1800, %v1804
        %v1809 = vand.u32 2147483647, %v1748
        %vm1810 = vcmp.eq.f32.partialorder %v1809, 8.507059e+37
        %v1811 = vand.u32 %v1748, 2147483648
        %v1812 = vor.u32 1.1754944e-38, %v1811
        %v1813 = vsel %vm1810, %v1812, %v1808
        %v1814 = vmul.f32 %v1732, %v1813
        %v1815 = vrcp.pop %v1751
        %v1816 = vmul.f32 %v1751, %v1815
        %v1817 = vsub.f32 1.0, %v1816
        %v1818 = vmul.f32 %v1815, %v1817
        %v1819 = vadd.f32 %v1815, %v1818
        %vm1820 = vweird.f32 %v1751
        %vm1821 = vweird.f32 %v1815
        %vm1822 = vmor %vm1820, %vm1821
        %v1823 = vsel %vm1822, %v1815, %v1819
        %v1824 = vand.u32 2147483647, %v1751
        %vm1825 = vcmp.eq.f32.partialorder %v1824, 8.507059e+37
        %v1826 = vand.u32 %v1751, 2147483648
        %v1827 = vor.u32 1.1754944e-38, %v1826
        %v1828 = vsel %vm1825, %v1827, %v1823
        %v1829 = vmul.f32 %v1734, %v1828
        %v1830 = vrcp.pop %v1754
        %v1831 = vmul.f32 %v1754, %v1830
        %v1832 = vsub.f32 1.0, %v1831
        %v1833 = vmul.f32 %v1830, %v1832
        %v1834 = vadd.f32 %v1830, %v1833
        %vm1835 = vweird.f32 %v1754
        %vm1836 = vweird.f32 %v1830
        %vm1837 = vmor %vm1835, %vm1836
        %v1838 = vsel %vm1837, %v1830, %v1834
        %v1839 = vand.u32 2147483647, %v1754
        %vm1840 = vcmp.eq.f32.partialorder %v1839, 8.507059e+37
        %v1841 = vand.u32 %v1754, 2147483648
        %v1842 = vor.u32 1.1754944e-38, %v1841
        %v1843 = vsel %vm1840, %v1842, %v1838
        %v1844 = vmul.f32 %v1736, %v1843
        %1845 = vrot.lane.b32.xlu0 %v1595, 96
        %v1846 = vpop.permute.xlu0 %1845
        %1847 = vrot.lane.b32.xlu0 %v1598, 96
        %v1848 = vpop.permute.xlu0 %1847
        %1849 = vrot.lane.b32.xlu0 %v1601, 96
        %v1850 = vpop.permute.xlu0 %1849
        %1851 = vrot.lane.b32.xlu0 %v1604, 96
        %v1852 = vpop.permute.xlu0 %1851
        %1853 = vrot.lane.b32.xlu0 %v1607, 96
        %v1854 = vpop.permute.xlu0 %1853
        %1855 = vrot.lane.b32.xlu0 %v1610, 96
        %v1856 = vpop.permute.xlu0 %1855
        %v1864 = vsel %vm472, %v1769, 0
        %v1867 = vsel %vm472, %v1784, 0
        %v1870 = vsel %vm472, %v1799, 0
        %v1873 = vsel %vm472, %v1814, 0
        %v1876 = vsel %vm472, %v1829, 0
        %v1879 = vsel %vm472, %v1844, 0
        %1881 = vmatpush.msra.mxu0 0.0
        %1882 = vmatpush.msra.mxu0 0.0
        %1883 = vmatpush.msra.mxu0 0.0
        %1884 = vmatpush.msra.mxu0 0.0
        %1885 = vmatpush.msra.mxu0 0.0
        %1886 = vmatpush.msra.mxu0 0.0
        %1887 = vmatpush.msra.mxu0 0.0
        %1888 = vmatpush.msra.mxu0 0.0
        %1889 = vmatpush.msra.mxu0 0.0
        %1890 = vmatpush.msra.mxu0 0.0
        %1891 = vmatpush.msra.mxu0 %v1856
        %1892 = vmatpush.msra.mxu0 %v1854
        %1893 = vmatpush.msra.mxu0 %v1852
        %1894 = vmatpush.msra.mxu0 %v1850
        %1895 = vmatpush.msra.mxu0 %v1848
        %1896 = vmatpush.msra.mxu0 %v1846
        %1897 = vmatmul.f32.gmra.mxu0 %v1864
        %v1898 = vpop.f32.mrf.mxu0
        %v1899 = vadd.f32 0.0, %v1898
        %1900 = vmatmul.f32.gmra.mxu0 %v1867
        %v1901 = vpop.f32.mrf.mxu0
        %v1902 = vadd.f32 0.0, %v1901
        %1903 = vmatmul.f32.gmra.mxu0 %v1870
        %v1904 = vpop.f32.mrf.mxu0
        %v1905 = vadd.f32 0.0, %v1904
        %1906 = vmatmul.f32.gmra.mxu0 %v1873
        %v1907 = vpop.f32.mrf.mxu0
        %v1908 = vadd.f32 0.0, %v1907
        %1909 = vmatmul.f32.gmra.mxu0 %v1876
        %v1910 = vpop.f32.mrf.mxu0
        %v1911 = vadd.f32 0.0, %v1910
        %1912 = vmatmul.f32.gmra.mxu0 %v1879
        %v1913 = vpop.f32.mrf.mxu0
        %v1914 = vadd.f32 0.0, %v1913
        %1915 = vdwg.mxu0
        %v1916 = vld [vmem:[%s1541] sm:$0xff]
        %1917 = vrot.lane.b32.xlu0 %v1612, 120
        %v1918 = vpop.permute.xlu0 %1917
        %1919 = vrot.lane.b32.xlu0 %v1613, 120
        %v1920 = vpop.permute.xlu0 %1919
        %1921 = vrot.lane.b32.xlu0 %v1614, 120
        %v1922 = vpop.permute.xlu0 %1921
        %1923 = vrot.lane.b32.xlu0 %v1615, 120
        %v1924 = vpop.permute.xlu0 %1923
        %1925 = vrot.lane.b32.xlu0 %v1616, 120
        %v1926 = vpop.permute.xlu0 %1925
        %1927 = vrot.lane.b32.xlu0 %v1617, 120
        %v1928 = vpop.permute.xlu0 %1927
        %1929 = vrot.lane.b32.xlu0 %v1595, 104
        %v1930 = vpop.permute.xlu0 %1929
        %1931 = vrot.lane.b32.xlu0 %v1598, 104
        %v1932 = vpop.permute.xlu0 %1931
        %1933 = vrot.lane.b32.xlu0 %v1601, 104
        %v1934 = vpop.permute.xlu0 %1933
        %1935 = vrot.lane.b32.xlu0 %v1604, 104
        %v1936 = vpop.permute.xlu0 %1935
        %1937 = vrot.lane.b32.xlu0 %v1607, 104
        %v1938 = vpop.permute.xlu0 %1937
        %1939 = vrot.lane.b32.xlu0 %v1610, 104
        %v1940 = vpop.permute.xlu0 %1939
        %v1941 = vsel %vm406, %v1918, 0
        %v1943 = vsel %vm406, %v1920, 0
        %v1945 = vsel %vm406, %v1922, 0
        %v1947 = vsel %vm406, %v1924, 0
        %v1949 = vsel %vm406, %v1926, 0
        %v1951 = vsel %vm406, %v1928, 0
        %v1953 = vsel %vm406, %v1930, 0
        %v1955 = vsel %vm406, %v1932, 0
        %v1957 = vsel %vm406, %v1934, 0
        %v1959 = vsel %vm406, %v1936, 0
        %v1961 = vsel %vm406, %v1938, 0
        %v1963 = vsel %vm406, %v1940, 0
        %1965 = vmatpush.xpose.msra.mxu0 0.0
        %1966 = vmatpush.xpose.msra.mxu0 0.0
        %1967 = vmatpush.xpose.msra.mxu0 0.0
        %1968 = vmatpush.xpose.msra.mxu0 0.0
        %1969 = vmatpush.xpose.msra.mxu0 0.0
        %1970 = vmatpush.xpose.msra.mxu0 0.0
        %1971 = vmatpush.xpose.msra.mxu0 0.0
        %1972 = vmatpush.xpose.msra.mxu0 0.0
        %1973 = vmatpush.xpose.msra.mxu0 0.0
        %1974 = vmatpush.xpose.msra.mxu0 0.0
        %1975 = vmatpush.xpose.msra.mxu0 %v1963
        %1976 = vmatpush.xpose.msra.mxu0 %v1961
        %1977 = vmatpush.xpose.msra.mxu0 %v1959
        %1978 = vmatpush.xpose.msra.mxu0 %v1957
        %1979 = vmatpush.xpose.msra.mxu0 %v1955
        %1980 = vmatpush.xpose.msra.mxu0 %v1953
        %1981 = vmatmul.f32.gmra.mxu0 %v1941
        %v1982 = vpop.f32.mrf.mxu0
        %v1983 = vadd.f32 %v307, %v1982
        %1984 = vmatmul.f32.gmra.mxu0 %v1943
        %v1985 = vpop.f32.mrf.mxu0
        %v1986 = vadd.f32 %v308, %v1985
        %1987 = vmatmul.f32.gmra.mxu0 %v1945
        %v1988 = vpop.f32.mrf.mxu0
        %v1989 = vadd.f32 %v309, %v1988
        %1990 = vmatmul.f32.gmra.mxu0 %v1947
        %v1991 = vpop.f32.mrf.mxu0
        %v1992 = vadd.f32 %v310, %v1991
        %1993 = vmatmul.f32.gmra.mxu0 %v1949
        %v1994 = vpop.f32.mrf.mxu0
        %v1995 = vadd.f32 %v311, %v1994
        %1996 = vmatmul.f32.gmra.mxu0 %v1951
        %v1997 = vpop.f32.mrf.mxu0
        %v1998 = vadd.f32 %v312, %v1997
        %1999 = vdwg.mxu0
        %v2000 = vsel %vm472, %v1983, -inf
        %2001 = vmax.xlane.f32.xlu0 %v2000
        %v2002 = vpop.xlane.xlu0 %2001
        %v2003 = vsel %vm472, %v1986, -inf
        %2004 = vmax.xlane.f32.xlu0 %v2003
        %v2005 = vpop.xlane.xlu0 %2004
        %v2006 = vsel %vm472, %v1989, -inf
        %2007 = vmax.xlane.f32.xlu0 %v2006
        %v2008 = vpop.xlane.xlu0 %2007
        %v2009 = vsel %vm472, %v1992, -inf
        %2010 = vmax.xlane.f32.xlu0 %v2009
        %v2011 = vpop.xlane.xlu0 %2010
        %v2012 = vsel %vm472, %v1995, -inf
        %2013 = vmax.xlane.f32.xlu0 %v2012
        %v2014 = vpop.xlane.xlu0 %2013
        %v2015 = vsel %vm472, %v1998, -inf
        %2016 = vmax.xlane.f32.xlu0 %v2015
        %v2017 = vpop.xlane.xlu0 %2016
        %v2018 = vsub.f32 %v1983, %v2002
        %v2019 = vsub.f32 %v1986, %v2005
        %v2020 = vsub.f32 %v1989, %v2008
        %v2021 = vsub.f32 %v1992, %v2011
        %v2022 = vsub.f32 %v1995, %v2014
        %v2023 = vsub.f32 %v1998, %v2017
        %v2024 = vmul.f32 %v2018, 1.442695
        %v2025 = vpow.pop %v2024
        %v2026 = vmul.f32 %v2019, 1.442695
        %v2027 = vpow.pop %v2026
        %v2028 = vmul.f32 %v2020, 1.442695
        %v2029 = vpow.pop %v2028
        %v2030 = vmul.f32 %v2021, 1.442695
        %v2031 = vpow.pop %v2030
        %v2032 = vmul.f32 %v2022, 1.442695
        %v2033 = vpow.pop %v2032
        %v2034 = vmul.f32 %v2023, 1.442695
        %v2035 = vpow.pop %v2034
        %v2036 = vsel %vm472, %v2025, 0.0
        %2037 = vadd.xlane.f32.xlu0 %v2036
        %v2038 = vpop.xlane.xlu0 %2037
        %v2039 = vsel %vm472, %v2027, 0.0
        %2040 = vadd.xlane.f32.xlu0 %v2039
        %v2041 = vpop.xlane.xlu0 %2040
        %v2042 = vsel %vm472, %v2029, 0.0
        %2043 = vadd.xlane.f32.xlu0 %v2042
        %v2044 = vpop.xlane.xlu0 %2043
        %v2045 = vsel %vm472, %v2031, 0.0
        %2046 = vadd.xlane.f32.xlu0 %v2045
        %v2047 = vpop.xlane.xlu0 %2046
        %v2048 = vsel %vm472, %v2033, 0.0
        %2049 = vadd.xlane.f32.xlu0 %v2048
        %v2050 = vpop.xlane.xlu0 %2049
        %v2051 = vsel %vm472, %v2035, 0.0
        %2052 = vadd.xlane.f32.xlu0 %v2051
        %v2053 = vpop.xlane.xlu0 %2052
        %v2054 = vrcp.pop %v2038
        %v2055 = vmul.f32 %v2038, %v2054
        %v2056 = vsub.f32 1.0, %v2055
        %v2057 = vmul.f32 %v2054, %v2056
        %v2058 = vadd.f32 %v2054, %v2057
        %vm2059 = vweird.f32 %v2038
        %vm2060 = vweird.f32 %v2054
        %vm2061 = vmor %vm2059, %vm2060
        %v2062 = vsel %vm2061, %v2054, %v2058
        %v2063 = vand.u32 2147483647, %v2038
        %vm2064 = vcmp.eq.f32.partialorder %v2063, 8.507059e+37
        %v2065 = vand.u32 %v2038, 2147483648
        %v2066 = vor.u32 1.1754944e-38, %v2065
        %v2067 = vsel %vm2064, %v2066, %v2062
        %v2068 = vmul.f32 %v2025, %v2067
        %v2069 = vrcp.pop %v2041
        %v2070 = vmul.f32 %v2041, %v2069
        %v2071 = vsub.f32 1.0, %v2070
        %v2072 = vmul.f32 %v2069, %v2071
        %v2073 = vadd.f32 %v2069, %v2072
        %vm2074 = vweird.f32 %v2041
        %vm2075 = vweird.f32 %v2069
        %vm2076 = vmor %vm2074, %vm2075
        %v2077 = vsel %vm2076, %v2069, %v2073
        %v2078 = vand.u32 2147483647, %v2041
        %vm2079 = vcmp.eq.f32.partialorder %v2078, 8.507059e+37
        %v2080 = vand.u32 %v2041, 2147483648
        %v2081 = vor.u32 1.1754944e-38, %v2080
        %v2082 = vsel %vm2079, %v2081, %v2077
        %v2083 = vmul.f32 %v2027, %v2082
        %v2084 = vrcp.pop %v2044
        %v2085 = vmul.f32 %v2044, %v2084
        %v2086 = vsub.f32 1.0, %v2085
        %v2087 = vmul.f32 %v2084, %v2086
        %v2088 = vadd.f32 %v2084, %v2087
        %vm2089 = vweird.f32 %v2044
        %vm2090 = vweird.f32 %v2084
        %vm2091 = vmor %vm2089, %vm2090
        %v2092 = vsel %vm2091, %v2084, %v2088
        %v2093 = vand.u32 2147483647, %v2044
        %vm2094 = vcmp.eq.f32.partialorder %v2093, 8.507059e+37
        %v2095 = vand.u32 %v2044, 2147483648
        %v2096 = vor.u32 1.1754944e-38, %v2095
        %v2097 = vsel %vm2094, %v2096, %v2092
        %v2098 = vmul.f32 %v2029, %v2097
        %v2099 = vrcp.pop %v2047
        %v2100 = vmul.f32 %v2047, %v2099
        %v2101 = vsub.f32 1.0, %v2100
        %v2102 = vmul.f32 %v2099, %v2101
        %v2103 = vadd.f32 %v2099, %v2102
        %vm2104 = vweird.f32 %v2047
        %vm2105 = vweird.f32 %v2099
        %vm2106 = vmor %vm2104, %vm2105
        %v2107 = vsel %vm2106, %v2099, %v2103
        %v2108 = vand.u32 2147483647, %v2047
        %vm2109 = vcmp.eq.f32.partialorder %v2108, 8.507059e+37
        %v2110 = vand.u32 %v2047, 2147483648
        %v2111 = vor.u32 1.1754944e-38, %v2110
        %v2112 = vsel %vm2109, %v2111, %v2107
        %v2113 = vmul.f32 %v2031, %v2112
        %v2114 = vrcp.pop %v2050
        %v2115 = vmul.f32 %v2050, %v2114
        %v2116 = vsub.f32 1.0, %v2115
        %v2117 = vmul.f32 %v2114, %v2116
        %v2118 = vadd.f32 %v2114, %v2117
        %vm2119 = vweird.f32 %v2050
        %vm2120 = vweird.f32 %v2114
        %vm2121 = vmor %vm2119, %vm2120
        %v2122 = vsel %vm2121, %v2114, %v2118
        %v2123 = vand.u32 2147483647, %v2050
        %vm2124 = vcmp.eq.f32.partialorder %v2123, 8.507059e+37
        %v2125 = vand.u32 %v2050, 2147483648
        %v2126 = vor.u32 1.1754944e-38, %v2125
        %v2127 = vsel %vm2124, %v2126, %v2122
        %v2128 = vmul.f32 %v2033, %v2127
        %v2129 = vrcp.pop %v2053
        %v2130 = vmul.f32 %v2053, %v2129
        %v2131 = vsub.f32 1.0, %v2130
        %v2132 = vmul.f32 %v2129, %v2131
        %v2133 = vadd.f32 %v2129, %v2132
        %vm2134 = vweird.f32 %v2053
        %vm2135 = vweird.f32 %v2129
        %vm2136 = vmor %vm2134, %vm2135
        %v2137 = vsel %vm2136, %v2129, %v2133
        %v2138 = vand.u32 2147483647, %v2053
        %vm2139 = vcmp.eq.f32.partialorder %v2138, 8.507059e+37
        %v2140 = vand.u32 %v2053, 2147483648
        %v2141 = vor.u32 1.1754944e-38, %v2140
        %v2142 = vsel %vm2139, %v2141, %v2137
        %v2143 = vmul.f32 %v2035, %v2142
        %2144 = vrot.lane.b32.xlu0 %v1595, 88
        %v2145 = vpop.permute.xlu0 %2144
        %2146 = vrot.lane.b32.xlu0 %v1598, 88
        %v2147 = vpop.permute.xlu0 %2146
        %2148 = vrot.lane.b32.xlu0 %v1601, 88
        %v2149 = vpop.permute.xlu0 %2148
        %2150 = vrot.lane.b32.xlu0 %v1604, 88
        %v2151 = vpop.permute.xlu0 %2150
        %2152 = vrot.lane.b32.xlu0 %v1607, 88
        %v2153 = vpop.permute.xlu0 %2152
        %2154 = vrot.lane.b32.xlu0 %v1610, 88
        %v2155 = vpop.permute.xlu0 %2154
        %v2163 = vsel %vm472, %v2068, 0
        %v2166 = vsel %vm472, %v2083, 0
        %v2169 = vsel %vm472, %v2098, 0
        %v2172 = vsel %vm472, %v2113, 0
        %v2175 = vsel %vm472, %v2128, 0
        %v2178 = vsel %vm472, %v2143, 0
        %2180 = vmatpush.msra.mxu0 0.0
        %2181 = vmatpush.msra.mxu0 0.0
        %2182 = vmatpush.msra.mxu0 0.0
        %2183 = vmatpush.msra.mxu0 0.0
        %2184 = vmatpush.msra.mxu0 0.0
        %2185 = vmatpush.msra.mxu0 0.0
        %2186 = vmatpush.msra.mxu0 0.0
        %2187 = vmatpush.msra.mxu0 0.0
        %2188 = vmatpush.msra.mxu0 0.0
        %2189 = vmatpush.msra.mxu0 0.0
        %2190 = vmatpush.msra.mxu0 %v2155
        %2191 = vmatpush.msra.mxu0 %v2153
        %2192 = vmatpush.msra.mxu0 %v2151
        %2193 = vmatpush.msra.mxu0 %v2149
        %2194 = vmatpush.msra.mxu0 %v2147
        %2195 = vmatpush.msra.mxu0 %v2145
        %2196 = vmatmul.f32.gmra.mxu0 %v2163
        %v2197 = vpop.f32.mrf.mxu0
        %v2198 = vadd.f32 0.0, %v2197
        %2199 = vmatmul.f32.gmra.mxu0 %v2166
        %v2200 = vpop.f32.mrf.mxu0
        %v2201 = vadd.f32 0.0, %v2200
        %2202 = vmatmul.f32.gmra.mxu0 %v2169
        %v2203 = vpop.f32.mrf.mxu0
        %v2204 = vadd.f32 0.0, %v2203
        %2205 = vmatmul.f32.gmra.mxu0 %v2172
        %v2206 = vpop.f32.mrf.mxu0
        %v2207 = vadd.f32 0.0, %v2206
        %2208 = vmatmul.f32.gmra.mxu0 %v2175
        %v2209 = vpop.f32.mrf.mxu0
        %v2210 = vadd.f32 0.0, %v2209
        %2211 = vmatmul.f32.gmra.mxu0 %v2178
        %v2212 = vpop.f32.mrf.mxu0
        %v2213 = vadd.f32 0.0, %v2212
        %2214 = vdwg.mxu0
        %2216 = vrot.lane.b32.xlu0 %v1543, 80
        %v2217 = vpop.permute.xlu0 %2216
        %v2220 = vsel %vm406, %v2198, 0
        %v2223 = vsel %vm406, %v2201, 0
        %v2226 = vsel %vm406, %v2204, 0
        %v2229 = vsel %vm406, %v2207, 0
        %v2232 = vsel %vm406, %v2210, 0
        %v2235 = vsel %vm406, %v2213, 0
        %2237 = vmatpush.msra.mxu0 0.0
        %2238 = vmatpush.msra.mxu0 0.0
        %2239 = vmatpush.msra.mxu0 0.0
        %2240 = vmatpush.msra.mxu0 0.0
        %2241 = vmatpush.msra.mxu0 0.0
        %2242 = vmatpush.msra.mxu0 0.0
        %2243 = vmatpush.msra.mxu0 0.0
        %2244 = vmatpush.msra.mxu0 0.0
        %2245 = vmatpush.msra.mxu0 0.0
        %2246 = vmatpush.msra.mxu0 0.0
        %2247 = vmatpush.msra.mxu0 0.0
        %2248 = vmatpush.msra.mxu0 0.0
        %2249 = vmatpush.msra.mxu0 0.0
        %2250 = vmatpush.msra.mxu0 0.0
        %2251 = vmatpush.msra.mxu0 0.0
        %2252 = vmatpush.msra.mxu0 %v2217
        %2253 = vmatmul.f32.gmra.mxu0 %v2220
        %v2254 = vpop.f32.mrf.mxu0
        %v2255 = vadd.f32 0.0, %v2254
        %2256 = vmatmul.f32.gmra.mxu0 %v2223
        %v2257 = vpop.f32.mrf.mxu0
        %v2258 = vadd.f32 0.0, %v2257
        %2259 = vmatmul.f32.gmra.mxu0 %v2226
        %v2260 = vpop.f32.mrf.mxu0
        %v2261 = vadd.f32 0.0, %v2260
        %2262 = vmatmul.f32.gmra.mxu0 %v2229
        %v2263 = vpop.f32.mrf.mxu0
        %v2264 = vadd.f32 0.0, %v2263
        %2265 = vmatmul.f32.gmra.mxu0 %v2232
        %v2266 = vpop.f32.mrf.mxu0
        %v2267 = vadd.f32 0.0, %v2266
        %2268 = vmatmul.f32.gmra.mxu0 %v2235
        %v2269 = vpop.f32.mrf.mxu0
        %v2270 = vadd.f32 0.0, %v2269
        %2271 = vdwg.mxu0
        %2273 = vrot.lane.b32.xlu0 %v1916, 80
        %v2274 = vpop.permute.xlu0 %2273
        %v2277 = vsel %vm406, %v1899, 0
        %v2280 = vsel %vm406, %v1902, 0
        %v2283 = vsel %vm406, %v1905, 0
        %v2286 = vsel %vm406, %v1908, 0
        %v2289 = vsel %vm406, %v1911, 0
        %v2292 = vsel %vm406, %v1914, 0
        %2294 = vmatpush.msra.mxu0 0.0
        %2295 = vmatpush.msra.mxu0 0.0
        %2296 = vmatpush.msra.mxu0 0.0
        %2297 = vmatpush.msra.mxu0 0.0
        %2298 = vmatpush.msra.mxu0 0.0
        %2299 = vmatpush.msra.mxu0 0.0
        %2300 = vmatpush.msra.mxu0 0.0
        %2301 = vmatpush.msra.mxu0 0.0
        %2302 = vmatpush.msra.mxu0 0.0
        %2303 = vmatpush.msra.mxu0 0.0
        %2304 = vmatpush.msra.mxu0 0.0
        %2305 = vmatpush.msra.mxu0 0.0
        %2306 = vmatpush.msra.mxu0 0.0
        %2307 = vmatpush.msra.mxu0 0.0
        %2308 = vmatpush.msra.mxu0 0.0
        %2309 = vmatpush.msra.mxu0 %v2274
        %2310 = vmatmul.f32.gmra.mxu0 %v2277
        %v2311 = vpop.f32.mrf.mxu0
        %v2312 = vadd.f32 %v2255, %v2311
        %2313 = vmatmul.f32.gmra.mxu0 %v2280
        %v2314 = vpop.f32.mrf.mxu0
        %v2315 = vadd.f32 %v2258, %v2314
        %2316 = vmatmul.f32.gmra.mxu0 %v2283
        %v2317 = vpop.f32.mrf.mxu0
        %v2318 = vadd.f32 %v2261, %v2317
        %2319 = vmatmul.f32.gmra.mxu0 %v2286
        %v2320 = vpop.f32.mrf.mxu0
        %v2321 = vadd.f32 %v2264, %v2320
        %2322 = vmatmul.f32.gmra.mxu0 %v2289
        %v2323 = vpop.f32.mrf.mxu0
        %v2324 = vadd.f32 %v2267, %v2323
        %2325 = vmatmul.f32.gmra.mxu0 %v2292
        %v2326 = vpop.f32.mrf.mxu0
        %v2327 = vadd.f32 %v2270, %v2326
        %2328 = vdwg.mxu0
        %v2329 = vperm.slane %v1551, 0
        %v2330 = vadd.f32 %v2312, %v2329
        %v2331 = vadd.f32 %v2315, %v2329
        %v2332 = vadd.f32 %v2318, %v2329
        %v2333 = vadd.f32 %v2321, %v2329
        %v2334 = vadd.f32 %v2324, %v2329
        %v2335 = vadd.f32 %v2327, %v2329
        %v2336 = vadd.f32 %v1535, %v2330
        %v2337 = vadd.f32 %v1536, %v2331
        %v2338 = vadd.f32 %v1537, %v2332
        %v2339 = vadd.f32 %v1538, %v2333
        %v2340 = vadd.f32 %v1539, %v2334
        %v2341 = vadd.f32 %v1540, %v2335
        %v2342 = vsel %vm328, %v2336, 0.0
        %2343 = vadd.xlane.f32.xlu0 %v2342
        %v2344 = vpop.xlane.xlu0 %2343
        %v2345 = vsel %vm328, %v2337, 0.0
        %2346 = vadd.xlane.f32.xlu0 %v2345
        %v2347 = vpop.xlane.xlu0 %2346
        %v2348 = vsel %vm328, %v2338, 0.0
        %2349 = vadd.xlane.f32.xlu0 %v2348
        %v2350 = vpop.xlane.xlu0 %2349
        %v2351 = vsel %vm328, %v2339, 0.0
        %2352 = vadd.xlane.f32.xlu0 %v2351
        %v2353 = vpop.xlane.xlu0 %2352
        %v2354 = vsel %vm328, %v2340, 0.0
        %2355 = vadd.xlane.f32.xlu0 %v2354
        %v2356 = vpop.xlane.xlu0 %2355
        %v2357 = vsel %vm328, %v2341, 0.0
        %2358 = vadd.xlane.f32.xlu0 %v2357
        %v2359 = vpop.xlane.xlu0 %2358
        %v2360 = vmul.f32 %v2344, %v1138
        %v2361 = vmul.f32 %v2347, %v1138
        %v2362 = vmul.f32 %v2350, %v1138
        %v2363 = vmul.f32 %v2353, %v1138
        %v2364 = vmul.f32 %v2356, %v1138
        %v2365 = vmul.f32 %v2359, %v1138
        %v2366 = vsub.f32 %v2336, %v2360
        %v2367 = vsub.f32 %v2337, %v2361
        %v2368 = vsub.f32 %v2338, %v2362
        %v2369 = vsub.f32 %v2339, %v2363
        %v2370 = vsub.f32 %v2340, %v2364
        %v2371 = vsub.f32 %v2341, %v2365
        %v2372 = vmul.f32 %v2366, %v2366
        %v2373 = vmul.f32 %v2367, %v2367
        %v2374 = vmul.f32 %v2368, %v2368
        %v2375 = vmul.f32 %v2369, %v2369
        %v2376 = vmul.f32 %v2370, %v2370
        %v2377 = vmul.f32 %v2371, %v2371
        %v2378 = vsel %vm328, %v2372, 0.0
        %2379 = vadd.xlane.f32.xlu0 %v2378
        %v2380 = vpop.xlane.xlu0 %2379
        %v2381 = vsel %vm328, %v2373, 0.0
        %2382 = vadd.xlane.f32.xlu0 %v2381
        %v2383 = vpop.xlane.xlu0 %2382
        %v2384 = vsel %vm328, %v2374, 0.0
        %2385 = vadd.xlane.f32.xlu0 %v2384
        %v2386 = vpop.xlane.xlu0 %2385
        %v2387 = vsel %vm328, %v2375, 0.0
        %2388 = vadd.xlane.f32.xlu0 %v2387
        %v2389 = vpop.xlane.xlu0 %2388
        %v2390 = vsel %vm328, %v2376, 0.0
        %2391 = vadd.xlane.f32.xlu0 %v2390
        %v2392 = vpop.xlane.xlu0 %2391
        %v2393 = vsel %vm328, %v2377, 0.0
        %2394 = vadd.xlane.f32.xlu0 %v2393
        %v2395 = vpop.xlane.xlu0 %2394
        %v2396 = vmul.f32 %v2380, %v1138
        %v2397 = vmul.f32 %v2383, %v1138
        %v2398 = vmul.f32 %v2386, %v1138
        %v2399 = vmul.f32 %v2389, %v1138
        %v2400 = vmul.f32 %v2392, %v1138
        %v2401 = vmul.f32 %v2395, %v1138
        %v2402 = vadd.f32 %v2396, 1e-05
        %v2403 = vadd.f32 %v2397, 1e-05
        %v2404 = vadd.f32 %v2398, 1e-05
        %v2405 = vadd.f32 %v2399, 1e-05
        %v2406 = vadd.f32 %v2400, 1e-05
        %v2407 = vadd.f32 %v2401, 1e-05
        %v2408 = vrsqrt.pop %v2402
        %v2409 = vmul.f32 %v2408, %v2402
        %v2410 = vmul.f32 %v2409, %v2408
        %v2411 = vmul.f32 0.5, %v2410
        %v2412 = vsub.f32 1.5, %v2411
        %v2413 = vmul.f32 %v2408, %v2412
        %vm2414 = vweird.f32 %v2402
        %vm2415 = vweird.f32 %v2408
        %vm2416 = vmor %vm2414, %vm2415
        %v2417 = vsel %vm2416, %v2408, %v2413
        %v2418 = vrsqrt.pop %v2403
        %v2419 = vmul.f32 %v2418, %v2403
        %v2420 = vmul.f32 %v2419, %v2418
        %v2421 = vmul.f32 0.5, %v2420
        %v2422 = vsub.f32 1.5, %v2421
        %v2423 = vmul.f32 %v2418, %v2422
        %vm2424 = vweird.f32 %v2403
        %vm2425 = vweird.f32 %v2418
        %vm2426 = vmor %vm2424, %vm2425
        %v2427 = vsel %vm2426, %v2418, %v2423
        %v2428 = vrsqrt.pop %v2404
        %v2429 = vmul.f32 %v2428, %v2404
        %v2430 = vmul.f32 %v2429, %v2428
        %v2431 = vmul.f32 0.5, %v2430
        %v2432 = vsub.f32 1.5, %v2431
        %v2433 = vmul.f32 %v2428, %v2432
        %vm2434 = vweird.f32 %v2404
        %vm2435 = vweird.f32 %v2428
        %vm2436 = vmor %vm2434, %vm2435
        %v2437 = vsel %vm2436, %v2428, %v2433
        %v2438 = vrsqrt.pop %v2405
        %v2439 = vmul.f32 %v2438, %v2405
        %v2440 = vmul.f32 %v2439, %v2438
        %v2441 = vmul.f32 0.5, %v2440
        %v2442 = vsub.f32 1.5, %v2441
        %v2443 = vmul.f32 %v2438, %v2442
        %vm2444 = vweird.f32 %v2405
        %vm2445 = vweird.f32 %v2438
        %vm2446 = vmor %vm2444, %vm2445
        %v2447 = vsel %vm2446, %v2438, %v2443
        %v2448 = vrsqrt.pop %v2406
        %v2449 = vmul.f32 %v2448, %v2406
        %v2450 = vmul.f32 %v2449, %v2448
        %v2451 = vmul.f32 0.5, %v2450
        %v2452 = vsub.f32 1.5, %v2451
        %v2453 = vmul.f32 %v2448, %v2452
        %vm2454 = vweird.f32 %v2406
        %vm2455 = vweird.f32 %v2448
        %vm2456 = vmor %vm2454, %vm2455
        %v2457 = vsel %vm2456, %v2448, %v2453
        %v2458 = vrsqrt.pop %v2407
        %v2459 = vmul.f32 %v2458, %v2407
        %v2460 = vmul.f32 %v2459, %v2458
        %v2461 = vmul.f32 0.5, %v2460
        %v2462 = vsub.f32 1.5, %v2461
        %v2463 = vmul.f32 %v2458, %v2462
        %vm2464 = vweird.f32 %v2407
        %vm2465 = vweird.f32 %v2458
        %vm2466 = vmor %vm2464, %vm2465
        %v2467 = vsel %vm2466, %v2458, %v2463
        %v2468 = vmul.f32 %v2366, %v2417
        %v2469 = vmul.f32 %v2367, %v2427
        %v2470 = vmul.f32 %v2368, %v2437
        %v2471 = vmul.f32 %v2369, %v2447
        %v2472 = vmul.f32 %v2370, %v2457
        %v2473 = vmul.f32 %v2371, %v2467
        %v2474 = vperm.slane %v1554, 0
        %v2475 = vmul.f32 %v2468, %v2474
        %v2476 = vmul.f32 %v2469, %v2474
        %v2477 = vmul.f32 %v2470, %v2474
        %v2478 = vmul.f32 %v2471, %v2474
        %v2479 = vmul.f32 %v2472, %v2474
        %v2480 = vmul.f32 %v2473, %v2474
        %v2481 = vperm.slane %v1555, 0
        %v2482 = vadd.f32 %v2475, %v2481
        %v2483 = vadd.f32 %v2476, %v2481
        %v2484 = vadd.f32 %v2477, %v2481
        %v2485 = vadd.f32 %v2478, %v2481
        %v2486 = vadd.f32 %v2479, %v2481
        %v2487 = vadd.f32 %v2480, %v2481
        %v2488 = vperm.slane %v1552, 0
        %2490 = vrot.lane.b32.xlu0 %v1542, 64
        %v2491 = vpop.permute.xlu0 %2490
        %2492 = vrot.lane.b32.xlu0 %v1543, 64
        %v2493 = vpop.permute.xlu0 %2492
        %v2497 = vsel %vm328, %v2482, 0
        %v2500 = vsel %vm328, %v2483, 0
        %v2503 = vsel %vm328, %v2484, 0
        %v2506 = vsel %vm328, %v2485, 0
        %v2509 = vsel %vm328, %v2486, 0
        %v2512 = vsel %vm328, %v2487, 0
        %2514 = vmatpush.msra.mxu0 0.0
        %2515 = vmatpush.msra.mxu0 0.0
        %2516 = vmatpush.msra.mxu0 0.0
        %2517 = vmatpush.msra.mxu0 0.0
        %2518 = vmatpush.msra.mxu0 0.0
        %2519 = vmatpush.msra.mxu0 0.0
        %2520 = vmatpush.msra.mxu0 0.0
        %2521 = vmatpush.msra.mxu0 0.0
        %2522 = vmatpush.msra.mxu0 0.0
        %2523 = vmatpush.msra.mxu0 0.0
        %2524 = vmatpush.msra.mxu0 0.0
        %2525 = vmatpush.msra.mxu0 0.0
        %2526 = vmatpush.msra.mxu0 0.0
        %2527 = vmatpush.msra.mxu0 0.0
        %2528 = vmatpush.msra.mxu0 %v2493
        %2529 = vmatpush.msra.mxu0 %v2491
        %2530 = vmatmul.f32.gmra.mxu0 %v2497
        %v2531 = vpop.f32.mrf.mxu0
        %v2532 = vadd.f32 %v2488, %v2531
        %2533 = vmatmul.f32.gmra.mxu0 %v2500
        %v2534 = vpop.f32.mrf.mxu0
        %v2535 = vadd.f32 %v2488, %v2534
        %2536 = vmatmul.f32.gmra.mxu0 %v2503
        %v2537 = vpop.f32.mrf.mxu0
        %v2538 = vadd.f32 %v2488, %v2537
        %2539 = vmatmul.f32.gmra.mxu0 %v2506
        %v2540 = vpop.f32.mrf.mxu0
        %v2541 = vadd.f32 %v2488, %v2540
        %2542 = vmatmul.f32.gmra.mxu0 %v2509
        %v2543 = vpop.f32.mrf.mxu0
        %v2544 = vadd.f32 %v2488, %v2543
        %2545 = vmatmul.f32.gmra.mxu0 %v2512
        %v2546 = vpop.f32.mrf.mxu0
        %v2547 = vadd.f32 %v2488, %v2546
        %2548 = vdwg.mxu0
        %v2549 = vmax.f32 %v2532, 0.0
        %v2550 = vmax.f32 %v2535, 0.0
        %v2551 = vmax.f32 %v2538, 0.0
        %v2552 = vmax.f32 %v2541, 0.0
        %v2553 = vmax.f32 %v2544, 0.0
        %v2554 = vmax.f32 %v2547, 0.0
        %v2555 = vperm.slane %v1553, 0
        %v2557 = vsel %vm1335, %v2549, 0
        %v2560 = vsel %vm1335, %v2550, 0
        %v2563 = vsel %vm1335, %v2551, 0
        %v2566 = vsel %vm1335, %v2552, 0
        %v2569 = vsel %vm1335, %v2553, 0
        %v2572 = vsel %vm1335, %v2554, 0
        %2574 = vmatpush.msra.mxu0 0.0
        %2575 = vmatpush.msra.mxu0 0.0
        %2576 = vmatpush.msra.mxu0 0.0
        %2577 = vmatpush.msra.mxu0 0.0
        %2578 = vmatpush.msra.mxu0 0.0
        %2579 = vmatpush.msra.mxu0 0.0
        %2580 = vmatpush.msra.mxu0 0.0
        %2581 = vmatpush.msra.mxu0 0.0
        %2582 = vmatpush.msra.mxu0 0.0
        %2583 = vmatpush.msra.mxu0 0.0
        %2584 = vmatpush.msra.mxu0 0.0
        %2585 = vmatpush.msra.mxu0 0.0
        %2586 = vmatpush.msra.mxu0 %v1548
        %2587 = vmatpush.msra.mxu0 %v1547
        %2588 = vmatpush.msra.mxu0 %v1546
        %2589 = vmatpush.msra.mxu0 %v1545
        %2590 = vmatmul.f32.gmra.mxu0 %v2557
        %v2591 = vpop.f32.mrf.mxu0
        %v2592 = vadd.f32 %v2555, %v2591
        %2593 = vmatmul.f32.gmra.mxu0 %v2560
        %v2594 = vpop.f32.mrf.mxu0
        %v2595 = vadd.f32 %v2555, %v2594
        %2596 = vmatmul.f32.gmra.mxu0 %v2563
        %v2597 = vpop.f32.mrf.mxu0
        %v2598 = vadd.f32 %v2555, %v2597
        %2599 = vmatmul.f32.gmra.mxu0 %v2566
        %v2600 = vpop.f32.mrf.mxu0
        %v2601 = vadd.f32 %v2555, %v2600
        %2602 = vmatmul.f32.gmra.mxu0 %v2569
        %v2603 = vpop.f32.mrf.mxu0
        %v2604 = vadd.f32 %v2555, %v2603
        %2605 = vmatmul.f32.gmra.mxu0 %v2572
        %v2606 = vpop.f32.mrf.mxu0
        %v2607 = vadd.f32 %v2555, %v2606
        %2608 = vdwg.mxu0
        %v2609 = vadd.f32 %v2482, %v2592
        %v2610 = vadd.f32 %v2483, %v2595
        %v2611 = vadd.f32 %v2484, %v2598
        %v2612 = vadd.f32 %v2485, %v2601
        %v2613 = vadd.f32 %v2486, %v2604
        %v2614 = vadd.f32 %v2487, %v2607
        %v2615 = vsel %vm328, %v2609, 0.0
        %2616 = vadd.xlane.f32.xlu0 %v2615
        %v2617 = vpop.xlane.xlu0 %2616
        %v2618 = vsel %vm328, %v2610, 0.0
        %2619 = vadd.xlane.f32.xlu0 %v2618
        %v2620 = vpop.xlane.xlu0 %2619
        %v2621 = vsel %vm328, %v2611, 0.0
        %2622 = vadd.xlane.f32.xlu0 %v2621
        %v2623 = vpop.xlane.xlu0 %2622
        %v2624 = vsel %vm328, %v2612, 0.0
        %2625 = vadd.xlane.f32.xlu0 %v2624
        %v2626 = vpop.xlane.xlu0 %2625
        %v2627 = vsel %vm328, %v2613, 0.0
        %2628 = vadd.xlane.f32.xlu0 %v2627
        %v2629 = vpop.xlane.xlu0 %2628
        %v2630 = vsel %vm328, %v2614, 0.0
        %2631 = vadd.xlane.f32.xlu0 %v2630
        %v2632 = vpop.xlane.xlu0 %2631
        %v2633 = vmul.f32 %v2617, %v1138
        %v2634 = vmul.f32 %v2620, %v1138
        %v2635 = vmul.f32 %v2623, %v1138
        %v2636 = vmul.f32 %v2626, %v1138
        %v2637 = vmul.f32 %v2629, %v1138
        %v2638 = vmul.f32 %v2632, %v1138
        %v2639 = vsub.f32 %v2609, %v2633
        %v2640 = vsub.f32 %v2610, %v2634
        %v2641 = vsub.f32 %v2611, %v2635
        %v2642 = vsub.f32 %v2612, %v2636
        %v2643 = vsub.f32 %v2613, %v2637
        %v2644 = vsub.f32 %v2614, %v2638
        %v2645 = vmul.f32 %v2639, %v2639
        %v2646 = vmul.f32 %v2640, %v2640
        %v2647 = vmul.f32 %v2641, %v2641
        %v2648 = vmul.f32 %v2642, %v2642
        %v2649 = vmul.f32 %v2643, %v2643
        %v2650 = vmul.f32 %v2644, %v2644
        %v2651 = vsel %vm328, %v2645, 0.0
        %2652 = vadd.xlane.f32.xlu0 %v2651
        %v2653 = vpop.xlane.xlu0 %2652
        %v2654 = vsel %vm328, %v2646, 0.0
        %2655 = vadd.xlane.f32.xlu0 %v2654
        %v2656 = vpop.xlane.xlu0 %2655
        %v2657 = vsel %vm328, %v2647, 0.0
        %2658 = vadd.xlane.f32.xlu0 %v2657
        %v2659 = vpop.xlane.xlu0 %2658
        %v2660 = vsel %vm328, %v2648, 0.0
        %2661 = vadd.xlane.f32.xlu0 %v2660
        %v2662 = vpop.xlane.xlu0 %2661
        %v2663 = vsel %vm328, %v2649, 0.0
        %2664 = vadd.xlane.f32.xlu0 %v2663
        %v2665 = vpop.xlane.xlu0 %2664
        %v2666 = vsel %vm328, %v2650, 0.0
        %2667 = vadd.xlane.f32.xlu0 %v2666
        %v2668 = vpop.xlane.xlu0 %2667
        %v2669 = vmul.f32 %v2653, %v1138
        %v2670 = vmul.f32 %v2656, %v1138
        %v2671 = vmul.f32 %v2659, %v1138
        %v2672 = vmul.f32 %v2662, %v1138
        %v2673 = vmul.f32 %v2665, %v1138
        %v2674 = vmul.f32 %v2668, %v1138
        %v2675 = vadd.f32 %v2669, 1e-05
        %v2676 = vadd.f32 %v2670, 1e-05
        %v2677 = vadd.f32 %v2671, 1e-05
        %v2678 = vadd.f32 %v2672, 1e-05
        %v2679 = vadd.f32 %v2673, 1e-05
        %v2680 = vadd.f32 %v2674, 1e-05
        %v2681 = vrsqrt.pop %v2675
        %v2682 = vmul.f32 %v2681, %v2675
        %v2683 = vmul.f32 %v2682, %v2681
        %v2684 = vmul.f32 0.5, %v2683
        %v2685 = vsub.f32 1.5, %v2684
        %v2686 = vmul.f32 %v2681, %v2685
        %vm2687 = vweird.f32 %v2675
        %vm2688 = vweird.f32 %v2681
        %vm2689 = vmor %vm2687, %vm2688
        %v2690 = vsel %vm2689, %v2681, %v2686
        %v2691 = vrsqrt.pop %v2676
        %v2692 = vmul.f32 %v2691, %v2676
        %v2693 = vmul.f32 %v2692, %v2691
        %v2694 = vmul.f32 0.5, %v2693
        %v2695 = vsub.f32 1.5, %v2694
        %v2696 = vmul.f32 %v2691, %v2695
        %vm2697 = vweird.f32 %v2676
        %vm2698 = vweird.f32 %v2691
        %vm2699 = vmor %vm2697, %vm2698
        %v2700 = vsel %vm2699, %v2691, %v2696
        %v2701 = vrsqrt.pop %v2677
        %v2702 = vmul.f32 %v2701, %v2677
        %v2703 = vmul.f32 %v2702, %v2701
        %v2704 = vmul.f32 0.5, %v2703
        %v2705 = vsub.f32 1.5, %v2704
        %v2706 = vmul.f32 %v2701, %v2705
        %vm2707 = vweird.f32 %v2677
        %vm2708 = vweird.f32 %v2701
        %vm2709 = vmor %vm2707, %vm2708
        %v2710 = vsel %vm2709, %v2701, %v2706
        %v2711 = vrsqrt.pop %v2678
        %v2712 = vmul.f32 %v2711, %v2678
        %v2713 = vmul.f32 %v2712, %v2711
        %v2714 = vmul.f32 0.5, %v2713
        %v2715 = vsub.f32 1.5, %v2714
        %v2716 = vmul.f32 %v2711, %v2715
        %vm2717 = vweird.f32 %v2678
        %vm2718 = vweird.f32 %v2711
        %vm2719 = vmor %vm2717, %vm2718
        %v2720 = vsel %vm2719, %v2711, %v2716
        %v2721 = vrsqrt.pop %v2679
        %v2722 = vmul.f32 %v2721, %v2679
        %v2723 = vmul.f32 %v2722, %v2721
        %v2724 = vmul.f32 0.5, %v2723
        %v2725 = vsub.f32 1.5, %v2724
        %v2726 = vmul.f32 %v2721, %v2725
        %vm2727 = vweird.f32 %v2679
        %vm2728 = vweird.f32 %v2721
        %vm2729 = vmor %vm2727, %vm2728
        %v2730 = vsel %vm2729, %v2721, %v2726
        %v2731 = vrsqrt.pop %v2680
        %v2732 = vmul.f32 %v2731, %v2680
        %v2733 = vmul.f32 %v2732, %v2731
        %v2734 = vmul.f32 0.5, %v2733
        %v2735 = vsub.f32 1.5, %v2734
        %v2736 = vmul.f32 %v2731, %v2735
        %vm2737 = vweird.f32 %v2680
        %vm2738 = vweird.f32 %v2731
        %vm2739 = vmor %vm2737, %vm2738
        %v2740 = vsel %vm2739, %v2731, %v2736
        %v2741 = vmul.f32 %v2639, %v2690
        %v2742 = vmul.f32 %v2640, %v2700
        %v2743 = vmul.f32 %v2641, %v2710
        %v2744 = vmul.f32 %v2642, %v2720
        %v2745 = vmul.f32 %v2643, %v2730
        %v2746 = vmul.f32 %v2644, %v2740
        %v2747 = vperm.slane %v1556, 0
        %v2748 = vmul.f32 %v2741, %v2747
        %v2749 = vmul.f32 %v2742, %v2747
        %v2750 = vmul.f32 %v2743, %v2747
        %v2751 = vmul.f32 %v2744, %v2747
        %v2752 = vmul.f32 %v2745, %v2747
        %v2753 = vmul.f32 %v2746, %v2747
        %v2754 = vperm.slane %v1557, 0
        %v2755 = vadd.f32 %v2748, %v2754
        %v2756 = vadd.f32 %v2749, %v2754
        %v2757 = vadd.f32 %v2750, %v2754
        %v2758 = vadd.f32 %v2751, %v2754
        %v2759 = vadd.f32 %v2752, %v2754
        %v2760 = vadd.f32 %v2753, %v2754
        %2761 = vst.msk [vmem:[#allocation6] sm:$0xff] %vm328, %v2755
        %2762 = vst.msk [vmem:[#allocation6 + $0x8] sm:$0xff] %vm328, %v2756
        %2763 = vst.msk [vmem:[#allocation6 + $0x10] sm:$0xff] %vm328, %v2757
        %2764 = vst.msk [vmem:[#allocation6 + $0x18] sm:$0xff] %vm328, %v2758
        %2765 = vst.msk [vmem:[#allocation6 + $0x20] sm:$0xff] %vm328, %v2759
        %2766 = vst.msk [vmem:[#allocation6 + $0x28] sm:$0xff] %vm328, %v2760
        %v2767 = vld [vmem:[#allocation6] ss:$8 sm:$0xf]
        %v2768 = vld [vmem:[#allocation6] ss:$8 sm:$0x30]
        %v2769 = vor.u32 %v2767, %v2768
        %s2770 = scalar_lea.vmem [#allocation6], 1
        %v2771 = vld [vmem:[%s2770] ss:$8 sm:$0xf]
        %v2772 = vld [vmem:[%s2770] ss:$8 sm:$0x30]
        %v2773 = vor.u32 %v2771, %v2772
        %s2774 = scalar_lea.vmem [#allocation6], 2
        %v2775 = vld [vmem:[%s2774] ss:$8 sm:$0xf]
        %v2776 = vld [vmem:[%s2774] ss:$8 sm:$0x30]
        %v2777 = vor.u32 %v2775, %v2776
        %s2778 = scalar_lea.vmem [#allocation6], 3
        %v2779 = vld [vmem:[%s2778] ss:$8 sm:$0xf]
        %v2780 = vld [vmem:[%s2778] ss:$8 sm:$0x30]
        %v2781 = vor.u32 %v2779, %v2780
        %s2782 = scalar_lea.vmem [#allocation6], 4
        %v2783 = vld [vmem:[%s2782] ss:$8 sm:$0xf]
        %v2784 = vld [vmem:[%s2782] ss:$8 sm:$0x30]
        %v2785 = vor.u32 %v2783, %v2784
        %s2786 = scalar_lea.vmem [#allocation6], 5
        %v2787 = vld [vmem:[%s2786] ss:$8 sm:$0xf]
        %v2788 = vld [vmem:[%s2786] ss:$8 sm:$0x30]
        %v2789 = vor.u32 %v2787, %v2788
        %s2790 = scalar_lea.vmem [#allocation6], 6
        %v2791 = vld [vmem:[%s2790] ss:$8 sm:$0xf]
        %v2792 = vld [vmem:[%s2790] ss:$8 sm:$0x30]
        %v2793 = vor.u32 %v2791, %v2792
        %s2794 = scalar_lea.vmem [#allocation6], 7
        %v2795 = vld [vmem:[%s2794] ss:$8 sm:$0xf]
        %v2796 = vld [vmem:[%s2794] ss:$8 sm:$0x30]
        %v2797 = vor.u32 %v2795, %v2796
        %2799 = vrot.lane.b32.xlu0 %v2773, 16
        %v2800 = vpop.permute.xlu0 %2799
        %2803 = vrot.lane.b32.xlu0 %v2777, 32
        %v2804 = vpop.permute.xlu0 %2803
        %2807 = vrot.lane.b32.xlu0 %v2781, 48
        %v2808 = vpop.permute.xlu0 %2807
        %2811 = vrot.lane.b32.xlu0 %v2785, 64
        %v2812 = vpop.permute.xlu0 %2811
        %2815 = vrot.lane.b32.xlu0 %v2789, 80
        %v2816 = vpop.permute.xlu0 %2815
        %2819 = vrot.lane.b32.xlu0 %v2793, 96
        %v2820 = vpop.permute.xlu0 %2819
        %2823 = vrot.lane.b32.xlu0 %v2797, 112
        %v2824 = vpop.permute.xlu0 %2823
        %v2826 = vsel %vm328, %v2769, %v2800
        %v2827 = vsel %vm1335, %v2826, %v2804
        %v2828 = vsel %vm472, %v2827, %v2808
        %vm2829 = vcmask 523264
        %v2830 = vsel %vm2829, %v2828, %v2812
        %vm2831 = vcmask 654336
        %v2832 = vsel %vm2831, %v2830, %v2816
        %vm2833 = vcmask 785408
        %v2834 = vsel %vm2833, %v2832, %v2820
        %vm2835 = vcmask 916480
        %v2836 = vsel %vm2835, %v2834, %v2824
        %s2837 = smul.u32 8, 2
        %s2838 = smul.u32 %s2837, 16
        %s2839 = smul.u32 %s2838, 6
        %s2840 = sshll.u32 %s2839, 4
        %2841 = dma.done [#allocation7], %s2840
        %s2842 = smul.u32 2, 256
        %s2843 = smul.u32 %s2842, 1
        %s2844 = sshll.u32 %s2843, 4
        %2845 = dma.done %s259, %s2844
        %s2846 = smul.u32 %s2837, 1
        %s2847 = smul.u32 %s2846, 3
        %s2848 = sshll.u32 %s2847, 4
        %2849 = dma.done %s273, %s2848
        %s2850 = smul.u32 776, 1
        %s2851 = sshll.u32 %s2850, 4
        %2852 = dma.done %s287, %s2851
        %v2853 = vld [vmem:[#allocation2] sm:$0xff]
        %v2854 = vld [vmem:[#allocation2 + $0x8] sm:$0xff]
        %v2855 = vld [vmem:[#allocation2 + $0x10] sm:$0xff]
        %v2856 = vld [vmem:[#allocation2 + $0x30] sm:$0xff]
        %v2857 = vld [vmem:[#allocation2 + $0x38] sm:$0xff]
        %v2858 = vld [vmem:[#allocation2 + $0x40] sm:$0xff]
        %v2859 = vld [vmem:[#allocation2 + $0x60] sm:$0xff]
        %v2860 = vld [vmem:[#allocation2 + $0x68] sm:$0xff]
        %v2861 = vld [vmem:[#allocation2 + $0x70] sm:$0xff]
        %v2862 = vld [vmem:[#allocation2 + $0x90] sm:$0xff]
        %v2863 = vld [vmem:[#allocation2 + $0x98] sm:$0xff]
        %v2864 = vld [vmem:[#allocation2 + $0xa0] sm:$0xff]
        %v2865 = vld [vmem:[#allocation2 + $0xc0] sm:$0xff]
        %v2866 = vld [vmem:[#allocation2 + $0xc8] sm:$0xff]
        %v2867 = vld [vmem:[#allocation2 + $0xd0] sm:$0xff]
        %v2868 = vld [vmem:[#allocation2 + $0xf0] sm:$0xff]
        %v2869 = vld [vmem:[#allocation2 + $0xf8] sm:$0xff]
        %v2870 = vld [vmem:[#allocation2 + $0x100] sm:$0xff]
        %v2871 = vld [vmem:[#allocation2 + $0x120] sm:$0xff]
        %v2872 = vld [vmem:[#allocation2 + $0x128] sm:$0xff]
        %v2873 = vld [vmem:[#allocation2 + $0x130] sm:$0xff]
        %v2874 = vld [vmem:[#allocation2 + $0x150] sm:$0xff]
        %v2875 = vld [vmem:[#allocation2 + $0x158] sm:$0xff]
        %v2876 = vld [vmem:[#allocation2 + $0x160] sm:$0xff]
        %v2877 = vld [vmem:[#allocation2 + $0x180] sm:$0xff]
        %v2878 = vld [vmem:[#allocation2 + $0x188] sm:$0xff]
        %v2879 = vld [vmem:[#allocation2 + $0x190] sm:$0xff]
        %v2880 = vld [vmem:[#allocation2 + $0x1b0] sm:$0xff]
        %v2881 = vld [vmem:[#allocation2 + $0x1b8] sm:$0xff]
        %v2882 = vld [vmem:[#allocation2 + $0x1c0] sm:$0xff]
        %v2883 = vld [vmem:[#allocation2 + $0x1e0] sm:$0xff]
        %v2884 = vld [vmem:[#allocation2 + $0x1e8] sm:$0xff]
        %v2885 = vld [vmem:[#allocation2 + $0x1f0] sm:$0xff]
        %v2886 = vld [vmem:[#allocation2 + $0x210] sm:$0xff]
        %v2887 = vld [vmem:[#allocation2 + $0x218] sm:$0xff]
        %v2888 = vld [vmem:[#allocation2 + $0x220] sm:$0xff]
        %v2889 = vld [vmem:[#allocation2 + $0x240] sm:$0xff]
        %v2890 = vld [vmem:[#allocation2 + $0x248] sm:$0xff]
        %v2891 = vld [vmem:[#allocation2 + $0x250] sm:$0xff]
        %v2892 = vld [vmem:[#allocation2 + $0x270] sm:$0xff]
        %v2893 = vld [vmem:[#allocation2 + $0x278] sm:$0xff]
        %v2894 = vld [vmem:[#allocation2 + $0x280] sm:$0xff]
        %v2895 = vld [vmem:[#allocation2 + $0x2a0] sm:$0xff]
        %v2896 = vld [vmem:[#allocation2 + $0x2a8] sm:$0xff]
        %v2897 = vld [vmem:[#allocation2 + $0x2b0] sm:$0xff]
        %v2898 = vld [vmem:[#allocation2 + $0x2d0] sm:$0xff]
        %v2899 = vld [vmem:[#allocation2 + $0x2d8] sm:$0xff]
        %v2900 = vld [vmem:[#allocation2 + $0x2e0] sm:$0xff]
        %v2901 = vld [vmem:[#allocation2 + $0x20] sm:$0xff]
        %v2902 = vld [vmem:[#allocation2 + $0x28] sm:$0xff]
        %v2903 = vld [vmem:[#allocation2 + $0x50] sm:$0xff]
        %v2904 = vld [vmem:[#allocation2 + $0x58] sm:$0xff]
        %v2905 = vld [vmem:[#allocation2 + $0x80] sm:$0xff]
        %v2906 = vld [vmem:[#allocation2 + $0x88] sm:$0xff]
        %v2907 = vld [vmem:[#allocation2 + $0xb0] sm:$0xff]
        %v2908 = vld [vmem:[#allocation2 + $0xb8] sm:$0xff]
        %v2909 = vld [vmem:[#allocation2 + $0xe0] sm:$0xff]
        %v2910 = vld [vmem:[#allocation2 + $0xe8] sm:$0xff]
        %v2911 = vld [vmem:[#allocation2 + $0x110] sm:$0xff]
        %v2912 = vld [vmem:[#allocation2 + $0x118] sm:$0xff]
        %v2913 = vld [vmem:[#allocation2 + $0x140] sm:$0xff]
        %v2914 = vld [vmem:[#allocation2 + $0x148] sm:$0xff]
        %v2915 = vld [vmem:[#allocation2 + $0x170] sm:$0xff]
        %v2916 = vld [vmem:[#allocation2 + $0x178] sm:$0xff]
        %v2917 = vld [vmem:[#allocation2 + $0x1a0] sm:$0xff]
        %v2918 = vld [vmem:[#allocation2 + $0x1a8] sm:$0xff]
        %v2919 = vld [vmem:[#allocation2 + $0x1d0] sm:$0xff]
        %v2920 = vld [vmem:[#allocation2 + $0x1d8] sm:$0xff]
        %v2921 = vld [vmem:[#allocation2 + $0x200] sm:$0xff]
        %v2922 = vld [vmem:[#allocation2 + $0x208] sm:$0xff]
        %v2923 = vld [vmem:[#allocation2 + $0x230] sm:$0xff]
        %v2924 = vld [vmem:[#allocation2 + $0x238] sm:$0xff]
        %v2925 = vld [vmem:[#allocation2 + $0x260] sm:$0xff]
        %v2926 = vld [vmem:[#allocation2 + $0x268] sm:$0xff]
        %v2927 = vld [vmem:[#allocation2 + $0x290] sm:$0xff]
        %v2928 = vld [vmem:[#allocation2 + $0x298] sm:$0xff]
        %v2929 = vld [vmem:[#allocation2 + $0x2c0] sm:$0xff]
        %v2930 = vld [vmem:[#allocation2 + $0x2c8] sm:$0xff]
        %v2931 = vld [vmem:[#allocation2 + $0x2f0] sm:$0xff]
        %v2932 = vld [vmem:[#allocation2 + $0x2f8] sm:$0xff]
        %v2933 = vld [vmem:[#allocation3] sm:$0xff]
        %v2934 = vld [vmem:[#allocation3 + $0x8] sm:$0xff]
        %v2935 = vld [vmem:[#allocation3 + $0x10] sm:$0xff]
        %v2936 = vld [vmem:[#allocation3 + $0x18] sm:$0xff]
        %v2937 = vld [vmem:[#allocation3 + $0x20] sm:$0xff]
        %v2938 = vld [vmem:[#allocation3 + $0x28] sm:$0xff]
        %v2939 = vld [vmem:[#allocation3 + $0x30] sm:$0xff]
        %v2940 = vld [vmem:[#allocation3 + $0x38] sm:$0xff]
        %v2941 = vld [vmem:[#allocation3 + $0x40] sm:$0xff]
        %v2942 = vld [vmem:[#allocation3 + $0x48] sm:$0xff]
        %v2943 = vld [vmem:[#allocation3 + $0x50] sm:$0xff]
        %v2944 = vld [vmem:[#allocation3 + $0x58] sm:$0xff]
        %v2945 = vld [vmem:[#allocation3 + $0x60] sm:$0xff]
        %v2946 = vld [vmem:[#allocation3 + $0x68] sm:$0xff]
        %v2947 = vld [vmem:[#allocation3 + $0x70] sm:$0xff]
        %v2948 = vld [vmem:[#allocation3 + $0x78] sm:$0xff]
        %v2949 = vld [vmem:[#allocation3 + $0x80] sm:$0xff]
        %v2950 = vld [vmem:[#allocation3 + $0x88] sm:$0xff]
        %v2951 = vld [vmem:[#allocation3 + $0x90] sm:$0xff]
        %v2952 = vld [vmem:[#allocation3 + $0x98] sm:$0xff]
        %v2953 = vld [vmem:[#allocation3 + $0xa0] sm:$0xff]
        %v2954 = vld [vmem:[#allocation3 + $0xa8] sm:$0xff]
        %v2955 = vld [vmem:[#allocation3 + $0xb0] sm:$0xff]
        %v2956 = vld [vmem:[#allocation3 + $0xb8] sm:$0xff]
        %v2957 = vld [vmem:[#allocation3 + $0xc0] sm:$0xff]
        %v2958 = vld [vmem:[#allocation3 + $0xc8] sm:$0xff]
        %v2959 = vld [vmem:[#allocation3 + $0xd0] sm:$0xff]
        %v2960 = vld [vmem:[#allocation3 + $0xd8] sm:$0xff]
        %v2961 = vld [vmem:[#allocation3 + $0xe0] sm:$0xff]
        %v2962 = vld [vmem:[#allocation3 + $0xe8] sm:$0xff]
        %v2963 = vld [vmem:[#allocation3 + $0xf0] sm:$0xff]
        %v2964 = vld [vmem:[#allocation3 + $0xf8] sm:$0xff]
        %v2965 = vld [vmem:[#allocation4] ss:$8 sm:$0x7]
        %v2966 = vld [vmem:[#allocation4 + $0x1] ss:$0 sm:$0xff]
        %s2967 = scalar_lea.vmem [#allocation4], 2
        %v2968 = vld [vmem:[%s2967] ss:$8 sm:$0x3]
        %v2969 = vld [vmem:[#allocation4 + $0x3] ss:$0 sm:$0xff]
        %v2970 = vld [vmem:[#allocation4 + $0x4] ss:$0 sm:$0xff]
        %v2971 = vld [vmem:[#allocation4 + $0x5] ss:$0 sm:$0xff]
        %v2972 = vld [vmem:[#allocation4 + $0x6] ss:$0 sm:$0xff]
        %v2973 = vld [vmem:[#allocation4 + $0x7] ss:$0 sm:$0xff]
        %v2975 = vperm.slane %v2965, 0
        %v2976 = vperm.slane %v2965, 1
        %v2977 = vperm.slane %v2965, 2
        %2981 = vmatpush.msra.mxu0 %v2898
        %2982 = vmatpush.msra.mxu0 %v2895
        %2983 = vmatpush.msra.mxu0 %v2892
        %2984 = vmatpush.msra.mxu0 %v2889
        %2985 = vmatpush.msra.mxu0 %v2886
        %2986 = vmatpush.msra.mxu0 %v2883
        %2987 = vmatpush.msra.mxu0 %v2880
        %2988 = vmatpush.msra.mxu0 %v2877
        %2989 = vmatpush.msra.mxu0 %v2874
        %2990 = vmatpush.msra.mxu0 %v2871
        %2991 = vmatpush.msra.mxu0 %v2868
        %2992 = vmatpush.msra.mxu0 %v2865
        %2993 = vmatpush.msra.mxu0 %v2862
        %2994 = vmatpush.msra.mxu0 %v2859
        %2995 = vmatpush.msra.mxu0 %v2856
        %2996 = vmatpush.msra.mxu0 %v2853
        %2997 = vmatmul.f32.gmra.mxu0 %v2836
        %v2998 = vpop.f32.mrf.mxu0
        %v2999 = vadd.f32 %v2975, %v2998
        %3000 = vdwg.mxu0
        %3001 = vmatpush.msra.mxu0 %v2899
        %3002 = vmatpush.msra.mxu0 %v2896
        %3003 = vmatpush.msra.mxu0 %v2893
        %3004 = vmatpush.msra.mxu0 %v2890
        %3005 = vmatpush.msra.mxu0 %v2887
        %3006 = vmatpush.msra.mxu0 %v2884
        %3007 = vmatpush.msra.mxu0 %v2881
        %3008 = vmatpush.msra.mxu0 %v2878
        %3009 = vmatpush.msra.mxu0 %v2875
        %3010 = vmatpush.msra.mxu0 %v2872
        %3011 = vmatpush.msra.mxu0 %v2869
        %3012 = vmatpush.msra.mxu0 %v2866
        %3013 = vmatpush.msra.mxu0 %v2863
        %3014 = vmatpush.msra.mxu0 %v2860
        %3015 = vmatpush.msra.mxu0 %v2857
        %3016 = vmatpush.msra.mxu0 %v2854
        %3017 = vmatmul.f32.gmra.mxu0 %v2836
        %v3018 = vpop.f32.mrf.mxu0
        %v3019 = vadd.f32 %v2976, %v3018
        %3020 = vdwg.mxu0
        %3021 = vmatpush.msra.mxu0 %v2900
        %3022 = vmatpush.msra.mxu0 %v2897
        %3023 = vmatpush.msra.mxu0 %v2894
        %3024 = vmatpush.msra.mxu0 %v2891
        %3025 = vmatpush.msra.mxu0 %v2888
        %3026 = vmatpush.msra.mxu0 %v2885
        %3027 = vmatpush.msra.mxu0 %v2882
        %3028 = vmatpush.msra.mxu0 %v2879
        %3029 = vmatpush.msra.mxu0 %v2876
        %3030 = vmatpush.msra.mxu0 %v2873
        %3031 = vmatpush.msra.mxu0 %v2870
        %3032 = vmatpush.msra.mxu0 %v2867
        %3033 = vmatpush.msra.mxu0 %v2864
        %3034 = vmatpush.msra.mxu0 %v2861
        %3035 = vmatpush.msra.mxu0 %v2858
        %3036 = vmatpush.msra.mxu0 %v2855
        %3037 = vmatmul.f32.gmra.mxu0 %v2836
        %v3038 = vpop.f32.mrf.mxu0
        %v3039 = vadd.f32 %v2977, %v3038
        %3040 = vdwg.mxu0
        %v3041 = vmul.f32 %v2999, 0.125
        %v3043 = vsel %vm2829, %v3041, 0
        %v3046 = vsel %vm2829, %v3019, 0
        %3048 = vmatpush.xpose.msra.mxu0 0.0
        %3049 = vmatpush.xpose.msra.mxu0 0.0
        %3050 = vmatpush.xpose.msra.mxu0 0.0
        %3051 = vmatpush.xpose.msra.mxu0 0.0
        %3052 = vmatpush.xpose.msra.mxu0 0.0
        %3053 = vmatpush.xpose.msra.mxu0 0.0
        %3054 = vmatpush.xpose.msra.mxu0 0.0
        %3055 = vmatpush.xpose.msra.mxu0 0.0
        %3056 = vmatpush.xpose.msra.mxu0 0.0
        %3057 = vmatpush.xpose.msra.mxu0 0.0
        %3058 = vmatpush.xpose.msra.mxu0 0.0
        %3059 = vmatpush.xpose.msra.mxu0 0.0
        %3060 = vmatpush.xpose.msra.mxu0 0.0
        %3061 = vmatpush.xpose.msra.mxu0 0.0
        %3062 = vmatpush.xpose.msra.mxu0 0.0
        %3063 = vmatpush.xpose.msra.mxu0 %v3046
        %3064 = vmatmul.f32.gmra.mxu0 %v3043
        %v3065 = vpop.f32.mrf.mxu0
        %v3066 = vadd.f32 0.0, %v3065
        %3067 = vdwg.mxu0
        %vm3068 = vcmask 46080
        %v3069 = vsel %vm3068, %v3066, -inf
        %3070 = vmax.xlane.f32.xlu0 %v3069
        %v3071 = vpop.xlane.xlu0 %3070
        %v3072 = vsub.f32 %v3066, %v3071
        %v3073 = vmul.f32 %v3072, 1.442695
        %v3074 = vpow.pop %v3073
        %v3075 = vsel %vm3068, %v3074, 0.0
        %3076 = vadd.xlane.f32.xlu0 %v3075
        %v3077 = vpop.xlane.xlu0 %3076
        %v3078 = vrcp.pop %v3077
        %v3079 = vmul.f32 %v3077, %v3078
        %v3080 = vsub.f32 1.0, %v3079
        %v3081 = vmul.f32 %v3078, %v3080
        %v3082 = vadd.f32 %v3078, %v3081
        %vm3083 = vweird.f32 %v3077
        %vm3084 = vweird.f32 %v3078
        %vm3085 = vmor %vm3083, %vm3084
        %v3086 = vsel %vm3085, %v3078, %v3082
        %v3087 = vand.u32 2147483647, %v3077
        %vm3088 = vcmp.eq.f32.partialorder %v3087, 8.507059e+37
        %v3089 = vand.u32 %v3077, 2147483648
        %v3090 = vor.u32 1.1754944e-38, %v3089
        %v3091 = vsel %vm3088, %v3090, %v3086
        %v3092 = vmul.f32 %v3074, %v3091
        %vm3093 = vcmask 48128
        %v3095 = vsel %vm3093, %v3092, 0
        %vm3097 = vcmask 1045504
        %v3099 = vsel %vm3097, %v3039, 0
        %3101 = vmatpush.msra.mxu0 0.0
        %3102 = vmatpush.msra.mxu0 0.0
        %3103 = vmatpush.msra.mxu0 0.0
        %3104 = vmatpush.msra.mxu0 0.0
        %3105 = vmatpush.msra.mxu0 0.0
        %3106 = vmatpush.msra.mxu0 0.0
        %3107 = vmatpush.msra.mxu0 0.0
        %3108 = vmatpush.msra.mxu0 0.0
        %3109 = vmatpush.msra.mxu0 0.0
        %3110 = vmatpush.msra.mxu0 0.0
        %3111 = vmatpush.msra.mxu0 0.0
        %3112 = vmatpush.msra.mxu0 0.0
        %3113 = vmatpush.msra.mxu0 0.0
        %3114 = vmatpush.msra.mxu0 0.0
        %3115 = vmatpush.msra.mxu0 0.0
        %3116 = vmatpush.msra.mxu0 %v3099
        %3117 = vmatmul.f32.gmra.mxu0 %v3095
        %v3118 = vpop.f32.mrf.mxu0
        %v3119 = vadd.f32 0.0, %v3118
        %3120 = vdwg.mxu0
        %v3121 = vld [vmem:[#allocation2 + $0x18] sm:$0xff]
        %v3122 = vld [vmem:[#allocation2 + $0x48] sm:$0xff]
        %v3123 = vld [vmem:[#allocation2 + $0x78] sm:$0xff]
        %v3124 = vld [vmem:[#allocation2 + $0xa8] sm:$0xff]
        %v3125 = vld [vmem:[#allocation2 + $0xd8] sm:$0xff]
        %v3126 = vld [vmem:[#allocation2 + $0x108] sm:$0xff]
        %v3127 = vld [vmem:[#allocation2 + $0x138] sm:$0xff]
        %v3128 = vld [vmem:[#allocation2 + $0x168] sm:$0xff]
        %3129 = vrot.lane.b32.xlu0 %v3041, 64
        %v3130 = vpop.permute.xlu0 %3129
        %3131 = vrot.lane.b32.xlu0 %v3019, 64
        %v3132 = vpop.permute.xlu0 %3131
        %v3133 = vsel %vm2829, %v3130, 0
        %v3135 = vsel %vm2829, %v3132, 0
        %3137 = vmatpush.xpose.msra.mxu0 0.0
        %3138 = vmatpush.xpose.msra.mxu0 0.0
        %3139 = vmatpush.xpose.msra.mxu0 0.0
        %3140 = vmatpush.xpose.msra.mxu0 0.0
        %3141 = vmatpush.xpose.msra.mxu0 0.0
        %3142 = vmatpush.xpose.msra.mxu0 0.0
        %3143 = vmatpush.xpose.msra.mxu0 0.0
        %3144 = vmatpush.xpose.msra.mxu0 0.0
        %3145 = vmatpush.xpose.msra.mxu0 0.0
        %3146 = vmatpush.xpose.msra.mxu0 0.0
        %3147 = vmatpush.xpose.msra.mxu0 0.0
        %3148 = vmatpush.xpose.msra.mxu0 0.0
        %3149 = vmatpush.xpose.msra.mxu0 0.0
        %3150 = vmatpush.xpose.msra.mxu0 0.0
        %3151 = vmatpush.xpose.msra.mxu0 0.0
        %3152 = vmatpush.xpose.msra.mxu0 %v3135
        %3153 = vmatmul.f32.gmra.mxu0 %v3133
        %v3154 = vpop.f32.mrf.mxu0
        %v3155 = vadd.f32 0.0, %v3154
        %3156 = vdwg.mxu0
        %v3157 = vsel %vm3068, %v3155, -inf
        %3158 = vmax.xlane.f32.xlu0 %v3157
        %v3159 = vpop.xlane.xlu0 %3158
        %v3160 = vsub.f32 %v3155, %v3159
        %v3161 = vmul.f32 %v3160, 1.442695
        %v3162 = vpow.pop %v3161
        %v3163 = vsel %vm3068, %v3162, 0.0
        %3164 = vadd.xlane.f32.xlu0 %v3163
        %v3165 = vpop.xlane.xlu0 %3164
        %v3166 = vrcp.pop %v3165
        %v3167 = vmul.f32 %v3165, %v3166
        %v3168 = vsub.f32 1.0, %v3167
        %v3169 = vmul.f32 %v3166, %v3168
        %v3170 = vadd.f32 %v3166, %v3169
        %vm3171 = vweird.f32 %v3165
        %vm3172 = vweird.f32 %v3166
        %vm3173 = vmor %vm3171, %vm3172
        %v3174 = vsel %vm3173, %v3166, %v3170
        %v3175 = vand.u32 2147483647, %v3165
        %vm3176 = vcmp.eq.f32.partialorder %v3175, 8.507059e+37
        %v3177 = vand.u32 %v3165, 2147483648
        %v3178 = vor.u32 1.1754944e-38, %v3177
        %v3179 = vsel %vm3176, %v3178, %v3174
        %v3180 = vmul.f32 %v3162, %v3179
        %3181 = vrot.lane.b32.xlu0 %v3039, 64
        %v3182 = vpop.permute.xlu0 %3181
        %v3184 = vsel %vm3093, %v3180, 0
        %v3186 = vsel %vm3097, %v3182, 0
        %3188 = vmatpush.msra.mxu0 0.0
        %3189 = vmatpush.msra.mxu0 0.0
        %3190 = vmatpush.msra.mxu0 0.0
        %3191 = vmatpush.msra.mxu0 0.0
        %3192 = vmatpush.msra.mxu0 0.0
        %3193 = vmatpush.msra.mxu0 0.0
        %3194 = vmatpush.msra.mxu0 0.0
        %3195 = vmatpush.msra.mxu0 0.0
        %3196 = vmatpush.msra.mxu0 0.0
        %3197 = vmatpush.msra.mxu0 0.0
        %3198 = vmatpush.msra.mxu0 0.0
        %3199 = vmatpush.msra.mxu0 0.0
        %3200 = vmatpush.msra.mxu0 0.0
        %3201 = vmatpush.msra.mxu0 0.0
        %3202 = vmatpush.msra.mxu0 0.0
        %3203 = vmatpush.msra.mxu0 %v3186
        %3204 = vmatmul.f32.gmra.mxu0 %v3184
        %v3205 = vpop.f32.mrf.mxu0
        %v3206 = vadd.f32 0.0, %v3205
        %3207 = vdwg.mxu0
        %v3208 = vld [vmem:[#allocation2 + $0x198] sm:$0xff]
        %v3209 = vld [vmem:[#allocation2 + $0x1c8] sm:$0xff]
        %v3210 = vld [vmem:[#allocation2 + $0x1f8] sm:$0xff]
        %v3211 = vld [vmem:[#allocation2 + $0x228] sm:$0xff]
        %v3212 = vld [vmem:[#allocation2 + $0x258] sm:$0xff]
        %v3213 = vld [vmem:[#allocation2 + $0x288] sm:$0xff]
        %v3214 = vld [vmem:[#allocation2 + $0x2b8] sm:$0xff]
        %v3215 = vld [vmem:[#allocation2 + $0x2e8] sm:$0xff]
        %v3217 = vsel %vm2829, %v3206, 0
        %3219 = vmatpush.msra.mxu0 0.0
        %3220 = vmatpush.msra.mxu0 0.0
        %3221 = vmatpush.msra.mxu0 0.0
        %3222 = vmatpush.msra.mxu0 0.0
        %3223 = vmatpush.msra.mxu0 0.0
        %3224 = vmatpush.msra.mxu0 0.0
        %3225 = vmatpush.msra.mxu0 0.0
        %3226 = vmatpush.msra.mxu0 0.0
        %3227 = vmatpush.msra.mxu0 %v3215
        %3228 = vmatpush.msra.mxu0 %v3214
        %3229 = vmatpush.msra.mxu0 %v3213
        %3230 = vmatpush.msra.mxu0 %v3212
        %3231 = vmatpush.msra.mxu0 %v3211
        %3232 = vmatpush.msra.mxu0 %v3210
        %3233 = vmatpush.msra.mxu0 %v3209
        %3234 = vmatpush.msra.mxu0 %v3208
        %3235 = vmatmul.f32.gmra.mxu0 %v3217
        %v3236 = vpop.f32.mrf.mxu0
        %v3237 = vadd.f32 0.0, %v3236
        %3238 = vdwg.mxu0
        %v3240 = vsel %vm2829, %v3119, 0
        %3242 = vmatpush.msra.mxu0 0.0
        %3243 = vmatpush.msra.mxu0 0.0
        %3244 = vmatpush.msra.mxu0 0.0
        %3245 = vmatpush.msra.mxu0 0.0
        %3246 = vmatpush.msra.mxu0 0.0
        %3247 = vmatpush.msra.mxu0 0.0
        %3248 = vmatpush.msra.mxu0 0.0
        %3249 = vmatpush.msra.mxu0 0.0
        %3250 = vmatpush.msra.mxu0 %v3128
        %3251 = vmatpush.msra.mxu0 %v3127
        %3252 = vmatpush.msra.mxu0 %v3126
        %3253 = vmatpush.msra.mxu0 %v3125
        %3254 = vmatpush.msra.mxu0 %v3124
        %3255 = vmatpush.msra.mxu0 %v3123
        %3256 = vmatpush.msra.mxu0 %v3122
        %3257 = vmatpush.msra.mxu0 %v3121
        %3258 = vmatmul.f32.gmra.mxu0 %v3240
        %v3259 = vpop.f32.mrf.mxu0
        %v3260 = vadd.f32 %v3237, %v3259
        %3261 = vdwg.mxu0
        %v3262 = vadd.f32 %v3260, %v2966
        %v3263 = vadd.f32 %v2836, %v3262
        %v3264 = vsel %vm3097, %v3263, 0.0
        %3265 = vadd.xlane.f32.xlu0 %v3264
        %v3266 = vpop.xlane.xlu0 %3265
        %v3267 = vrcp.pop 128.0
        %v3268 = vmul.f32 128.0, %v3267
        %v3269 = vsub.f32 1.0, %v3268
        %v3270 = vmul.f32 %v3267, %v3269
        %v3271 = vadd.f32 %v3267, %v3270
        %vm3272 = vweird.f32 %v3267
        %v3273 = vsel %vm3272, %v3267, %v3271
        %v3274 = vmul.f32 %v3266, %v3273
        %v3275 = vsub.f32 %v3263, %v3274
        %v3276 = vmul.f32 %v3275, %v3275
        %v3277 = vsel %vm3097, %v3276, 0.0
        %3278 = vadd.xlane.f32.xlu0 %v3277
        %v3279 = vpop.xlane.xlu0 %3278
        %v3280 = vmul.f32 %v3279, %v3273
        %v3281 = vadd.f32 %v3280, 1e-05
        %v3282 = vrsqrt.pop %v3281
        %v3283 = vmul.f32 %v3282, %v3281
        %v3284 = vmul.f32 %v3283, %v3282
        %v3285 = vmul.f32 0.5, %v3284
        %v3286 = vsub.f32 1.5, %v3285
        %v3287 = vmul.f32 %v3282, %v3286
        %vm3288 = vweird.f32 %v3281
        %vm3289 = vweird.f32 %v3282
        %vm3290 = vmor %vm3288, %vm3289
        %v3291 = vsel %vm3290, %v3282, %v3287
        %v3292 = vmul.f32 %v3275, %v3291
        %v3293 = vmul.f32 %v3292, %v2970
        %v3294 = vadd.f32 %v3293, %v2971
        %v3296 = vperm.slane %v2968, 0
        %v3297 = vperm.slane %v2968, 1
        %3300 = vmatpush.msra.mxu0 %v2931
        %3301 = vmatpush.msra.mxu0 %v2929
        %3302 = vmatpush.msra.mxu0 %v2927
        %3303 = vmatpush.msra.mxu0 %v2925
        %3304 = vmatpush.msra.mxu0 %v2923
        %3305 = vmatpush.msra.mxu0 %v2921
        %3306 = vmatpush.msra.mxu0 %v2919
        %3307 = vmatpush.msra.mxu0 %v2917
        %3308 = vmatpush.msra.mxu0 %v2915
        %3309 = vmatpush.msra.mxu0 %v2913
        %3310 = vmatpush.msra.mxu0 %v2911
        %3311 = vmatpush.msra.mxu0 %v2909
        %3312 = vmatpush.msra.mxu0 %v2907
        %3313 = vmatpush.msra.mxu0 %v2905
        %3314 = vmatpush.msra.mxu0 %v2903
        %3315 = vmatpush.msra.mxu0 %v2901
        %3316 = vmatmul.f32.gmra.mxu0 %v3294
        %v3317 = vpop.f32.mrf.mxu0
        %v3318 = vadd.f32 %v3296, %v3317
        %3319 = vdwg.mxu0
        %3320 = vmatpush.msra.mxu0 %v2932
        %3321 = vmatpush.msra.mxu0 %v2930
        %3322 = vmatpush.msra.mxu0 %v2928
        %3323 = vmatpush.msra.mxu0 %v2926
        %3324 = vmatpush.msra.mxu0 %v2924
        %3325 = vmatpush.msra.mxu0 %v2922
        %3326 = vmatpush.msra.mxu0 %v2920
        %3327 = vmatpush.msra.mxu0 %v2918
        %3328 = vmatpush.msra.mxu0 %v2916
        %3329 = vmatpush.msra.mxu0 %v2914
        %3330 = vmatpush.msra.mxu0 %v2912
        %3331 = vmatpush.msra.mxu0 %v2910
        %3332 = vmatpush.msra.mxu0 %v2908
        %3333 = vmatpush.msra.mxu0 %v2906
        %3334 = vmatpush.msra.mxu0 %v2904
        %3335 = vmatpush.msra.mxu0 %v2902
        %3336 = vmatmul.f32.gmra.mxu0 %v3294
        %v3337 = vpop.f32.mrf.mxu0
        %v3338 = vadd.f32 %v3297, %v3337
        %3339 = vdwg.mxu0
        %v3340 = vmax.f32 %v3318, 0.0
        %v3341 = vmax.f32 %v3338, 0.0
        %3342 = vmatpush.msra.mxu0 %v2948
        %3343 = vmatpush.msra.mxu0 %v2947
        %3344 = vmatpush.msra.mxu0 %v2946
        %3345 = vmatpush.msra.mxu0 %v2945
        %3346 = vmatpush.msra.mxu0 %v2944
        %3347 = vmatpush.msra.mxu0 %v2943
        %3348 = vmatpush.msra.mxu0 %v2942
        %3349 = vmatpush.msra.mxu0 %v2941
        %3350 = vmatpush.msra.mxu0 %v2940
        %3351 = vmatpush.msra.mxu0 %v2939
        %3352 = vmatpush.msra.mxu0 %v2938
        %3353 = vmatpush.msra.mxu0 %v2937
        %3354 = vmatpush.msra.mxu0 %v2936
        %3355 = vmatpush.msra.mxu0 %v2935
        %3356 = vmatpush.msra.mxu0 %v2934
        %3357 = vmatpush.msra.mxu0 %v2933
        %3358 = vmatmul.f32.gmra.mxu0 %v3340
        %v3359 = vpop.f32.mrf.mxu0
        %v3360 = vadd.f32 %v2969, %v3359
        %3361 = vdwg.mxu0
        %3362 = vmatpush.msra.mxu0 %v2964
        %3363 = vmatpush.msra.mxu0 %v2963
        %3364 = vmatpush.msra.mxu0 %v2962
        %3365 = vmatpush.msra.mxu0 %v2961
        %3366 = vmatpush.msra.mxu0 %v2960
        %3367 = vmatpush.msra.mxu0 %v2959
        %3368 = vmatpush.msra.mxu0 %v2958
        %3369 = vmatpush.msra.mxu0 %v2957
        %3370 = vmatpush.msra.mxu0 %v2956
        %3371 = vmatpush.msra.mxu0 %v2955
        %3372 = vmatpush.msra.mxu0 %v2954
        %3373 = vmatpush.msra.mxu0 %v2953
        %3374 = vmatpush.msra.mxu0 %v2952
        %3375 = vmatpush.msra.mxu0 %v2951
        %3376 = vmatpush.msra.mxu0 %v2950
        %3377 = vmatpush.msra.mxu0 %v2949
        %3378 = vmatmul.f32.gmra.mxu0 %v3341
        %v3379 = vpop.f32.mrf.mxu0
        %v3380 = vadd.f32 %v3360, %v3379
        %3381 = vdwg.mxu0
        %v3382 = vadd.f32 %v3294, %v3380
        %v3383 = vsel %vm3097, %v3382, 0.0
        %3384 = vadd.xlane.f32.xlu0 %v3383
        %v3385 = vpop.xlane.xlu0 %3384
        %v3386 = vmul.f32 %v3385, %v3273
        %v3387 = vsub.f32 %v3382, %v3386
        %v3388 = vmul.f32 %v3387, %v3387
        %v3389 = vsel %vm3097, %v3388, 0.0
        %3390 = vadd.xlane.f32.xlu0 %v3389
        %v3391 = vpop.xlane.xlu0 %3390
        %v3392 = vmul.f32 %v3391, %v3273
        %v3393 = vadd.f32 %v3392, 1e-05
        %v3394 = vrsqrt.pop %v3393
        %v3395 = vmul.f32 %v3394, %v3393
        %v3396 = vmul.f32 %v3395, %v3394
        %v3397 = vmul.f32 0.5, %v3396
        %v3398 = vsub.f32 1.5, %v3397
        %v3399 = vmul.f32 %v3394, %v3398
        %vm3400 = vweird.f32 %v3393
        %vm3401 = vweird.f32 %v3394
        %vm3402 = vmor %vm3400, %vm3401
        %v3403 = vsel %vm3402, %v3394, %v3399
        %v3404 = vmul.f32 %v3387, %v3403
        %v3405 = vmul.f32 %v3404, %v2972
        %v3406 = vadd.f32 %v3405, %v2973
        %s3407 = scalar_lea.vmem [#allocation2], 768
        %v3408 = vld [vmem:[%s3407] sm:$0xff]
        %v3409 = vld [vmem:[%s3407 + $0x8] sm:$0xff]
        %v3410 = vld [vmem:[%s3407 + $0x10] sm:$0xff]
        %v3411 = vld [vmem:[%s3407 + $0x30] sm:$0xff]
        %v3412 = vld [vmem:[%s3407 + $0x38] sm:$0xff]
        %v3413 = vld [vmem:[%s3407 + $0x40] sm:$0xff]
        %v3414 = vld [vmem:[%s3407 + $0x60] sm:$0xff]
        %v3415 = vld [vmem:[%s3407 + $0x68] sm:$0xff]
        %v3416 = vld [vmem:[%s3407 + $0x70] sm:$0xff]
        %v3417 = vld [vmem:[%s3407 + $0x90] sm:$0xff]
        %v3418 = vld [vmem:[%s3407 + $0x98] sm:$0xff]
        %v3419 = vld [vmem:[%s3407 + $0xa0] sm:$0xff]
        %v3420 = vld [vmem:[%s3407 + $0xc0] sm:$0xff]
        %v3421 = vld [vmem:[%s3407 + $0xc8] sm:$0xff]
        %v3422 = vld [vmem:[%s3407 + $0xd0] sm:$0xff]
        %v3423 = vld [vmem:[%s3407 + $0xf0] sm:$0xff]
        %v3424 = vld [vmem:[%s3407 + $0xf8] sm:$0xff]
        %v3425 = vld [vmem:[%s3407 + $0x100] sm:$0xff]
        %v3426 = vld [vmem:[%s3407 + $0x120] sm:$0xff]
        %v3427 = vld [vmem:[%s3407 + $0x128] sm:$0xff]
        %v3428 = vld [vmem:[%s3407 + $0x130] sm:$0xff]
        %v3429 = vld [vmem:[%s3407 + $0x150] sm:$0xff]
        %v3430 = vld [vmem:[%s3407 + $0x158] sm:$0xff]
        %v3431 = vld [vmem:[%s3407 + $0x160] sm:$0xff]
        %v3432 = vld [vmem:[%s3407 + $0x180] sm:$0xff]
        %v3433 = vld [vmem:[%s3407 + $0x188] sm:$0xff]
        %v3434 = vld [vmem:[%s3407 + $0x190] sm:$0xff]
        %v3435 = vld [vmem:[%s3407 + $0x1b0] sm:$0xff]
        %v3436 = vld [vmem:[%s3407 + $0x1b8] sm:$0xff]
        %v3437 = vld [vmem:[%s3407 + $0x1c0] sm:$0xff]
        %v3438 = vld [vmem:[%s3407 + $0x1e0] sm:$0xff]
        %v3439 = vld [vmem:[%s3407 + $0x1e8] sm:$0xff]
        %v3440 = vld [vmem:[%s3407 + $0x1f0] sm:$0xff]
        %v3441 = vld [vmem:[%s3407 + $0x210] sm:$0xff]
        %v3442 = vld [vmem:[%s3407 + $0x218] sm:$0xff]
        %v3443 = vld [vmem:[%s3407 + $0x220] sm:$0xff]
        %v3444 = vld [vmem:[%s3407 + $0x240] sm:$0xff]
        %v3445 = vld [vmem:[%s3407 + $0x248] sm:$0xff]
        %v3446 = vld [vmem:[%s3407 + $0x250] sm:$0xff]
        %v3447 = vld [vmem:[%s3407 + $0x270] sm:$0xff]
        %v3448 = vld [vmem:[%s3407 + $0x278] sm:$0xff]
        %v3449 = vld [vmem:[%s3407 + $0x280] sm:$0xff]
        %v3450 = vld [vmem:[%s3407 + $0x2a0] sm:$0xff]
        %v3451 = vld [vmem:[%s3407 + $0x2a8] sm:$0xff]
        %v3452 = vld [vmem:[%s3407 + $0x2b0] sm:$0xff]
        %v3453 = vld [vmem:[%s3407 + $0x2d0] sm:$0xff]
        %v3454 = vld [vmem:[%s3407 + $0x2d8] sm:$0xff]
        %v3455 = vld [vmem:[%s3407 + $0x2e0] sm:$0xff]
        %v3456 = vld [vmem:[%s3407 + $0x20] sm:$0xff]
        %v3457 = vld [vmem:[%s3407 + $0x28] sm:$0xff]
        %v3458 = vld [vmem:[%s3407 + $0x50] sm:$0xff]
        %v3459 = vld [vmem:[%s3407 + $0x58] sm:$0xff]
        %v3460 = vld [vmem:[%s3407 + $0x80] sm:$0xff]
        %v3461 = vld [vmem:[%s3407 + $0x88] sm:$0xff]
        %v3462 = vld [vmem:[%s3407 + $0xb0] sm:$0xff]
        %v3463 = vld [vmem:[%s3407 + $0xb8] sm:$0xff]
        %v3464 = vld [vmem:[%s3407 + $0xe0] sm:$0xff]
        %v3465 = vld [vmem:[%s3407 + $0xe8] sm:$0xff]
        %v3466 = vld [vmem:[%s3407 + $0x110] sm:$0xff]
        %v3467 = vld [vmem:[%s3407 + $0x118] sm:$0xff]
        %v3468 = vld [vmem:[%s3407 + $0x140] sm:$0xff]
        %v3469 = vld [vmem:[%s3407 + $0x148] sm:$0xff]
        %v3470 = vld [vmem:[%s3407 + $0x170] sm:$0xff]
        %v3471 = vld [vmem:[%s3407 + $0x178] sm:$0xff]
        %v3472 = vld [vmem:[%s3407 + $0x1a0] sm:$0xff]
        %v3473 = vld [vmem:[%s3407 + $0x1a8] sm:$0xff]
        %v3474 = vld [vmem:[%s3407 + $0x1d0] sm:$0xff]
        %v3475 = vld [vmem:[%s3407 + $0x1d8] sm:$0xff]
        %v3476 = vld [vmem:[%s3407 + $0x200] sm:$0xff]
        %v3477 = vld [vmem:[%s3407 + $0x208] sm:$0xff]
        %v3478 = vld [vmem:[%s3407 + $0x230] sm:$0xff]
        %v3479 = vld [vmem:[%s3407 + $0x238] sm:$0xff]
        %v3480 = vld [vmem:[%s3407 + $0x260] sm:$0xff]
        %v3481 = vld [vmem:[%s3407 + $0x268] sm:$0xff]
        %v3482 = vld [vmem:[%s3407 + $0x290] sm:$0xff]
        %v3483 = vld [vmem:[%s3407 + $0x298] sm:$0xff]
        %v3484 = vld [vmem:[%s3407 + $0x2c0] sm:$0xff]
        %v3485 = vld [vmem:[%s3407 + $0x2c8] sm:$0xff]
        %v3486 = vld [vmem:[%s3407 + $0x2f0] sm:$0xff]
        %v3487 = vld [vmem:[%s3407 + $0x2f8] sm:$0xff]
        %s3488 = scalar_lea.vmem [#allocation3], 256
        %v3489 = vld [vmem:[%s3488] sm:$0xff]
        %v3490 = vld [vmem:[%s3488 + $0x8] sm:$0xff]
        %v3491 = vld [vmem:[%s3488 + $0x10] sm:$0xff]
        %v3492 = vld [vmem:[%s3488 + $0x18] sm:$0xff]
        %v3493 = vld [vmem:[%s3488 + $0x20] sm:$0xff]
        %v3494 = vld [vmem:[%s3488 + $0x28] sm:$0xff]
        %v3495 = vld [vmem:[%s3488 + $0x30] sm:$0xff]
        %v3496 = vld [vmem:[%s3488 + $0x38] sm:$0xff]
        %v3497 = vld [vmem:[%s3488 + $0x40] sm:$0xff]
        %v3498 = vld [vmem:[%s3488 + $0x48] sm:$0xff]
        %v3499 = vld [vmem:[%s3488 + $0x50] sm:$0xff]
        %v3500 = vld [vmem:[%s3488 + $0x58] sm:$0xff]
        %v3501 = vld [vmem:[%s3488 + $0x60] sm:$0xff]
        %v3502 = vld [vmem:[%s3488 + $0x68] sm:$0xff]
        %v3503 = vld [vmem:[%s3488 + $0x70] sm:$0xff]
        %v3504 = vld [vmem:[%s3488 + $0x78] sm:$0xff]
        %v3505 = vld [vmem:[%s3488 + $0x80] sm:$0xff]
        %v3506 = vld [vmem:[%s3488 + $0x88] sm:$0xff]
        %v3507 = vld [vmem:[%s3488 + $0x90] sm:$0xff]
        %v3508 = vld [vmem:[%s3488 + $0x98] sm:$0xff]
        %v3509 = vld [vmem:[%s3488 + $0xa0] sm:$0xff]
        %v3510 = vld [vmem:[%s3488 + $0xa8] sm:$0xff]
        %v3511 = vld [vmem:[%s3488 + $0xb0] sm:$0xff]
        %v3512 = vld [vmem:[%s3488 + $0xb8] sm:$0xff]
        %v3513 = vld [vmem:[%s3488 + $0xc0] sm:$0xff]
        %v3514 = vld [vmem:[%s3488 + $0xc8] sm:$0xff]
        %v3515 = vld [vmem:[%s3488 + $0xd0] sm:$0xff]
        %v3516 = vld [vmem:[%s3488 + $0xd8] sm:$0xff]
        %v3517 = vld [vmem:[%s3488 + $0xe0] sm:$0xff]
        %v3518 = vld [vmem:[%s3488 + $0xe8] sm:$0xff]
        %v3519 = vld [vmem:[%s3488 + $0xf0] sm:$0xff]
        %v3520 = vld [vmem:[%s3488 + $0xf8] sm:$0xff]
        %s3521 = scalar_lea.vmem [#allocation4], 24
        %v3522 = vld [vmem:[%s3521] ss:$8 sm:$0x7]
        %v3523 = vld [vmem:[%s3521 + $0x1] ss:$0 sm:$0xff]
        %s3524 = scalar_lea.vmem %s3521, 2 [#allocation4]
        %v3525 = vld [vmem:[%s3524] ss:$8 sm:$0x3]
        %v3526 = vld [vmem:[%s3521 + $0x3] ss:$0 sm:$0xff]
        %v3527 = vld [vmem:[%s3521 + $0x4] ss:$0 sm:$0xff]
        %v3528 = vld [vmem:[%s3521 + $0x5] ss:$0 sm:$0xff]
        %v3529 = vld [vmem:[%s3521 + $0x6] ss:$0 sm:$0xff]
        %v3530 = vld [vmem:[%s3521 + $0x7] ss:$0 sm:$0xff]
        %v3532 = vperm.slane %v3522, 0
        %v3533 = vperm.slane %v3522, 1
        %v3534 = vperm.slane %v3522, 2
        %3538 = vmatpush.msra.mxu0 %v3453
        %3539 = vmatpush.msra.mxu0 %v3450
        %3540 = vmatpush.msra.mxu0 %v3447
        %3541 = vmatpush.msra.mxu0 %v3444
        %3542 = vmatpush.msra.mxu0 %v3441
        %3543 = vmatpush.msra.mxu0 %v3438
        %3544 = vmatpush.msra.mxu0 %v3435
        %3545 = vmatpush.msra.mxu0 %v3432
        %3546 = vmatpush.msra.mxu0 %v3429
        %3547 = vmatpush.msra.mxu0 %v3426
        %3548 = vmatpush.msra.mxu0 %v3423
        %3549 = vmatpush.msra.mxu0 %v3420
        %3550 = vmatpush.msra.mxu0 %v3417
        %3551 = vmatpush.msra.mxu0 %v3414
        %3552 = vmatpush.msra.mxu0 %v3411
        %3553 = vmatpush.msra.mxu0 %v3408
        %3554 = vmatmul.f32.gmra.mxu0 %v3406
        %v3555 = vpop.f32.mrf.mxu0
        %v3556 = vadd.f32 %v3532, %v3555
        %3557 = vdwg.mxu0
        %3558 = vmatpush.msra.mxu0 %v3454
        %3559 = vmatpush.msra.mxu0 %v3451
        %3560 = vmatpush.msra.mxu0 %v3448
        %3561 = vmatpush.msra.mxu0 %v3445
        %3562 = vmatpush.msra.mxu0 %v3442
        %3563 = vmatpush.msra.mxu0 %v3439
        %3564 = vmatpush.msra.mxu0 %v3436
        %3565 = vmatpush.msra.mxu0 %v3433
        %3566 = vmatpush.msra.mxu0 %v3430
        %3567 = vmatpush.msra.mxu0 %v3427
        %3568 = vmatpush.msra.mxu0 %v3424
        %3569 = vmatpush.msra.mxu0 %v3421
        %3570 = vmatpush.msra.mxu0 %v3418
        %3571 = vmatpush.msra.mxu0 %v3415
        %3572 = vmatpush.msra.mxu0 %v3412
        %3573 = vmatpush.msra.mxu0 %v3409
        %3574 = vmatmul.f32.gmra.mxu0 %v3406
        %v3575 = vpop.f32.mrf.mxu0
        %v3576 = vadd.f32 %v3533, %v3575
        %3577 = vdwg.mxu0
        %3578 = vmatpush.msra.mxu0 %v3455
        %3579 = vmatpush.msra.mxu0 %v3452
        %3580 = vmatpush.msra.mxu0 %v3449
        %3581 = vmatpush.msra.mxu0 %v3446
        %3582 = vmatpush.msra.mxu0 %v3443
        %3583 = vmatpush.msra.mxu0 %v3440
        %3584 = vmatpush.msra.mxu0 %v3437
        %3585 = vmatpush.msra.mxu0 %v3434
        %3586 = vmatpush.msra.mxu0 %v3431
        %3587 = vmatpush.msra.mxu0 %v3428
        %3588 = vmatpush.msra.mxu0 %v3425
        %3589 = vmatpush.msra.mxu0 %v3422
        %3590 = vmatpush.msra.mxu0 %v3419
        %3591 = vmatpush.msra.mxu0 %v3416
        %3592 = vmatpush.msra.mxu0 %v3413
        %3593 = vmatpush.msra.mxu0 %v3410
        %3594 = vmatmul.f32.gmra.mxu0 %v3406
        %v3595 = vpop.f32.mrf.mxu0
        %v3596 = vadd.f32 %v3534, %v3595
        %3597 = vdwg.mxu0
        %v3598 = vmul.f32 %v3556, 0.125
        %v3600 = vsel %vm2829, %v3598, 0
        %v3603 = vsel %vm2829, %v3576, 0
        %3605 = vmatpush.xpose.msra.mxu0 0.0
        %3606 = vmatpush.xpose.msra.mxu0 0.0
        %3607 = vmatpush.xpose.msra.mxu0 0.0
        %3608 = vmatpush.xpose.msra.mxu0 0.0
        %3609 = vmatpush.xpose.msra.mxu0 0.0
        %3610 = vmatpush.xpose.msra.mxu0 0.0
        %3611 = vmatpush.xpose.msra.mxu0 0.0
        %3612 = vmatpush.xpose.msra.mxu0 0.0
        %3613 = vmatpush.xpose.msra.mxu0 0.0
        %3614 = vmatpush.xpose.msra.mxu0 0.0
        %3615 = vmatpush.xpose.msra.mxu0 0.0
        %3616 = vmatpush.xpose.msra.mxu0 0.0
        %3617 = vmatpush.xpose.msra.mxu0 0.0
        %3618 = vmatpush.xpose.msra.mxu0 0.0
        %3619 = vmatpush.xpose.msra.mxu0 0.0
        %3620 = vmatpush.xpose.msra.mxu0 %v3603
        %3621 = vmatmul.f32.gmra.mxu0 %v3600
        %v3622 = vpop.f32.mrf.mxu0
        %v3623 = vadd.f32 0.0, %v3622
        %3624 = vdwg.mxu0
        %v3625 = vsel %vm3068, %v3623, -inf
        %3626 = vmax.xlane.f32.xlu0 %v3625
        %v3627 = vpop.xlane.xlu0 %3626
        %v3628 = vsub.f32 %v3623, %v3627
        %v3629 = vmul.f32 %v3628, 1.442695
        %v3630 = vpow.pop %v3629
        %v3631 = vsel %vm3068, %v3630, 0.0
        %3632 = vadd.xlane.f32.xlu0 %v3631
        %v3633 = vpop.xlane.xlu0 %3632
        %v3634 = vrcp.pop %v3633
        %v3635 = vmul.f32 %v3633, %v3634
        %v3636 = vsub.f32 1.0, %v3635
        %v3637 = vmul.f32 %v3634, %v3636
        %v3638 = vadd.f32 %v3634, %v3637
        %vm3639 = vweird.f32 %v3633
        %vm3640 = vweird.f32 %v3634
        %vm3641 = vmor %vm3639, %vm3640
        %v3642 = vsel %vm3641, %v3634, %v3638
        %v3643 = vand.u32 2147483647, %v3633
        %vm3644 = vcmp.eq.f32.partialorder %v3643, 8.507059e+37
        %v3645 = vand.u32 %v3633, 2147483648
        %v3646 = vor.u32 1.1754944e-38, %v3645
        %v3647 = vsel %vm3644, %v3646, %v3642
        %v3648 = vmul.f32 %v3630, %v3647
        %v3650 = vsel %vm3093, %v3648, 0
        %v3653 = vsel %vm3097, %v3596, 0
        %3655 = vmatpush.msra.mxu0 0.0
        %3656 = vmatpush.msra.mxu0 0.0
        %3657 = vmatpush.msra.mxu0 0.0
        %3658 = vmatpush.msra.mxu0 0.0
        %3659 = vmatpush.msra.mxu0 0.0
        %3660 = vmatpush.msra.mxu0 0.0
        %3661 = vmatpush.msra.mxu0 0.0
        %3662 = vmatpush.msra.mxu0 0.0
        %3663 = vmatpush.msra.mxu0 0.0
        %3664 = vmatpush.msra.mxu0 0.0
        %3665 = vmatpush.msra.mxu0 0.0
        %3666 = vmatpush.msra.mxu0 0.0
        %3667 = vmatpush.msra.mxu0 0.0
        %3668 = vmatpush.msra.mxu0 0.0
        %3669 = vmatpush.msra.mxu0 0.0
        %3670 = vmatpush.msra.mxu0 %v3653
        %3671 = vmatmul.f32.gmra.mxu0 %v3650
        %v3672 = vpop.f32.mrf.mxu0
        %v3673 = vadd.f32 0.0, %v3672
        %3674 = vdwg.mxu0
        %v3675 = vld [vmem:[%s3407 + $0x18] sm:$0xff]
        %v3676 = vld [vmem:[%s3407 + $0x48] sm:$0xff]
        %v3677 = vld [vmem:[%s3407 + $0x78] sm:$0xff]
        %v3678 = vld [vmem:[%s3407 + $0xa8] sm:$0xff]
        %v3679 = vld [vmem:[%s3407 + $0xd8] sm:$0xff]
        %v3680 = vld [vmem:[%s3407 + $0x108] sm:$0xff]
        %v3681 = vld [vmem:[%s3407 + $0x138] sm:$0xff]
        %v3682 = vld [vmem:[%s3407 + $0x168] sm:$0xff]
        %3683 = vrot.lane.b32.xlu0 %v3598, 64
        %v3684 = vpop.permute.xlu0 %3683
        %3685 = vrot.lane.b32.xlu0 %v3576, 64
        %v3686 = vpop.permute.xlu0 %3685
        %v3687 = vsel %vm2829, %v3684, 0
        %v3689 = vsel %vm2829, %v3686, 0
        %3691 = vmatpush.xpose.msra.mxu0 0.0
        %3692 = vmatpush.xpose.msra.mxu0 0.0
        %3693 = vmatpush.xpose.msra.mxu0 0.0
        %3694 = vmatpush.xpose.msra.mxu0 0.0
        %3695 = vmatpush.xpose.msra.mxu0 0.0
        %3696 = vmatpush.xpose.msra.mxu0 0.0
        %3697 = vmatpush.xpose.msra.mxu0 0.0
        %3698 = vmatpush.xpose.msra.mxu0 0.0
        %3699 = vmatpush.xpose.msra.mxu0 0.0
        %3700 = vmatpush.xpose.msra.mxu0 0.0
        %3701 = vmatpush.xpose.msra.mxu0 0.0
        %3702 = vmatpush.xpose.msra.mxu0 0.0
        %3703 = vmatpush.xpose.msra.mxu0 0.0
        %3704 = vmatpush.xpose.msra.mxu0 0.0
        %3705 = vmatpush.xpose.msra.mxu0 0.0
        %3706 = vmatpush.xpose.msra.mxu0 %v3689
        %3707 = vmatmul.f32.gmra.mxu0 %v3687
        %v3708 = vpop.f32.mrf.mxu0
        %v3709 = vadd.f32 0.0, %v3708
        %3710 = vdwg.mxu0
        %v3711 = vsel %vm3068, %v3709, -inf
        %3712 = vmax.xlane.f32.xlu0 %v3711
        %v3713 = vpop.xlane.xlu0 %3712
        %v3714 = vsub.f32 %v3709, %v3713
        %v3715 = vmul.f32 %v3714, 1.442695
        %v3716 = vpow.pop %v3715
        %v3717 = vsel %vm3068, %v3716, 0.0
        %3718 = vadd.xlane.f32.xlu0 %v3717
        %v3719 = vpop.xlane.xlu0 %3718
        %v3720 = vrcp.pop %v3719
        %v3721 = vmul.f32 %v3719, %v3720
        %v3722 = vsub.f32 1.0, %v3721
        %v3723 = vmul.f32 %v3720, %v3722
        %v3724 = vadd.f32 %v3720, %v3723
        %vm3725 = vweird.f32 %v3719
        %vm3726 = vweird.f32 %v3720
        %vm3727 = vmor %vm3725, %vm3726
        %v3728 = vsel %vm3727, %v3720, %v3724
        %v3729 = vand.u32 2147483647, %v3719
        %vm3730 = vcmp.eq.f32.partialorder %v3729, 8.507059e+37
        %v3731 = vand.u32 %v3719, 2147483648
        %v3732 = vor.u32 1.1754944e-38, %v3731
        %v3733 = vsel %vm3730, %v3732, %v3728
        %v3734 = vmul.f32 %v3716, %v3733
        %3735 = vrot.lane.b32.xlu0 %v3596, 64
        %v3736 = vpop.permute.xlu0 %3735
        %v3738 = vsel %vm3093, %v3734, 0
        %v3740 = vsel %vm3097, %v3736, 0
        %3742 = vmatpush.msra.mxu0 0.0
        %3743 = vmatpush.msra.mxu0 0.0
        %3744 = vmatpush.msra.mxu0 0.0
        %3745 = vmatpush.msra.mxu0 0.0
        %3746 = vmatpush.msra.mxu0 0.0
        %3747 = vmatpush.msra.mxu0 0.0
        %3748 = vmatpush.msra.mxu0 0.0
        %3749 = vmatpush.msra.mxu0 0.0
        %3750 = vmatpush.msra.mxu0 0.0
        %3751 = vmatpush.msra.mxu0 0.0
        %3752 = vmatpush.msra.mxu0 0.0
        %3753 = vmatpush.msra.mxu0 0.0
        %3754 = vmatpush.msra.mxu0 0.0
        %3755 = vmatpush.msra.mxu0 0.0
        %3756 = vmatpush.msra.mxu0 0.0
        %3757 = vmatpush.msra.mxu0 %v3740
        %3758 = vmatmul.f32.gmra.mxu0 %v3738
        %v3759 = vpop.f32.mrf.mxu0
        %v3760 = vadd.f32 0.0, %v3759
        %3761 = vdwg.mxu0
        %v3762 = vld [vmem:[%s3407 + $0x198] sm:$0xff]
        %v3763 = vld [vmem:[%s3407 + $0x1c8] sm:$0xff]
        %v3764 = vld [vmem:[%s3407 + $0x1f8] sm:$0xff]
        %v3765 = vld [vmem:[%s3407 + $0x228] sm:$0xff]
        %v3766 = vld [vmem:[%s3407 + $0x258] sm:$0xff]
        %v3767 = vld [vmem:[%s3407 + $0x288] sm:$0xff]
        %v3768 = vld [vmem:[%s3407 + $0x2b8] sm:$0xff]
        %v3769 = vld [vmem:[%s3407 + $0x2e8] sm:$0xff]
        %v3771 = vsel %vm2829, %v3760, 0
        %3773 = vmatpush.msra.mxu0 0.0
        %3774 = vmatpush.msra.mxu0 0.0
        %3775 = vmatpush.msra.mxu0 0.0
        %3776 = vmatpush.msra.mxu0 0.0
        %3777 = vmatpush.msra.mxu0 0.0
        %3778 = vmatpush.msra.mxu0 0.0
        %3779 = vmatpush.msra.mxu0 0.0
        %3780 = vmatpush.msra.mxu0 0.0
        %3781 = vmatpush.msra.mxu0 %v3769
        %3782 = vmatpush.msra.mxu0 %v3768
        %3783 = vmatpush.msra.mxu0 %v3767
        %3784 = vmatpush.msra.mxu0 %v3766
        %3785 = vmatpush.msra.mxu0 %v3765
        %3786 = vmatpush.msra.mxu0 %v3764
        %3787 = vmatpush.msra.mxu0 %v3763
        %3788 = vmatpush.msra.mxu0 %v3762
        %3789 = vmatmul.f32.gmra.mxu0 %v3771
        %v3790 = vpop.f32.mrf.mxu0
        %v3791 = vadd.f32 0.0, %v3790
        %3792 = vdwg.mxu0
        %v3794 = vsel %vm2829, %v3673, 0
        %3796 = vmatpush.msra.mxu0 0.0
        %3797 = vmatpush.msra.mxu0 0.0
        %3798 = vmatpush.msra.mxu0 0.0
        %3799 = vmatpush.msra.mxu0 0.0
        %3800 = vmatpush.msra.mxu0 0.0
        %3801 = vmatpush.msra.mxu0 0.0
        %3802 = vmatpush.msra.mxu0 0.0
        %3803 = vmatpush.msra.mxu0 0.0
        %3804 = vmatpush.msra.mxu0 %v3682
        %3805 = vmatpush.msra.mxu0 %v3681
        %3806 = vmatpush.msra.mxu0 %v3680
        %3807 = vmatpush.msra.mxu0 %v3679
        %3808 = vmatpush.msra.mxu0 %v3678
        %3809 = vmatpush.msra.mxu0 %v3677
        %3810 = vmatpush.msra.mxu0 %v3676
        %3811 = vmatpush.msra.mxu0 %v3675
        %3812 = vmatmul.f32.gmra.mxu0 %v3794
        %v3813 = vpop.f32.mrf.mxu0
        %v3814 = vadd.f32 %v3791, %v3813
        %3815 = vdwg.mxu0
        %v3816 = vadd.f32 %v3814, %v3523
        %v3817 = vadd.f32 %v3406, %v3816
        %v3818 = vsel %vm3097, %v3817, 0.0
        %3819 = vadd.xlane.f32.xlu0 %v3818
        %v3820 = vpop.xlane.xlu0 %3819
        %v3821 = vmul.f32 %v3820, %v3273
        %v3822 = vsub.f32 %v3817, %v3821
        %v3823 = vmul.f32 %v3822, %v3822
        %v3824 = vsel %vm3097, %v3823, 0.0
        %3825 = vadd.xlane.f32.xlu0 %v3824
        %v3826 = vpop.xlane.xlu0 %3825
        %v3827 = vmul.f32 %v3826, %v3273
        %v3828 = vadd.f32 %v3827, 1e-05
        %v3829 = vrsqrt.pop %v3828
        %v3830 = vmul.f32 %v3829, %v3828
        %v3831 = vmul.f32 %v3830, %v3829
        %v3832 = vmul.f32 0.5, %v3831
        %v3833 = vsub.f32 1.5, %v3832
        %v3834 = vmul.f32 %v3829, %v3833
        %vm3835 = vweird.f32 %v3828
        %vm3836 = vweird.f32 %v3829
        %vm3837 = vmor %vm3835, %vm3836
        %v3838 = vsel %vm3837, %v3829, %v3834
        %v3839 = vmul.f32 %v3822, %v3838
        %v3840 = vmul.f32 %v3839, %v3527
        %v3841 = vadd.f32 %v3840, %v3528
        %v3843 = vperm.slane %v3525, 0
        %v3844 = vperm.slane %v3525, 1
        %3847 = vmatpush.msra.mxu0 %v3486
        %3848 = vmatpush.msra.mxu0 %v3484
        %3849 = vmatpush.msra.mxu0 %v3482
        %3850 = vmatpush.msra.mxu0 %v3480
        %3851 = vmatpush.msra.mxu0 %v3478
        %3852 = vmatpush.msra.mxu0 %v3476
        %3853 = vmatpush.msra.mxu0 %v3474
        %3854 = vmatpush.msra.mxu0 %v3472
        %3855 = vmatpush.msra.mxu0 %v3470
        %3856 = vmatpush.msra.mxu0 %v3468
        %3857 = vmatpush.msra.mxu0 %v3466
        %3858 = vmatpush.msra.mxu0 %v3464
        %3859 = vmatpush.msra.mxu0 %v3462
        %3860 = vmatpush.msra.mxu0 %v3460
        %3861 = vmatpush.msra.mxu0 %v3458
        %3862 = vmatpush.msra.mxu0 %v3456
        %3863 = vmatmul.f32.gmra.mxu0 %v3841
        %v3864 = vpop.f32.mrf.mxu0
        %v3865 = vadd.f32 %v3843, %v3864
        %3866 = vdwg.mxu0
        %3867 = vmatpush.msra.mxu0 %v3487
        %3868 = vmatpush.msra.mxu0 %v3485
        %3869 = vmatpush.msra.mxu0 %v3483
        %3870 = vmatpush.msra.mxu0 %v3481
        %3871 = vmatpush.msra.mxu0 %v3479
        %3872 = vmatpush.msra.mxu0 %v3477
        %3873 = vmatpush.msra.mxu0 %v3475
        %3874 = vmatpush.msra.mxu0 %v3473
        %3875 = vmatpush.msra.mxu0 %v3471
        %3876 = vmatpush.msra.mxu0 %v3469
        %3877 = vmatpush.msra.mxu0 %v3467
        %3878 = vmatpush.msra.mxu0 %v3465
        %3879 = vmatpush.msra.mxu0 %v3463
        %3880 = vmatpush.msra.mxu0 %v3461
        %3881 = vmatpush.msra.mxu0 %v3459
        %3882 = vmatpush.msra.mxu0 %v3457
        %3883 = vmatmul.f32.gmra.mxu0 %v3841
        %v3884 = vpop.f32.mrf.mxu0
        %v3885 = vadd.f32 %v3844, %v3884
        %3886 = vdwg.mxu0
        %v3887 = vmax.f32 %v3865, 0.0
        %v3888 = vmax.f32 %v3885, 0.0
        %3889 = vmatpush.msra.mxu0 %v3504
        %3890 = vmatpush.msra.mxu0 %v3503
        %3891 = vmatpush.msra.mxu0 %v3502
        %3892 = vmatpush.msra.mxu0 %v3501
        %3893 = vmatpush.msra.mxu0 %v3500
        %3894 = vmatpush.msra.mxu0 %v3499
        %3895 = vmatpush.msra.mxu0 %v3498
        %3896 = vmatpush.msra.mxu0 %v3497
        %3897 = vmatpush.msra.mxu0 %v3496
        %3898 = vmatpush.msra.mxu0 %v3495
        %3899 = vmatpush.msra.mxu0 %v3494
        %3900 = vmatpush.msra.mxu0 %v3493
        %3901 = vmatpush.msra.mxu0 %v3492
        %3902 = vmatpush.msra.mxu0 %v3491
        %3903 = vmatpush.msra.mxu0 %v3490
        %3904 = vmatpush.msra.mxu0 %v3489
        %3905 = vmatmul.f32.gmra.mxu0 %v3887
        %v3906 = vpop.f32.mrf.mxu0
        %v3907 = vadd.f32 %v3526, %v3906
        %3908 = vdwg.mxu0
        %3909 = vmatpush.msra.mxu0 %v3520
        %3910 = vmatpush.msra.mxu0 %v3519
        %3911 = vmatpush.msra.mxu0 %v3518
        %3912 = vmatpush.msra.mxu0 %v3517
        %3913 = vmatpush.msra.mxu0 %v3516
        %3914 = vmatpush.msra.mxu0 %v3515
        %3915 = vmatpush.msra.mxu0 %v3514
        %3916 = vmatpush.msra.mxu0 %v3513
        %3917 = vmatpush.msra.mxu0 %v3512
        %3918 = vmatpush.msra.mxu0 %v3511
        %3919 = vmatpush.msra.mxu0 %v3510
        %3920 = vmatpush.msra.mxu0 %v3509
        %3921 = vmatpush.msra.mxu0 %v3508
        %3922 = vmatpush.msra.mxu0 %v3507
        %3923 = vmatpush.msra.mxu0 %v3506
        %3924 = vmatpush.msra.mxu0 %v3505
        %3925 = vmatmul.f32.gmra.mxu0 %v3888
        %v3926 = vpop.f32.mrf.mxu0
        %v3927 = vadd.f32 %v3907, %v3926
        %3928 = vdwg.mxu0
        %v3929 = vadd.f32 %v3841, %v3927
        %v3930 = vsel %vm3097, %v3929, 0.0
        %3931 = vadd.xlane.f32.xlu0 %v3930
        %v3932 = vpop.xlane.xlu0 %3931
        %v3933 = vmul.f32 %v3932, %v3273
        %v3934 = vsub.f32 %v3929, %v3933
        %v3935 = vmul.f32 %v3934, %v3934
        %v3936 = vsel %vm3097, %v3935, 0.0
        %3937 = vadd.xlane.f32.xlu0 %v3936
        %v3938 = vpop.xlane.xlu0 %3937
        %v3939 = vmul.f32 %v3938, %v3273
        %v3940 = vadd.f32 %v3939, 1e-05
        %v3941 = vrsqrt.pop %v3940
        %v3942 = vmul.f32 %v3941, %v3940
        %v3943 = vmul.f32 %v3942, %v3941
        %v3944 = vmul.f32 0.5, %v3943
        %v3945 = vsub.f32 1.5, %v3944
        %v3946 = vmul.f32 %v3941, %v3945
        %vm3947 = vweird.f32 %v3940
        %vm3948 = vweird.f32 %v3941
        %vm3949 = vmor %vm3947, %vm3948
        %v3950 = vsel %vm3949, %v3941, %v3946
        %v3951 = vmul.f32 %v3934, %v3950
        %v3952 = vmul.f32 %v3951, %v3529
        %v3953 = vadd.f32 %v3952, %v3530
        %v3954 = vld [vmem:[#allocation5 + $0x300] sm:$0x1]
        %v3955 = vld [vmem:[#allocation5] sm:$0xff]
        %v3956 = vld [vmem:[#allocation5 + $0x8] sm:$0xff]
        %v3957 = vld [vmem:[#allocation5 + $0x10] sm:$0xff]
        %v3958 = vld [vmem:[#allocation5 + $0x18] sm:$0xff]
        %v3959 = vld [vmem:[#allocation5 + $0x20] sm:$0xff]
        %v3960 = vld [vmem:[#allocation5 + $0x28] sm:$0xff]
        %v3961 = vld [vmem:[#allocation5 + $0x30] sm:$0xff]
        %v3962 = vld [vmem:[#allocation5 + $0x38] sm:$0xff]
        %v3963 = vld [vmem:[#allocation5 + $0x40] sm:$0xff]
        %v3964 = vld [vmem:[#allocation5 + $0x48] sm:$0xff]
        %v3965 = vld [vmem:[#allocation5 + $0x50] sm:$0xff]
        %v3966 = vld [vmem:[#allocation5 + $0x58] sm:$0xff]
        %v3967 = vld [vmem:[#allocation5 + $0x60] sm:$0xff]
        %v3968 = vld [vmem:[#allocation5 + $0x68] sm:$0xff]
        %v3969 = vld [vmem:[#allocation5 + $0x70] sm:$0xff]
        %v3970 = vld [vmem:[#allocation5 + $0x78] sm:$0xff]
        %3971 = vmatpush.msra.mxu0 %v3970
        %3972 = vmatpush.msra.mxu0 %v3969
        %3973 = vmatpush.msra.mxu0 %v3968
        %3974 = vmatpush.msra.mxu0 %v3967
        %3975 = vmatpush.msra.mxu0 %v3966
        %3976 = vmatpush.msra.mxu0 %v3965
        %3977 = vmatpush.msra.mxu0 %v3964
        %3978 = vmatpush.msra.mxu0 %v3963
        %3979 = vmatpush.msra.mxu0 %v3962
        %3980 = vmatpush.msra.mxu0 %v3961
        %3981 = vmatpush.msra.mxu0 %v3960
        %3982 = vmatpush.msra.mxu0 %v3959
        %3983 = vmatpush.msra.mxu0 %v3958
        %3984 = vmatpush.msra.mxu0 %v3957
        %3985 = vmatpush.msra.mxu0 %v3956
        %3986 = vmatpush.msra.mxu0 %v3955
        %3987 = vmatmul.f32.gmra.mxu0 %v3953
        %v3988 = vpop.f32.mrf.mxu0
        %v3989 = vadd.f32 0.0, %v3988
        %3990 = vdwg.mxu0
        %v3991 = vadd.f32 %v3954, %v3989
        %v3992 = vld [vmem:[#allocation5 + $0x80] sm:$0xff]
        %v3993 = vld [vmem:[#allocation5 + $0x88] sm:$0xff]
        %v3994 = vld [vmem:[#allocation5 + $0x90] sm:$0xff]
        %v3995 = vld [vmem:[#allocation5 + $0x98] sm:$0xff]
        %v3996 = vld [vmem:[#allocation5 + $0xa0] sm:$0xff]
        %v3997 = vld [vmem:[#allocation5 + $0xa8] sm:$0xff]
        %v3998 = vld [vmem:[#allocation5 + $0xb0] sm:$0xff]
        %v3999 = vld [vmem:[#allocation5 + $0xb8] sm:$0xff]
        %v4000 = vld [vmem:[#allocation5 + $0xc0] sm:$0xff]
        %v4001 = vld [vmem:[#allocation5 + $0xc8] sm:$0xff]
        %v4002 = vld [vmem:[#allocation5 + $0xd0] sm:$0xff]
        %v4003 = vld [vmem:[#allocation5 + $0xd8] sm:$0xff]
        %v4004 = vld [vmem:[#allocation5 + $0xe0] sm:$0xff]
        %v4005 = vld [vmem:[#allocation5 + $0xe8] sm:$0xff]
        %v4006 = vld [vmem:[#allocation5 + $0xf0] sm:$0xff]
        %v4007 = vld [vmem:[#allocation5 + $0xf8] sm:$0xff]
        %v4009 = vrot.slane %v3953, 1
        %4011 = vmatpush.msra.mxu0 %v4007
        %4012 = vmatpush.msra.mxu0 %v4006
        %4013 = vmatpush.msra.mxu0 %v4005
        %4014 = vmatpush.msra.mxu0 %v4004
        %4015 = vmatpush.msra.mxu0 %v4003
        %4016 = vmatpush.msra.mxu0 %v4002
        %4017 = vmatpush.msra.mxu0 %v4001
        %4018 = vmatpush.msra.mxu0 %v4000
        %4019 = vmatpush.msra.mxu0 %v3999
        %4020 = vmatpush.msra.mxu0 %v3998
        %4021 = vmatpush.msra.mxu0 %v3997
        %4022 = vmatpush.msra.mxu0 %v3996
        %4023 = vmatpush.msra.mxu0 %v3995
        %4024 = vmatpush.msra.mxu0 %v3994
        %4025 = vmatpush.msra.mxu0 %v3993
        %4026 = vmatpush.msra.mxu0 %v3992
        %4027 = vmatmul.f32.gmra.mxu0 %v4009
        %v4028 = vpop.f32.mrf.mxu0
        %v4029 = vadd.f32 0.0, %v4028
        %4030 = vdwg.mxu0
        %v4031 = vadd.f32 %v3991, %v4029
        %v4032 = vld [vmem:[#allocation5 + $0x100] sm:$0xff]
        %v4033 = vld [vmem:[#allocation5 + $0x108] sm:$0xff]
        %v4034 = vld [vmem:[#allocation5 + $0x110] sm:$0xff]
        %v4035 = vld [vmem:[#allocation5 + $0x118] sm:$0xff]
        %v4036 = vld [vmem:[#allocation5 + $0x120] sm:$0xff]
        %v4037 = vld [vmem:[#allocation5 + $0x128] sm:$0xff]
        %v4038 = vld [vmem:[#allocation5 + $0x130] sm:$0xff]
        %v4039 = vld [vmem:[#allocation5 + $0x138] sm:$0xff]
        %v4040 = vld [vmem:[#allocation5 + $0x140] sm:$0xff]
        %v4041 = vld [vmem:[#allocation5 + $0x148] sm:$0xff]
        %v4042 = vld [vmem:[#allocation5 + $0x150] sm:$0xff]
        %v4043 = vld [vmem:[#allocation5 + $0x158] sm:$0xff]
        %v4044 = vld [vmem:[#allocation5 + $0x160] sm:$0xff]
        %v4045 = vld [vmem:[#allocation5 + $0x168] sm:$0xff]
        %v4046 = vld [vmem:[#allocation5 + $0x170] sm:$0xff]
        %v4047 = vld [vmem:[#allocation5 + $0x178] sm:$0xff]
        %v4048 = vrot.slane %v3953, 2
        %4050 = vmatpush.msra.mxu0 %v4047
        %4051 = vmatpush.msra.mxu0 %v4046
        %4052 = vmatpush.msra.mxu0 %v4045
        %4053 = vmatpush.msra.mxu0 %v4044
        %4054 = vmatpush.msra.mxu0 %v4043
        %4055 = vmatpush.msra.mxu0 %v4042
        %4056 = vmatpush.msra.mxu0 %v4041
        %4057 = vmatpush.msra.mxu0 %v4040
        %4058 = vmatpush.msra.mxu0 %v4039
        %4059 = vmatpush.msra.mxu0 %v4038
        %4060 = vmatpush.msra.mxu0 %v4037
        %4061 = vmatpush.msra.mxu0 %v4036
        %4062 = vmatpush.msra.mxu0 %v4035
        %4063 = vmatpush.msra.mxu0 %v4034
        %4064 = vmatpush.msra.mxu0 %v4033
        %4065 = vmatpush.msra.mxu0 %v4032
        %4066 = vmatmul.f32.gmra.mxu0 %v4048
        %v4067 = vpop.f32.mrf.mxu0
        %v4068 = vadd.f32 0.0, %v4067
        %4069 = vdwg.mxu0
        %v4070 = vadd.f32 %v4031, %v4068
        %v4071 = vld [vmem:[#allocation5 + $0x180] sm:$0xff]
        %v4072 = vld [vmem:[#allocation5 + $0x188] sm:$0xff]
        %v4073 = vld [vmem:[#allocation5 + $0x190] sm:$0xff]
        %v4074 = vld [vmem:[#allocation5 + $0x198] sm:$0xff]
        %v4075 = vld [vmem:[#allocation5 + $0x1a0] sm:$0xff]
        %v4076 = vld [vmem:[#allocation5 + $0x1a8] sm:$0xff]
        %v4077 = vld [vmem:[#allocation5 + $0x1b0] sm:$0xff]
        %v4078 = vld [vmem:[#allocation5 + $0x1b8] sm:$0xff]
        %v4079 = vld [vmem:[#allocation5 + $0x1c0] sm:$0xff]
        %v4080 = vld [vmem:[#allocation5 + $0x1c8] sm:$0xff]
        %v4081 = vld [vmem:[#allocation5 + $0x1d0] sm:$0xff]
        %v4082 = vld [vmem:[#allocation5 + $0x1d8] sm:$0xff]
        %v4083 = vld [vmem:[#allocation5 + $0x1e0] sm:$0xff]
        %v4084 = vld [vmem:[#allocation5 + $0x1e8] sm:$0xff]
        %v4085 = vld [vmem:[#allocation5 + $0x1f0] sm:$0xff]
        %v4086 = vld [vmem:[#allocation5 + $0x1f8] sm:$0xff]
        %v4087 = vrot.slane %v3953, 3
        %4089 = vmatpush.msra.mxu0 %v4086
        %4090 = vmatpush.msra.mxu0 %v4085
        %4091 = vmatpush.msra.mxu0 %v4084
        %4092 = vmatpush.msra.mxu0 %v4083
        %4093 = vmatpush.msra.mxu0 %v4082
        %4094 = vmatpush.msra.mxu0 %v4081
        %4095 = vmatpush.msra.mxu0 %v4080
        %4096 = vmatpush.msra.mxu0 %v4079
        %4097 = vmatpush.msra.mxu0 %v4078
        %4098 = vmatpush.msra.mxu0 %v4077
        %4099 = vmatpush.msra.mxu0 %v4076
        %4100 = vmatpush.msra.mxu0 %v4075
        %4101 = vmatpush.msra.mxu0 %v4074
        %4102 = vmatpush.msra.mxu0 %v4073
        %4103 = vmatpush.msra.mxu0 %v4072
        %4104 = vmatpush.msra.mxu0 %v4071
        %4105 = vmatmul.f32.gmra.mxu0 %v4087
        %v4106 = vpop.f32.mrf.mxu0
        %v4107 = vadd.f32 0.0, %v4106
        %4108 = vdwg.mxu0
        %v4109 = vadd.f32 %v4070, %v4107
        %v4110 = vld [vmem:[#allocation5 + $0x200] sm:$0xff]
        %v4111 = vld [vmem:[#allocation5 + $0x208] sm:$0xff]
        %v4112 = vld [vmem:[#allocation5 + $0x210] sm:$0xff]
        %v4113 = vld [vmem:[#allocation5 + $0x218] sm:$0xff]
        %v4114 = vld [vmem:[#allocation5 + $0x220] sm:$0xff]
        %v4115 = vld [vmem:[#allocation5 + $0x228] sm:$0xff]
        %v4116 = vld [vmem:[#allocation5 + $0x230] sm:$0xff]
        %v4117 = vld [vmem:[#allocation5 + $0x238] sm:$0xff]
        %v4118 = vld [vmem:[#allocation5 + $0x240] sm:$0xff]
        %v4119 = vld [vmem:[#allocation5 + $0x248] sm:$0xff]
        %v4120 = vld [vmem:[#allocation5 + $0x250] sm:$0xff]
        %v4121 = vld [vmem:[#allocation5 + $0x258] sm:$0xff]
        %v4122 = vld [vmem:[#allocation5 + $0x260] sm:$0xff]
        %v4123 = vld [vmem:[#allocation5 + $0x268] sm:$0xff]
        %v4124 = vld [vmem:[#allocation5 + $0x270] sm:$0xff]
        %v4125 = vld [vmem:[#allocation5 + $0x278] sm:$0xff]
        %v4126 = vrot.slane %v3953, 4
        %4128 = vmatpush.msra.mxu0 %v4125
        %4129 = vmatpush.msra.mxu0 %v4124
        %4130 = vmatpush.msra.mxu0 %v4123
        %4131 = vmatpush.msra.mxu0 %v4122
        %4132 = vmatpush.msra.mxu0 %v4121
        %4133 = vmatpush.msra.mxu0 %v4120
        %4134 = vmatpush.msra.mxu0 %v4119
        %4135 = vmatpush.msra.mxu0 %v4118
        %4136 = vmatpush.msra.mxu0 %v4117
        %4137 = vmatpush.msra.mxu0 %v4116
        %4138 = vmatpush.msra.mxu0 %v4115
        %4139 = vmatpush.msra.mxu0 %v4114
        %4140 = vmatpush.msra.mxu0 %v4113
        %4141 = vmatpush.msra.mxu0 %v4112
        %4142 = vmatpush.msra.mxu0 %v4111
        %4143 = vmatpush.msra.mxu0 %v4110
        %4144 = vmatmul.f32.gmra.mxu0 %v4126
        %v4145 = vpop.f32.mrf.mxu0
        %v4146 = vadd.f32 0.0, %v4145
        %4147 = vdwg.mxu0
        %v4148 = vadd.f32 %v4109, %v4146
        %v4149 = vld [vmem:[#allocation5 + $0x280] sm:$0xff]
        %v4150 = vld [vmem:[#allocation5 + $0x288] sm:$0xff]
        %v4151 = vld [vmem:[#allocation5 + $0x290] sm:$0xff]
        %v4152 = vld [vmem:[#allocation5 + $0x298] sm:$0xff]
        %v4153 = vld [vmem:[#allocation5 + $0x2a0] sm:$0xff]
        %v4154 = vld [vmem:[#allocation5 + $0x2a8] sm:$0xff]
        %v4155 = vld [vmem:[#allocation5 + $0x2b0] sm:$0xff]
        %v4156 = vld [vmem:[#allocation5 + $0x2b8] sm:$0xff]
        %v4157 = vld [vmem:[#allocation5 + $0x2c0] sm:$0xff]
        %v4158 = vld [vmem:[#allocation5 + $0x2c8] sm:$0xff]
        %v4159 = vld [vmem:[#allocation5 + $0x2d0] sm:$0xff]
        %v4160 = vld [vmem:[#allocation5 + $0x2d8] sm:$0xff]
        %v4161 = vld [vmem:[#allocation5 + $0x2e0] sm:$0xff]
        %v4162 = vld [vmem:[#allocation5 + $0x2e8] sm:$0xff]
        %v4163 = vld [vmem:[#allocation5 + $0x2f0] sm:$0xff]
        %v4164 = vld [vmem:[#allocation5 + $0x2f8] sm:$0xff]
        %v4165 = vrot.slane %v3953, 5
        %4167 = vmatpush.msra.mxu0 %v4164
        %4168 = vmatpush.msra.mxu0 %v4163
        %4169 = vmatpush.msra.mxu0 %v4162
        %4170 = vmatpush.msra.mxu0 %v4161
        %4171 = vmatpush.msra.mxu0 %v4160
        %4172 = vmatpush.msra.mxu0 %v4159
        %4173 = vmatpush.msra.mxu0 %v4158
        %4174 = vmatpush.msra.mxu0 %v4157
        %4175 = vmatpush.msra.mxu0 %v4156
        %4176 = vmatpush.msra.mxu0 %v4155
        %4177 = vmatpush.msra.mxu0 %v4154
        %4178 = vmatpush.msra.mxu0 %v4153
        %4179 = vmatpush.msra.mxu0 %v4152
        %4180 = vmatpush.msra.mxu0 %v4151
        %4181 = vmatpush.msra.mxu0 %v4150
        %4182 = vmatpush.msra.mxu0 %v4149
        %4183 = vmatmul.f32.gmra.mxu0 %v4165
        %v4184 = vpop.f32.mrf.mxu0
        %v4185 = vadd.f32 0.0, %v4184
        %4186 = vdwg.mxu0
        %v4187 = vadd.f32 %v4148, %v4185
        %v4188 = vperm.slane %v4187, 0
        %4189 = vst [vmem:[%s245] sm:$0xff] %v4188
        %p4190 = scmp.lt.s32.totalorder %s21, 1
        %s4191 = scalar_select %p4190, %s21, 1
        %s4192 = smul.addr %s4191, 8
        %s4193 = scalar_lea.vmem %s9, %s4192
        // Predicated region
        $region61: #{model_forward.1} parent=39 // pred_check
          %p4194 = pneg %p149
        $region62: #{model_forward.1} parent=39 // pred_check_branch
          %4196 = sbr.rel (%p4194) target = $region64
        $region63: #{model_forward.1} parent=39 // pred_region
          _
        $region64: #{model_forward.1} parent=39 // pred_fallthru
          _
      $region40: #{model_forward.1} parent=5 // pred_fallthru
        _
      %p4197 = scmp.le.s32.totalorder 2, %s16
      // Predicated region
      $region65: #{model_forward.1} parent=5 // pred_check
        %p4198 = pneg %p4197
      $region66: #{model_forward.1} parent=5 // pred_check_branch
        %4200 = sbr.rel (%p4198) target = $region68
      $region67: #{model_forward.1} parent=5 // pred_region
        %s4201 = ssub.s32 %s16, 2
        // Predicated region
        $region69: #{model_forward.1} parent=67 // pred_check
          %p4202 = pneg %p155
        $region70: #{model_forward.1} parent=67 // pred_check_branch
          %4204 = sbr.rel (%p4202) target = $region72
        $region71: #{model_forward.1} parent=67 // pred_region
          %p4205 = scmp.lt.s32.totalorder %s22, 1
          %s4206 = scalar_select %p4205, %s22, 1
          %s4207 = smul.addr %s4206, 8
          %s4208 = scalar_lea.vmem %s9, %s4207
        $region72: #{model_forward.1} parent=67 // pred_fallthru
          _
      $region68: #{model_forward.1} parent=5 // pred_fallthru
        _
    $region6: #{model_forward.1} parent=1 // loop_footer
      %s20 = sadd.s32 1, %s16
    $region7: #{model_forward.1} parent=1 // loop_footer_branch
      %15 = sbr.rel target = $region3
    $region8: #{model_forward.1} parent=1 // loop_exit
      _
    %4209 = vsyncpa [#allocation9], 1
    %s4210 = scalar_lea.sflag [#allocation9], 1
    %4211 = vsyncpa %s4210, 1
  %4212 = vsyncmov [#allocation7]
  %s4213 = vpop.sfrf %4212
  %p4214 = scmp.eq.s32.totalorder %s4213, 0
  %p4215 = pneg %p4214
  %4217 = shalt.err (%p4215)
  %s4218 = scalar_lea.sflag [#allocation7], 1
  %4219 = vsyncmov %s4218
  %s4220 = vpop.sfrf %4219
  %p4221 = scmp.eq.s32.totalorder %s4220, 0
  %p4222 = pneg %p4221
  %4224 = shalt.err (%p4222)
  %s4225 = scalar_lea.sflag [#allocation7], 2
  %4226 = vsyncmov %s4225
  %s4227 = vpop.sfrf %4226
  %p4228 = scmp.eq.s32.totalorder %s4227, 0
  %p4229 = pneg %p4228
  %4231 = shalt.err (%p4229)
  %s4232 = scalar_lea.sflag [#allocation7], 3
  %4233 = vsyncmov %s4232
  %s4234 = vpop.sfrf %4233
  %p4235 = scmp.eq.s32.totalorder %s4234, 0
  %p4236 = pneg %p4235
  %4238 = shalt.err (%p4236)

</llo_original>
